<compile_context>
chip_gen: v6e
topology: v6e:2x2x1
jax: 0.10.0
libtpu: 0.0.40
codegen_flags: <defaults>
</compile_context>

<pallas_src>
import math
from functools import partial

import numpy as np
import jax
import jax.numpy as jnp
from jax.experimental import pallas as pl
from jax.experimental.pallas import tpu as pltpu


# ------------------------------ kernel helpers ------------------------------

def _layernorm(v, w, b, eps):
    mu = jnp.mean(v, axis=-1, keepdims=True)
    var = jnp.mean((v - mu) ** 2, axis=-1, keepdims=True)
    return (v - mu) * jax.lax.rsqrt(var + eps) * w + b


def _gelu_exact(x):
    # exact (erf-based) GELU, matching torch.nn.GELU default
    return 0.5 * x * (1.0 + jax.lax.erf(x * (1.0 / math.sqrt(2.0))))


# contract the LAST dim of both operands (i.e. A @ B.T) without materializing
# a transpose -- the MXU handles this natively.
_NT = (((1,), (1,)), ((), ()))


# ------------------------------- fused kernel -------------------------------

def _decoder_kernel(
    slot_ref,                       # scalar prefetch (only used by out index_map)
    x_ref, pos_ref,
    ln1_w_ref, ln1_b_ref,
    q_w_ref, k_w_ref, v_w_ref,
    q_b_ref, k_b_ref, v_b_ref,
    proj_w_ref, proj_b_ref,
    ln2_w_ref, ln2_b_ref,
    fc1_w_ref, fc1_b_ref,
    fc2_w_ref, fc2_b_ref,
    o_ref,
    act_ref,
    *, num_heads, ln_eps,
):
    del slot_ref
    d = pl.program_id(1)

    # Layer 0 of each batch element: load activation and fuse the pos-embed add.
    @pl.when(d == 0)
    def _():
        act_ref[...] = x_ref[0] + pos_ref[0]

    x = act_ref[...]                      # (L, C) f32, resident across layers
    L, C = x.shape
    dh = C // num_heads
    scale = 1.0 / math.sqrt(dh)

    # ---------------- attention branch ----------------
    h = _layernorm(x, ln1_w_ref[0], ln1_b_ref[0], ln_eps)
    hb = h.astype(jnp.bfloat16)

    attn_acc = jnp.zeros((L, C), jnp.float32)
    for hh in range(num_heads):           # static unroll; all slices are leading-axis
        qh = jax.lax.dot_general(hb, q_w_ref[0, hh], _NT,
                                 preferred_element_type=jnp.float32) + q_b_ref[0, hh]
        kh = jax.lax.dot_general(hb, k_w_ref[0, hh], _NT,
                                 preferred_element_type=jnp.float32) + k_b_ref[0, hh]
        vh = jax.lax.dot_general(hb, v_w_ref[0, hh], _NT,
                                 preferred_element_type=jnp.float32) + v_b_ref[0, hh]

        s = jax.lax.dot_general(qh.astype(jnp.bfloat16), kh.astype(jnp.bfloat16), _NT,
                                preferred_element_type=jnp.float32) * scale    # (L, L)
        m = jnp.max(s, axis=-1, keepdims=True)
        p = jnp.exp(s - m)
        denom = jnp.sum(p, axis=-1, keepdims=True)
        p = p * pl.reciprocal(denom, approx=True)

        oh = jnp.dot(p.astype(jnp.bfloat16), vh.astype(jnp.bfloat16),
                     preferred_element_type=jnp.float32)                        # (L, dh)
        # accumulate head output through its rows of proj_w^T -> no concat / relayout
        attn_acc = attn_acc + jnp.dot(oh.astype(jnp.bfloat16), proj_w_ref[0, hh],
                                      preferred_element_type=jnp.float32)

    x = x + attn_acc + proj_b_ref[0]

    # ---------------- MLP branch ----------------
    h2 = _layernorm(x, ln2_w_ref[0], ln2_b_ref[0], ln_eps)
    h2 = jnp.dot(h2.astype(jnp.bfloat16), fc1_w_ref[0],
                 preferred_element_type=jnp.float32) + fc1_b_ref[0]
    h2 = _gelu_exact(h2)
    h2 = jnp.dot(h2.astype(jnp.bfloat16), fc2_w_ref[0],
                 preferred_element_type=jnp.float32) + fc2_b_ref[0]
    x = x + h2

    act_ref[...] = x        # carry to next layer (same batch element)
    o_ref[0, 0] = x         # routed to a student slot or the dummy slot


# ------------------------------ host-side wrapper ----------------------------

def _vmem_limit_bytes(L, C, Hd, num_heads):
    # bf16 weights per layer (double-buffered by the pipeline) + f32 activations
    # and intermediates, generous safety margin; clamped for v7x's 64 MiB VMEM.
    w_layer = (4 * C * C + 2 * C * Hd) * 2
    acts = (10 * L * C + 2 * L * Hd + 4 * L * L + 6 * L * max(C // num_heads, 8)) * 4
    est = 2 * w_layer + 2 * acts + (8 << 20)
    return int(max(32 << 20, min(est, 60 << 20)))


def vit_decoder_forward(x, params, num_heads, student_layer_indices):
    """Pallas implementation of ViTDecoder.forward -> list of (B, C, H, W)."""
    B, L, C = x.shape
    Himg = Wimg = int(math.isqrt(L))
    depth = params["fc1_w"].shape[0]
    Hd = params["fc1_w"].shape[2]
    dh = C // num_heads

    students = sorted(set(int(i) for i in student_layer_indices))
    n_students = len(students)
    n_slots = n_students + 1                      # last slot = dummy sink (discarded)
    slot_tbl = np.full((depth,), n_students, dtype=np.int32)
    for s_i, layer in enumerate(students):
        slot_tbl[layer - 1] = s_i
    slot_tbl = jnp.asarray(slot_tbl)

    def per_layer(shape):
        nd = len(shape)
        return pl.BlockSpec((1,) + shape, lambda b, d, s, _nd=nd: (d,) + (0,) * _nd)

    in_specs = [
        pl.BlockSpec((1, L, C), lambda b, d, s: (b, 0, 0)),      # x (fetched once per b)
        pl.BlockSpec((1, L, C), lambda b, d, s: (0, 0, 0)),      # pos_embed
        per_layer((1, C)), per_layer((1, C)),                    # ln1_w, ln1_b
        per_layer((num_heads, dh, C)),                           # q_w
        per_layer((num_heads, dh, C)),                           # k_w
        per_layer((num_heads, dh, C)),                           # v_w
        per_layer((num_heads, 1, dh)),                           # q_b
        per_layer((num_heads, 1, dh)),                           # k_b
        per_layer((num_heads, 1, dh)),                           # v_b
        per_layer((num_heads, dh, C)),                           # proj_w (= proj.weight.T)
        per_layer((1, C)),                                       # proj_b
        per_layer((1, C)), per_layer((1, C)),                    # ln2_w, ln2_b
        per_layer((C, Hd)), per_layer((1, Hd)),                  # fc1_w, fc1_b
        per_layer((Hd, C)), per_layer((1, C)),                   # fc2_w, fc2_b
    ]

    out = pl.pallas_call(
        partial(_decoder_kernel, num_heads=num_heads, ln_eps=1e-6),
        out_shape=jax.ShapeDtypeStruct((n_slots, B, L, C), jnp.float32),
        grid_spec=pltpu.PrefetchScalarGridSpec(
            num_scalar_prefetch=1,
            grid=(B, depth),
            in_specs=in_specs,
            out_specs=pl.BlockSpec((1, 1, L, C), lambda b, d, s: (s[d], b, 0, 0)),
            scratch_shapes=[pltpu.VMEM((L, C), jnp.float32)],
        ),
        compiler_params=pltpu.CompilerParams(
            dimension_semantics=("parallel", "arbitrary"),
            vmem_limit_bytes=_vmem_limit_bytes(L, C, Hd, num_heads),
        ),
    )(
        slot_tbl,
        x, params["pos_embed"],
        params["ln1_w"], params["ln1_b"],
        params["q_w"], params["k_w"], params["v_w"],
        params["q_b"], params["k_b"], params["v_b"],
        params["proj_w"], params["proj_b"],
        params["ln2_w"], params["ln2_b"],
        params["fc1_w"], params["fc1_b"],
        params["fc2_w"], params["fc2_b"],
    )

    feats = []
    for s_i in range(n_students):
        # NCHW to match the PyTorch spec (NHWC would be lane-dense/cheaper if
        # downstream allowed it).
        feats.append(out[s_i].reshape(B, Himg, Wimg, C).transpose(0, 3, 1, 2))
    return feats


# --------------------------- parameter construction --------------------------

def init_params(key, num_patches, embed_dim, depth, num_heads, mlp_ratio):
    C = embed_dim
    Hd = int(C * mlp_ratio)
    dh = C // num_heads
    ks = jax.random.split(key, 17)

    def wn(k, shape, dtype=jnp.bfloat16):
        return (0.02 * jax.random.normal(k, shape, jnp.float32)).astype(dtype)

    return {
        "pos_embed": wn(ks[0], (1, num_patches, C), jnp.float32),
        "ln1_w": 1.0 + wn(ks[1], (depth, 1, C), jnp.float32),
        "ln1_b": wn(ks[2], (depth, 1, C), jnp.float32),
        "q_w": wn(ks[3], (depth, num_heads, dh, C)),
        "k_w": wn(ks[4], (depth, num_heads, dh, C)),
        "v_w": wn(ks[5], (depth, num_heads, dh, C)),
        "q_b": wn(ks[6], (depth, num_heads, 1, dh), jnp.float32),
        "k_b": wn(ks[7], (depth, num_heads, 1, dh), jnp.float32),
        "v_b": wn(ks[8], (depth, num_heads, 1, dh), jnp.float32),
        "proj_w": wn(ks[9], (depth, num_heads, dh, C)),
        "proj_b": wn(ks[10], (depth, 1, C), jnp.float32),
        "ln2_w": 1.0 + wn(ks[11], (depth, 1, C), jnp.float32),
        "ln2_b": wn(ks[12], (depth, 1, C), jnp.float32),
        "fc1_w": wn(ks[13], (depth, C, Hd)),
        "fc1_b": wn(ks[14], (depth, 1, Hd), jnp.float32),
        "fc2_w": wn(ks[15], (depth, Hd, C)),
        "fc2_b": wn(ks[16], (depth, 1, C), jnp.float32),
    }


# ---------------------------- pure-JAX reference -----------------------------

def ref_forward(x, params, num_heads, student_layer_indices):
    """Standard full-matrix MHSA reference (emulates the same bf16 matmul-input
    rounding as the kernel; f32 accumulation / f32 LN-softmax-GELU)."""
    B, L, C = x.shape
    Himg = Wimg = int(math.isqrt(L))
    depth = params["fc1_w"].shape[0]
    dh = C // num_heads
    scale = 1.0 / math.sqrt(dh)
    students = set(int(i) for i in student_layer_indices)

    def ln(v, w, b):
        mu = jnp.mean(v, -1, keepdims=True)
        var = jnp.mean((v - mu) ** 2, -1, keepdims=True)
        return (v - mu) * jax.lax.rsqrt(var + 1e-6) * w + b

    def bdot(a, w):
        return jnp.dot(a.astype(jnp.bfloat16), w.astype(jnp.bfloat16),
                       preferred_element_type=jnp.float32)

    x = x + params["pos_embed"]
    feats = []
    for d in range(depth):
        w_q = params["q_w"][d].reshape(C, C)       # (out, in)
        w_k = params["k_w"][d].reshape(C, C)
        w_v = params["v_w"][d].reshape(C, C)
        w_p = params["proj_w"][d].reshape(C, C)    # (in, out)
        b_q = params["q_b"][d].reshape(1, C)
        b_k = params["k_b"][d].reshape(1, C)
        b_v = params["v_b"][d].reshape(1, C)

        h = ln(x, params["ln1_w"][d], params["ln1_b"][d])
        q = bdot(h, w_q.T) + b_q
        k = bdot(h, w_k.T) + b_k
        v = bdot(h, w_v.T) + b_v
        q = q.reshape(B, L, num_heads, dh).transpose(0, 2, 1, 3)
        k = k.reshape(B, L, num_heads, dh).transpose(0, 2, 1, 3)
        v = v.reshape(B, L, num_heads, dh).transpose(0, 2, 1, 3)
        att = jax.nn.softmax(
            jnp.einsum("bhqd,bhkd->bhqk", q.astype(jnp.bfloat16),
                       k.astype(jnp.bfloat16),
                       preferred_element_type=jnp.float32) * scale, axis=-1)
        o = jnp.einsum("bhqk,bhkd->bhqd", att.astype(jnp.bfloat16),
                       v.astype(jnp.bfloat16), preferred_element_type=jnp.float32)
        o = o.transpose(0, 2, 1, 3).reshape(B, L, C)
        x = x + bdot(o, w_p) + params["proj_b"][d]

        h2 = ln(x, params["ln2_w"][d], params["ln2_b"][d])
        h2 = bdot(h2, params["fc1_w"][d]) + params["fc1_b"][d]
        h2 = _gelu_exact(h2)
        h2 = bdot(h2, params["fc2_w"][d]) + params["fc2_b"][d]
        x = x + h2

        if (d + 1) in students:
            feats.append(x.reshape(B, Himg, Wimg, C).transpose(0, 3, 1, 2))
    return feats


# ----------------------------------- main ------------------------------------

if __name__ == "__main__":
    B = 2
    num_patches = 16          # L -> H = W = 4
    embed_dim = 32            # C
    depth = 2
    num_heads = 4
    mlp_ratio = 4.0
    student_layer_indices = [1, 2]

    key = jax.random.PRNGKey(0)
    kx, kp = jax.random.split(key)
    x = jax.random.normal(kx, (B, num_patches, embed_dim), jnp.float32)
    params = init_params(kp, num_patches, embed_dim, depth, num_heads, mlp_ratio)

    fwd = jax.jit(partial(vit_decoder_forward, num_heads=num_heads,
                          student_layer_indices=tuple(student_layer_indices)))
    feats = fwd(x, params)
    feats = [jax.block_until_ready(f) for f in feats]

    ref_feats = ref_forward(x, params, num_heads, student_layer_indices)
    assert len(feats) == len(ref_feats)
    for f, rf in zip(feats, ref_feats):
        assert f.shape == (B, embed_dim, 4, 4), f.shape
        max_diff = float(jnp.max(jnp.abs(f - rf)))
        assert jnp.allclose(f, rf, atol=1e-2, rtol=1e-2), (
            f"mismatch vs reference (max abs diff {max_diff})")

    print("KERNEL_OK")
</pallas_src>

<mosaic_0001>
module attributes {stable_mosaic.version = 11 : i64} {
  func.func @_decoder_kernel(%arg0: i32, %arg1: i32, %arg2: memref<2xi32, #tpu.memory_space<smem>>, %arg3: memref<1x16x32xf32, #tpu.memory_space<vmem>>, %arg4: memref<1x16x32xf32, #tpu.memory_space<vmem>>, %arg5: memref<1x1x32xf32, #tpu.memory_space<vmem>>, %arg6: memref<1x1x32xf32, #tpu.memory_space<vmem>>, %arg7: memref<1x4x8x32xbf16, #tpu.memory_space<vmem>>, %arg8: memref<1x4x8x32xbf16, #tpu.memory_space<vmem>>, %arg9: memref<1x4x8x32xbf16, #tpu.memory_space<vmem>>, %arg10: memref<1x4x1x8xf32, #tpu.memory_space<vmem>>, %arg11: memref<1x4x1x8xf32, #tpu.memory_space<vmem>>, %arg12: memref<1x4x1x8xf32, #tpu.memory_space<vmem>>, %arg13: memref<1x4x8x32xbf16, #tpu.memory_space<vmem>>, %arg14: memref<1x1x32xf32, #tpu.memory_space<vmem>>, %arg15: memref<1x1x32xf32, #tpu.memory_space<vmem>>, %arg16: memref<1x1x32xf32, #tpu.memory_space<vmem>>, %arg17: memref<1x32x128xbf16, #tpu.memory_space<vmem>>, %arg18: memref<1x1x128xf32, #tpu.memory_space<vmem>>, %arg19: memref<1x128x32xbf16, #tpu.memory_space<vmem>>, %arg20: memref<1x1x32xf32, #tpu.memory_space<vmem>>, %arg21: memref<1x1x16x32xf32, #tpu.memory_space<vmem>>, %arg22: memref<16x32xf32, #tpu.memory_space<vmem>>) attributes {dimension_semantics = [#tpu.dimension_semantics<parallel>, #tpu.dimension_semantics<arbitrary>], iteration_bounds = array<i64: 2, 2>, scalar_prefetch = 1 : i64, scratch_operands = 1 : i64, tpu.core_type = #tpu.core_type<tc>, window_params = [{transform_indices = @transform_0, window_bounds = array<i64: 1, 16, 32>}, {pipeline_mode = #tpu.pipeline_mode<synchronous>, transform_indices = @transform_1, window_bounds = array<i64: 1, 16, 32>}, {transform_indices = @transform_2, window_bounds = array<i64: 1, 1, 32>}, {transform_indices = @transform_3, window_bounds = array<i64: 1, 1, 32>}, {transform_indices = @transform_4, window_bounds = array<i64: 1, 4, 8, 32>}, {transform_indices = @transform_5, window_bounds = array<i64: 1, 4, 8, 32>}, {transform_indices = @transform_6, window_bounds = array<i64: 1, 4, 8, 32>}, {transform_indices = @transform_7, window_bounds = array<i64: 1, 4, 1, 8>}, {transform_indices = @transform_8, window_bounds = array<i64: 1, 4, 1, 8>}, {transform_indices = @transform_9, window_bounds = array<i64: 1, 4, 1, 8>}, {transform_indices = @transform_10, window_bounds = array<i64: 1, 4, 8, 32>}, {transform_indices = @transform_11, window_bounds = array<i64: 1, 1, 32>}, {transform_indices = @transform_12, window_bounds = array<i64: 1, 1, 32>}, {transform_indices = @transform_13, window_bounds = array<i64: 1, 1, 32>}, {transform_indices = @transform_14, window_bounds = array<i64: 1, 32, 128>}, {transform_indices = @transform_15, window_bounds = array<i64: 1, 1, 128>}, {transform_indices = @transform_16, window_bounds = array<i64: 1, 128, 32>}, {transform_indices = @transform_17, window_bounds = array<i64: 1, 1, 32>}, {transform_indices = @transform_18, window_bounds = array<i64: 1, 1, 16, 32>}]} {
    %c0_i32 = arith.constant 0 : i32
    %0 = arith.cmpi eq, %arg1, %c0_i32 : i32
    %1 = arith.extui %0 : i1 to i32
    %c0_i32_0 = arith.constant 0 : i32
    %2 = arith.cmpi ne, %1, %c0_i32_0 : i32
    scf.if %2 {
      %c0_195 = arith.constant 0 : index
      %c0_196 = arith.constant 0 : index
      %c0_197 = arith.constant 0 : index
      %268 = vector.load %arg3[%c0_195, %c0_196, %c0_197] : memref<1x16x32xf32, #tpu.memory_space<vmem>>, vector<1x16x32xf32>
      %269 = vector.shape_cast %268 : vector<1x16x32xf32> to vector<16x32xf32>
      %c0_198 = arith.constant 0 : index
      %c0_199 = arith.constant 0 : index
      %c0_200 = arith.constant 0 : index
      %270 = vector.load %arg4[%c0_198, %c0_199, %c0_200] : memref<1x16x32xf32, #tpu.memory_space<vmem>>, vector<1x16x32xf32>
      %271 = vector.shape_cast %270 : vector<1x16x32xf32> to vector<16x32xf32>
      %272 = arith.addf %269, %271 : vector<16x32xf32>
      %c0_201 = arith.constant 0 : index
      %c0_202 = arith.constant 0 : index
      %273 = vector.load %arg22[%c0_201, %c0_202] : memref<16x32xf32, #tpu.memory_space<vmem>>, vector<16x32xf32>
      tpu.vector_store %arg22[%c0_201, %c0_202], %272 {strides = array<i32>} : memref<16x32xf32, #tpu.memory_space<vmem>>, vector<16x32xf32>,
    } else {
    }
    %c0 = arith.constant 0 : index
    %c0_1 = arith.constant 0 : index
    %3 = vector.load %arg22[%c0, %c0_1] : memref<16x32xf32, #tpu.memory_space<vmem>>, vector<16x32xf32>
    %c0_2 = arith.constant 0 : index
    %c0_3 = arith.constant 0 : index
    %c0_4 = arith.constant 0 : index
    %4 = vector.load %arg5[%c0_2, %c0_3, %c0_4] : memref<1x1x32xf32, #tpu.memory_space<vmem>>, vector<1x1x32xf32>
    %5 = vector.shape_cast %4 : vector<1x1x32xf32> to vector<1x32xf32>
    %c0_5 = arith.constant 0 : index
    %c0_6 = arith.constant 0 : index
    %c0_7 = arith.constant 0 : index
    %6 = vector.load %arg6[%c0_5, %c0_6, %c0_7] : memref<1x1x32xf32, #tpu.memory_space<vmem>>, vector<1x1x32xf32>
    %7 = vector.shape_cast %6 : vector<1x1x32xf32> to vector<1x32xf32>
    %cst = arith.constant dense<0.000000e+00> : vector<16xf32>
    %8 = vector.multi_reduction <add>, %3, %cst [1] : vector<16x32xf32> to vector<16xf32>
    %9 = vector.shape_cast %8 : vector<16xf32> to vector<16x1xf32>
    %cst_8 = arith.constant 3.200000e+01 : f32
    %10 = vector.broadcast %cst_8 : f32 to vector<16x1xf32>
    %11 = arith.divf %9, %10 : vector<16x1xf32>
    %12 = vector.broadcast %11 : vector<16x1xf32> to vector<16x32xf32>
    %13 = arith.subf %3, %12 : vector<16x32xf32>
    %14 = arith.mulf %13, %13 : vector<16x32xf32>
    %cst_9 = arith.constant dense<0.000000e+00> : vector<16xf32>
    %15 = vector.multi_reduction <add>, %14, %cst_9 [1] : vector<16x32xf32> to vector<16xf32>
    %16 = vector.shape_cast %15 : vector<16xf32> to vector<16x1xf32>
    %cst_10 = arith.constant 3.200000e+01 : f32
    %17 = vector.broadcast %cst_10 : f32 to vector<16x1xf32>
    %18 = arith.divf %16, %17 : vector<16x1xf32>
    %19 = vector.broadcast %11 : vector<16x1xf32> to vector<16x32xf32>
    %20 = arith.subf %3, %19 : vector<16x32xf32>
    %cst_11 = arith.constant 9.99999997E-7 : f32
    %21 = vector.broadcast %cst_11 : f32 to vector<16x1xf32>
    %22 = arith.addf %18, %21 : vector<16x1xf32>
    %23 = math.rsqrt %22 : vector<16x1xf32>
    %24 = vector.broadcast %23 : vector<16x1xf32> to vector<16x32xf32>
    %25 = arith.mulf %20, %24 : vector<16x32xf32>
    %26 = vector.broadcast %5 : vector<1x32xf32> to vector<16x32xf32>
    %27 = arith.mulf %25, %26 : vector<16x32xf32>
    %28 = vector.broadcast %7 : vector<1x32xf32> to vector<16x32xf32>
    %29 = arith.addf %27, %28 : vector<16x32xf32>
    %30 = arith.truncf %29 : vector<16x32xf32> to vector<16x32xbf16>
    %cst_12 = arith.constant 0.000000e+00 : f32
    %31 = vector.broadcast %cst_12 : f32 to vector<16x32xf32>
    %c0_13 = arith.constant 0 : index
    %c0_14 = arith.constant 0 : index
    %c0_15 = arith.constant 0 : index
    %c0_16 = arith.constant 0 : index
    %32 = vector.load %arg7[%c0_13, %c0_14, %c0_15, %c0_16] : memref<1x4x8x32xbf16, #tpu.memory_space<vmem>>, vector<1x1x8x32xbf16>
    %33 = vector.shape_cast %32 : vector<1x1x8x32xbf16> to vector<8x32xbf16>
    %cst_17 = arith.constant dense<0.000000e+00> : vector<16x8xf32>
    %34 = tpu.matmul %30, %33, %cst_17 {dimension_numbers = #tpu.dot_dimension_numbers<[1], [1], [0], [0], [0, 0, 1, 0], [], []>} : vector<16x32xbf16>, vector<8x32xbf16>, vector<16x8xf32> -> vector<16x8xf32>
    %c0_18 = arith.constant 0 : index
    %c0_19 = arith.constant 0 : index
    %c0_20 = arith.constant 0 : index
    %c0_21 = arith.constant 0 : index
    %35 = vector.load %arg10[%c0_18, %c0_19, %c0_20, %c0_21] : memref<1x4x1x8xf32, #tpu.memory_space<vmem>>, vector<1x1x1x8xf32>
    %36 = vector.shape_cast %35 : vector<1x1x1x8xf32> to vector<1x8xf32>
    %37 = vector.broadcast %36 : vector<1x8xf32> to vector<16x8xf32>
    %38 = arith.addf %34, %37 : vector<16x8xf32>
    %c0_22 = arith.constant 0 : index
    %c0_23 = arith.constant 0 : index
    %c0_24 = arith.constant 0 : index
    %c0_25 = arith.constant 0 : index
    %39 = vector.load %arg8[%c0_22, %c0_23, %c0_24, %c0_25] : memref<1x4x8x32xbf16, #tpu.memory_space<vmem>>, vector<1x1x8x32xbf16>
    %40 = vector.shape_cast %39 : vector<1x1x8x32xbf16> to vector<8x32xbf16>
    %cst_26 = arith.constant dense<0.000000e+00> : vector<16x8xf32>
    %41 = tpu.matmul %30, %40, %cst_26 {dimension_numbers = #tpu.dot_dimension_numbers<[1], [1], [0], [0], [0, 0, 1, 0], [], []>} : vector<16x32xbf16>, vector<8x32xbf16>, vector<16x8xf32> -> vector<16x8xf32>
    %c0_27 = arith.constant 0 : index
    %c0_28 = arith.constant 0 : index
    %c0_29 = arith.constant 0 : index
    %c0_30 = arith.constant 0 : index
    %42 = vector.load %arg11[%c0_27, %c0_28, %c0_29, %c0_30] : memref<1x4x1x8xf32, #tpu.memory_space<vmem>>, vector<1x1x1x8xf32>
    %43 = vector.shape_cast %42 : vector<1x1x1x8xf32> to vector<1x8xf32>
    %44 = vector.broadcast %43 : vector<1x8xf32> to vector<16x8xf32>
    %45 = arith.addf %41, %44 : vector<16x8xf32>
    %c0_31 = arith.constant 0 : index
    %c0_32 = arith.constant 0 : index
    %c0_33 = arith.constant 0 : index
    %c0_34 = arith.constant 0 : index
    %46 = vector.load %arg9[%c0_31, %c0_32, %c0_33, %c0_34] : memref<1x4x8x32xbf16, #tpu.memory_space<vmem>>, vector<1x1x8x32xbf16>
    %47 = vector.shape_cast %46 : vector<1x1x8x32xbf16> to vector<8x32xbf16>
    %cst_35 = arith.constant dense<0.000000e+00> : vector<16x8xf32>
    %48 = tpu.matmul %30, %47, %cst_35 {dimension_numbers = #tpu.dot_dimension_numbers<[1], [1], [0], [0], [0, 0, 1, 0], [], []>} : vector<16x32xbf16>, vector<8x32xbf16>, vector<16x8xf32> -> vector<16x8xf32>
    %c0_36 = arith.constant 0 : index
    %c0_37 = arith.constant 0 : index
    %c0_38 = arith.constant 0 : index
    %c0_39 = arith.constant 0 : index
    %49 = vector.load %arg12[%c0_36, %c0_37, %c0_38, %c0_39] : memref<1x4x1x8xf32, #tpu.memory_space<vmem>>, vector<1x1x1x8xf32>
    %50 = vector.shape_cast %49 : vector<1x1x1x8xf32> to vector<1x8xf32>
    %51 = vector.broadcast %50 : vector<1x8xf32> to vector<16x8xf32>
    %52 = arith.addf %48, %51 : vector<16x8xf32>
    %53 = arith.truncf %38 : vector<16x8xf32> to vector<16x8xbf16>
    %54 = arith.truncf %45 : vector<16x8xf32> to vector<16x8xbf16>
    %cst_40 = arith.constant dense<0.000000e+00> : vector<16x16xf32>
    %55 = tpu.matmul %53, %54, %cst_40 {dimension_numbers = #tpu.dot_dimension_numbers<[1], [1], [0], [0], [0, 0, 1, 0], [], []>} : vector<16x8xbf16>, vector<16x8xbf16>, vector<16x16xf32> -> vector<16x16xf32>
    %cst_41 = arith.constant 0.353553385 : f32
    %56 = vector.broadcast %cst_41 : f32 to vector<16x16xf32>
    %57 = arith.mulf %55, %56 : vector<16x16xf32>
    %cst_42 = arith.constant dense<0xFF800000> : vector<16xf32>
    %58 = vector.multi_reduction <maximumf>, %57, %cst_42 [1] : vector<16x16xf32> to vector<16xf32>
    %59 = vector.shape_cast %58 : vector<16xf32> to vector<16x1xf32>
    %60 = vector.broadcast %59 : vector<16x1xf32> to vector<16x16xf32>
    %61 = arith.subf %57, %60 : vector<16x16xf32>
    %62 = math.exp %61 : vector<16x16xf32>
    %cst_43 = arith.constant dense<0.000000e+00> : vector<16xf32>
    %63 = vector.multi_reduction <add>, %62, %cst_43 [1] : vector<16x16xf32> to vector<16xf32>
    %64 = vector.shape_cast %63 : vector<16xf32> to vector<16x1xf32>
    %65 = tpu.reciprocal %64 {approx = true} : vector<16x1xf32> -> vector<16x1xf32>
    %66 = vector.broadcast %65 : vector<16x1xf32> to vector<16x16xf32>
    %67 = arith.mulf %62, %66 : vector<16x16xf32>
    %68 = arith.truncf %67 : vector<16x16xf32> to vector<16x16xbf16>
    %69 = arith.truncf %52 : vector<16x8xf32> to vector<16x8xbf16>
    %cst_44 = arith.constant dense<0.000000e+00> : vector<16x8xf32>
    %70 = tpu.matmul %68, %69, %cst_44 {dimension_numbers = #tpu.dot_dimension_numbers<[1], [0], [0], [1], [0, 0, 1, 1], [], []>} : vector<16x16xbf16>, vector<16x8xbf16>, vector<16x8xf32> -> vector<16x8xf32>
    %71 = arith.truncf %70 : vector<16x8xf32> to vector<16x8xbf16>
    %c0_45 = arith.constant 0 : index
    %c0_46 = arith.constant 0 : index
    %c0_47 = arith.constant 0 : index
    %c0_48 = arith.constant 0 : index
    %72 = vector.load %arg13[%c0_45, %c0_46, %c0_47, %c0_48] : memref<1x4x8x32xbf16, #tpu.memory_space<vmem>>, vector<1x1x8x32xbf16>
    %73 = vector.shape_cast %72 : vector<1x1x8x32xbf16> to vector<8x32xbf16>
    %cst_49 = arith.constant dense<0.000000e+00> : vector<16x32xf32>
    %74 = tpu.matmul %71, %73, %cst_49 {dimension_numbers = #tpu.dot_dimension_numbers<[1], [0], [0], [1], [0, 0, 1, 1], [], []>} : vector<16x8xbf16>, vector<8x32xbf16>, vector<16x32xf32> -> vector<16x32xf32>
    %75 = arith.addf %31, %74 : vector<16x32xf32>
    %c0_50 = arith.constant 0 : index
    %c1 = arith.constant 1 : index
    %c0_51 = arith.constant 0 : index
    %c0_52 = arith.constant 0 : index
    %76 = vector.load %arg7[%c0_50, %c1, %c0_51, %c0_52] : memref<1x4x8x32xbf16, #tpu.memory_space<vmem>>, vector<1x1x8x32xbf16>
    %77 = vector.shape_cast %76 : vector<1x1x8x32xbf16> to vector<8x32xbf16>
    %cst_53 = arith.constant dense<0.000000e+00> : vector<16x8xf32>
    %78 = tpu.matmul %30, %77, %cst_53 {dimension_numbers = #tpu.dot_dimension_numbers<[1], [1], [0], [0], [0, 0, 1, 0], [], []>} : vector<16x32xbf16>, vector<8x32xbf16>, vector<16x8xf32> -> vector<16x8xf32>
    %c0_54 = arith.constant 0 : index
    %c1_55 = arith.constant 1 : index
    %c0_56 = arith.constant 0 : index
    %c0_57 = arith.constant 0 : index
    %79 = vector.load %arg10[%c0_54, %c1_55, %c0_56, %c0_57] : memref<1x4x1x8xf32, #tpu.memory_space<vmem>>, vector<1x1x1x8xf32>
    %80 = vector.shape_cast %79 : vector<1x1x1x8xf32> to vector<1x8xf32>
    %81 = vector.broadcast %80 : vector<1x8xf32> to vector<16x8xf32>
    %82 = arith.addf %78, %81 : vector<16x8xf32>
    %c0_58 = arith.constant 0 : index
    %c1_59 = arith.constant 1 : index
    %c0_60 = arith.constant 0 : index
    %c0_61 = arith.constant 0 : index
    %83 = vector.load %arg8[%c0_58, %c1_59, %c0_60, %c0_61] : memref<1x4x8x32xbf16, #tpu.memory_space<vmem>>, vector<1x1x8x32xbf16>
    %84 = vector.shape_cast %83 : vector<1x1x8x32xbf16> to vector<8x32xbf16>
    %cst_62 = arith.constant dense<0.000000e+00> : vector<16x8xf32>
    %85 = tpu.matmul %30, %84, %cst_62 {dimension_numbers = #tpu.dot_dimension_numbers<[1], [1], [0], [0], [0, 0, 1, 0], [], []>} : vector<16x32xbf16>, vector<8x32xbf16>, vector<16x8xf32> -> vector<16x8xf32>
    %c0_63 = arith.constant 0 : index
    %c1_64 = arith.constant 1 : index
    %c0_65 = arith.constant 0 : index
    %c0_66 = arith.constant 0 : index
    %86 = vector.load %arg11[%c0_63, %c1_64, %c0_65, %c0_66] : memref<1x4x1x8xf32, #tpu.memory_space<vmem>>, vector<1x1x1x8xf32>
    %87 = vector.shape_cast %86 : vector<1x1x1x8xf32> to vector<1x8xf32>
    %88 = vector.broadcast %87 : vector<1x8xf32> to vector<16x8xf32>
    %89 = arith.addf %85, %88 : vector<16x8xf32>
    %c0_67 = arith.constant 0 : index
    %c1_68 = arith.constant 1 : index
    %c0_69 = arith.constant 0 : index
    %c0_70 = arith.constant 0 : index
    %90 = vector.load %arg9[%c0_67, %c1_68, %c0_69, %c0_70] : memref<1x4x8x32xbf16, #tpu.memory_space<vmem>>, vector<1x1x8x32xbf16>
    %91 = vector.shape_cast %90 : vector<1x1x8x32xbf16> to vector<8x32xbf16>
    %cst_71 = arith.constant dense<0.000000e+00> : vector<16x8xf32>
    %92 = tpu.matmul %30, %91, %cst_71 {dimension_numbers = #tpu.dot_dimension_numbers<[1], [1], [0], [0], [0, 0, 1, 0], [], []>} : vector<16x32xbf16>, vector<8x32xbf16>, vector<16x8xf32> -> vector<16x8xf32>
    %c0_72 = arith.constant 0 : index
    %c1_73 = arith.constant 1 : index
    %c0_74 = arith.constant 0 : index
    %c0_75 = arith.constant 0 : index
    %93 = vector.load %arg12[%c0_72, %c1_73, %c0_74, %c0_75] : memref<1x4x1x8xf32, #tpu.memory_space<vmem>>, vector<1x1x1x8xf32>
    %94 = vector.shape_cast %93 : vector<1x1x1x8xf32> to vector<1x8xf32>
    %95 = vector.broadcast %94 : vector<1x8xf32> to vector<16x8xf32>
    %96 = arith.addf %92, %95 : vector<16x8xf32>
    %97 = arith.truncf %82 : vector<16x8xf32> to vector<16x8xbf16>
    %98 = arith.truncf %89 : vector<16x8xf32> to vector<16x8xbf16>
    %cst_76 = arith.constant dense<0.000000e+00> : vector<16x16xf32>
    %99 = tpu.matmul %97, %98, %cst_76 {dimension_numbers = #tpu.dot_dimension_numbers<[1], [1], [0], [0], [0, 0, 1, 0], [], []>} : vector<16x8xbf16>, vector<16x8xbf16>, vector<16x16xf32> -> vector<16x16xf32>
    %cst_77 = arith.constant 0.353553385 : f32
    %100 = vector.broadcast %cst_77 : f32 to vector<16x16xf32>
    %101 = arith.mulf %99, %100 : vector<16x16xf32>
    %cst_78 = arith.constant dense<0xFF800000> : vector<16xf32>
    %102 = vector.multi_reduction <maximumf>, %101, %cst_78 [1] : vector<16x16xf32> to vector<16xf32>
    %103 = vector.shape_cast %102 : vector<16xf32> to vector<16x1xf32>
    %104 = vector.broadcast %103 : vector<16x1xf32> to vector<16x16xf32>
    %105 = arith.subf %101, %104 : vector<16x16xf32>
    %106 = math.exp %105 : vector<16x16xf32>
    %cst_79 = arith.constant dense<0.000000e+00> : vector<16xf32>
    %107 = vector.multi_reduction <add>, %106, %cst_79 [1] : vector<16x16xf32> to vector<16xf32>
    %108 = vector.shape_cast %107 : vector<16xf32> to vector<16x1xf32>
    %109 = tpu.reciprocal %108 {approx = true} : vector<16x1xf32> -> vector<16x1xf32>
    %110 = vector.broadcast %109 : vector<16x1xf32> to vector<16x16xf32>
    %111 = arith.mulf %106, %110 : vector<16x16xf32>
    %112 = arith.truncf %111 : vector<16x16xf32> to vector<16x16xbf16>
    %113 = arith.truncf %96 : vector<16x8xf32> to vector<16x8xbf16>
    %cst_80 = arith.constant dense<0.000000e+00> : vector<16x8xf32>
    %114 = tpu.matmul %112, %113, %cst_80 {dimension_numbers = #tpu.dot_dimension_numbers<[1], [0], [0], [1], [0, 0, 1, 1], [], []>} : vector<16x16xbf16>, vector<16x8xbf16>, vector<16x8xf32> -> vector<16x8xf32>
    %115 = arith.truncf %114 : vector<16x8xf32> to vector<16x8xbf16>
    %c0_81 = arith.constant 0 : index
    %c1_82 = arith.constant 1 : index
    %c0_83 = arith.constant 0 : index
    %c0_84 = arith.constant 0 : index
    %116 = vector.load %arg13[%c0_81, %c1_82, %c0_83, %c0_84] : memref<1x4x8x32xbf16, #tpu.memory_space<vmem>>, vector<1x1x8x32xbf16>
    %117 = vector.shape_cast %116 : vector<1x1x8x32xbf16> to vector<8x32xbf16>
    %cst_85 = arith.constant dense<0.000000e+00> : vector<16x32xf32>
    %118 = tpu.matmul %115, %117, %cst_85 {dimension_numbers = #tpu.dot_dimension_numbers<[1], [0], [0], [1], [0, 0, 1, 1], [], []>} : vector<16x8xbf16>, vector<8x32xbf16>, vector<16x32xf32> -> vector<16x32xf32>
    %119 = arith.addf %75, %118 : vector<16x32xf32>
    %c0_86 = arith.constant 0 : index
    %c2 = arith.constant 2 : index
    %c0_87 = arith.constant 0 : index
    %c0_88 = arith.constant 0 : index
    %120 = vector.load %arg7[%c0_86, %c2, %c0_87, %c0_88] : memref<1x4x8x32xbf16, #tpu.memory_space<vmem>>, vector<1x1x8x32xbf16>
    %121 = vector.shape_cast %120 : vector<1x1x8x32xbf16> to vector<8x32xbf16>
    %cst_89 = arith.constant dense<0.000000e+00> : vector<16x8xf32>
    %122 = tpu.matmul %30, %121, %cst_89 {dimension_numbers = #tpu.dot_dimension_numbers<[1], [1], [0], [0], [0, 0, 1, 0], [], []>} : vector<16x32xbf16>, vector<8x32xbf16>, vector<16x8xf32> -> vector<16x8xf32>
    %c0_90 = arith.constant 0 : index
    %c2_91 = arith.constant 2 : index
    %c0_92 = arith.constant 0 : index
    %c0_93 = arith.constant 0 : index
    %123 = vector.load %arg10[%c0_90, %c2_91, %c0_92, %c0_93] : memref<1x4x1x8xf32, #tpu.memory_space<vmem>>, vector<1x1x1x8xf32>
    %124 = vector.shape_cast %123 : vector<1x1x1x8xf32> to vector<1x8xf32>
    %125 = vector.broadcast %124 : vector<1x8xf32> to vector<16x8xf32>
    %126 = arith.addf %122, %125 : vector<16x8xf32>
    %c0_94 = arith.constant 0 : index
    %c2_95 = arith.constant 2 : index
    %c0_96 = arith.constant 0 : index
    %c0_97 = arith.constant 0 : index
    %127 = vector.load %arg8[%c0_94, %c2_95, %c0_96, %c0_97] : memref<1x4x8x32xbf16, #tpu.memory_space<vmem>>, vector<1x1x8x32xbf16>
    %128 = vector.shape_cast %127 : vector<1x1x8x32xbf16> to vector<8x32xbf16>
    %cst_98 = arith.constant dense<0.000000e+00> : vector<16x8xf32>
    %129 = tpu.matmul %30, %128, %cst_98 {dimension_numbers = #tpu.dot_dimension_numbers<[1], [1], [0], [0], [0, 0, 1, 0], [], []>} : vector<16x32xbf16>, vector<8x32xbf16>, vector<16x8xf32> -> vector<16x8xf32>
    %c0_99 = arith.constant 0 : index
    %c2_100 = arith.constant 2 : index
    %c0_101 = arith.constant 0 : index
    %c0_102 = arith.constant 0 : index
    %130 = vector.load %arg11[%c0_99, %c2_100, %c0_101, %c0_102] : memref<1x4x1x8xf32, #tpu.memory_space<vmem>>, vector<1x1x1x8xf32>
    %131 = vector.shape_cast %130 : vector<1x1x1x8xf32> to vector<1x8xf32>
    %132 = vector.broadcast %131 : vector<1x8xf32> to vector<16x8xf32>
    %133 = arith.addf %129, %132 : vector<16x8xf32>
    %c0_103 = arith.constant 0 : index
    %c2_104 = arith.constant 2 : index
    %c0_105 = arith.constant 0 : index
    %c0_106 = arith.constant 0 : index
    %134 = vector.load %arg9[%c0_103, %c2_104, %c0_105, %c0_106] : memref<1x4x8x32xbf16, #tpu.memory_space<vmem>>, vector<1x1x8x32xbf16>
    %135 = vector.shape_cast %134 : vector<1x1x8x32xbf16> to vector<8x32xbf16>
    %cst_107 = arith.constant dense<0.000000e+00> : vector<16x8xf32>
    %136 = tpu.matmul %30, %135, %cst_107 {dimension_numbers = #tpu.dot_dimension_numbers<[1], [1], [0], [0], [0, 0, 1, 0], [], []>} : vector<16x32xbf16>, vector<8x32xbf16>, vector<16x8xf32> -> vector<16x8xf32>
    %c0_108 = arith.constant 0 : index
    %c2_109 = arith.constant 2 : index
    %c0_110 = arith.constant 0 : index
    %c0_111 = arith.constant 0 : index
    %137 = vector.load %arg12[%c0_108, %c2_109, %c0_110, %c0_111] : memref<1x4x1x8xf32, #tpu.memory_space<vmem>>, vector<1x1x1x8xf32>
    %138 = vector.shape_cast %137 : vector<1x1x1x8xf32> to vector<1x8xf32>
    %139 = vector.broadcast %138 : vector<1x8xf32> to vector<16x8xf32>
    %140 = arith.addf %136, %139 : vector<16x8xf32>
    %141 = arith.truncf %126 : vector<16x8xf32> to vector<16x8xbf16>
    %142 = arith.truncf %133 : vector<16x8xf32> to vector<16x8xbf16>
    %cst_112 = arith.constant dense<0.000000e+00> : vector<16x16xf32>
    %143 = tpu.matmul %141, %142, %cst_112 {dimension_numbers = #tpu.dot_dimension_numbers<[1], [1], [0], [0], [0, 0, 1, 0], [], []>} : vector<16x8xbf16>, vector<16x8xbf16>, vector<16x16xf32> -> vector<16x16xf32>
    %cst_113 = arith.constant 0.353553385 : f32
    %144 = vector.broadcast %cst_113 : f32 to vector<16x16xf32>
    %145 = arith.mulf %143, %144 : vector<16x16xf32>
    %cst_114 = arith.constant dense<0xFF800000> : vector<16xf32>
    %146 = vector.multi_reduction <maximumf>, %145, %cst_114 [1] : vector<16x16xf32> to vector<16xf32>
    %147 = vector.shape_cast %146 : vector<16xf32> to vector<16x1xf32>
    %148 = vector.broadcast %147 : vector<16x1xf32> to vector<16x16xf32>
    %149 = arith.subf %145, %148 : vector<16x16xf32>
    %150 = math.exp %149 : vector<16x16xf32>
    %cst_115 = arith.constant dense<0.000000e+00> : vector<16xf32>
    %151 = vector.multi_reduction <add>, %150, %cst_115 [1] : vector<16x16xf32> to vector<16xf32>
    %152 = vector.shape_cast %151 : vector<16xf32> to vector<16x1xf32>
    %153 = tpu.reciprocal %152 {approx = true} : vector<16x1xf32> -> vector<16x1xf32>
    %154 = vector.broadcast %153 : vector<16x1xf32> to vector<16x16xf32>
    %155 = arith.mulf %150, %154 : vector<16x16xf32>
    %156 = arith.truncf %155 : vector<16x16xf32> to vector<16x16xbf16>
    %157 = arith.truncf %140 : vector<16x8xf32> to vector<16x8xbf16>
    %cst_116 = arith.constant dense<0.000000e+00> : vector<16x8xf32>
    %158 = tpu.matmul %156, %157, %cst_116 {dimension_numbers = #tpu.dot_dimension_numbers<[1], [0], [0], [1], [0, 0, 1, 1], [], []>} : vector<16x16xbf16>, vector<16x8xbf16>, vector<16x8xf32> -> vector<16x8xf32>
    %159 = arith.truncf %158 : vector<16x8xf32> to vector<16x8xbf16>
    %c0_117 = arith.constant 0 : index
    %c2_118 = arith.constant 2 : index
    %c0_119 = arith.constant 0 : index
    %c0_120 = arith.constant 0 : index
    %160 = vector.load %arg13[%c0_117, %c2_118, %c0_119, %c0_120] : memref<1x4x8x32xbf16, #tpu.memory_space<vmem>>, vector<1x1x8x32xbf16>
    %161 = vector.shape_cast %160 : vector<1x1x8x32xbf16> to vector<8x32xbf16>
    %cst_121 = arith.constant dense<0.000000e+00> : vector<16x32xf32>
    %162 = tpu.matmul %159, %161, %cst_121 {dimension_numbers = #tpu.dot_dimension_numbers<[1], [0], [0], [1], [0, 0, 1, 1], [], []>} : vector<16x8xbf16>, vector<8x32xbf16>, vector<16x32xf32> -> vector<16x32xf32>
    %163 = arith.addf %119, %162 : vector<16x32xf32>
    %c0_122 = arith.constant 0 : index
    %c3 = arith.constant 3 : index
    %c0_123 = arith.constant 0 : index
    %c0_124 = arith.constant 0 : index
    %164 = vector.load %arg7[%c0_122, %c3, %c0_123, %c0_124] : memref<1x4x8x32xbf16, #tpu.memory_space<vmem>>, vector<1x1x8x32xbf16>
    %165 = vector.shape_cast %164 : vector<1x1x8x32xbf16> to vector<8x32xbf16>
    %cst_125 = arith.constant dense<0.000000e+00> : vector<16x8xf32>
    %166 = tpu.matmul %30, %165, %cst_125 {dimension_numbers = #tpu.dot_dimension_numbers<[1], [1], [0], [0], [0, 0, 1, 0], [], []>} : vector<16x32xbf16>, vector<8x32xbf16>, vector<16x8xf32> -> vector<16x8xf32>
    %c0_126 = arith.constant 0 : index
    %c3_127 = arith.constant 3 : index
    %c0_128 = arith.constant 0 : index
    %c0_129 = arith.constant 0 : index
    %167 = vector.load %arg10[%c0_126, %c3_127, %c0_128, %c0_129] : memref<1x4x1x8xf32, #tpu.memory_space<vmem>>, vector<1x1x1x8xf32>
    %168 = vector.shape_cast %167 : vector<1x1x1x8xf32> to vector<1x8xf32>
    %169 = vector.broadcast %168 : vector<1x8xf32> to vector<16x8xf32>
    %170 = arith.addf %166, %169 : vector<16x8xf32>
    %c0_130 = arith.constant 0 : index
    %c3_131 = arith.constant 3 : index
    %c0_132 = arith.constant 0 : index
    %c0_133 = arith.constant 0 : index
    %171 = vector.load %arg8[%c0_130, %c3_131, %c0_132, %c0_133] : memref<1x4x8x32xbf16, #tpu.memory_space<vmem>>, vector<1x1x8x32xbf16>
    %172 = vector.shape_cast %171 : vector<1x1x8x32xbf16> to vector<8x32xbf16>
    %cst_134 = arith.constant dense<0.000000e+00> : vector<16x8xf32>
    %173 = tpu.matmul %30, %172, %cst_134 {dimension_numbers = #tpu.dot_dimension_numbers<[1], [1], [0], [0], [0, 0, 1, 0], [], []>} : vector<16x32xbf16>, vector<8x32xbf16>, vector<16x8xf32> -> vector<16x8xf32>
    %c0_135 = arith.constant 0 : index
    %c3_136 = arith.constant 3 : index
    %c0_137 = arith.constant 0 : index
    %c0_138 = arith.constant 0 : index
    %174 = vector.load %arg11[%c0_135, %c3_136, %c0_137, %c0_138] : memref<1x4x1x8xf32, #tpu.memory_space<vmem>>, vector<1x1x1x8xf32>
    %175 = vector.shape_cast %174 : vector<1x1x1x8xf32> to vector<1x8xf32>
    %176 = vector.broadcast %175 : vector<1x8xf32> to vector<16x8xf32>
    %177 = arith.addf %173, %176 : vector<16x8xf32>
    %c0_139 = arith.constant 0 : index
    %c3_140 = arith.constant 3 : index
    %c0_141 = arith.constant 0 : index
    %c0_142 = arith.constant 0 : index
    %178 = vector.load %arg9[%c0_139, %c3_140, %c0_141, %c0_142] : memref<1x4x8x32xbf16, #tpu.memory_space<vmem>>, vector<1x1x8x32xbf16>
    %179 = vector.shape_cast %178 : vector<1x1x8x32xbf16> to vector<8x32xbf16>
    %cst_143 = arith.constant dense<0.000000e+00> : vector<16x8xf32>
    %180 = tpu.matmul %30, %179, %cst_143 {dimension_numbers = #tpu.dot_dimension_numbers<[1], [1], [0], [0], [0, 0, 1, 0], [], []>} : vector<16x32xbf16>, vector<8x32xbf16>, vector<16x8xf32> -> vector<16x8xf32>
    %c0_144 = arith.constant 0 : index
    %c3_145 = arith.constant 3 : index
    %c0_146 = arith.constant 0 : index
    %c0_147 = arith.constant 0 : index
    %181 = vector.load %arg12[%c0_144, %c3_145, %c0_146, %c0_147] : memref<1x4x1x8xf32, #tpu.memory_space<vmem>>, vector<1x1x1x8xf32>
    %182 = vector.shape_cast %181 : vector<1x1x1x8xf32> to vector<1x8xf32>
    %183 = vector.broadcast %182 : vector<1x8xf32> to vector<16x8xf32>
    %184 = arith.addf %180, %183 : vector<16x8xf32>
    %185 = arith.truncf %170 : vector<16x8xf32> to vector<16x8xbf16>
    %186 = arith.truncf %177 : vector<16x8xf32> to vector<16x8xbf16>
    %cst_148 = arith.constant dense<0.000000e+00> : vector<16x16xf32>
    %187 = tpu.matmul %185, %186, %cst_148 {dimension_numbers = #tpu.dot_dimension_numbers<[1], [1], [0], [0], [0, 0, 1, 0], [], []>} : vector<16x8xbf16>, vector<16x8xbf16>, vector<16x16xf32> -> vector<16x16xf32>
    %cst_149 = arith.constant 0.353553385 : f32
    %188 = vector.broadcast %cst_149 : f32 to vector<16x16xf32>
    %189 = arith.mulf %187, %188 : vector<16x16xf32>
    %cst_150 = arith.constant dense<0xFF800000> : vector<16xf32>
    %190 = vector.multi_reduction <maximumf>, %189, %cst_150 [1] : vector<16x16xf32> to vector<16xf32>
    %191 = vector.shape_cast %190 : vector<16xf32> to vector<16x1xf32>
    %192 = vector.broadcast %191 : vector<16x1xf32> to vector<16x16xf32>
    %193 = arith.subf %189, %192 : vector<16x16xf32>
    %194 = math.exp %193 : vector<16x16xf32>
    %cst_151 = arith.constant dense<0.000000e+00> : vector<16xf32>
    %195 = vector.multi_reduction <add>, %194, %cst_151 [1] : vector<16x16xf32> to vector<16xf32>
    %196 = vector.shape_cast %195 : vector<16xf32> to vector<16x1xf32>
    %197 = tpu.reciprocal %196 {approx = true} : vector<16x1xf32> -> vector<16x1xf32>
    %198 = vector.broadcast %197 : vector<16x1xf32> to vector<16x16xf32>
    %199 = arith.mulf %194, %198 : vector<16x16xf32>
    %200 = arith.truncf %199 : vector<16x16xf32> to vector<16x16xbf16>
    %201 = arith.truncf %184 : vector<16x8xf32> to vector<16x8xbf16>
    %cst_152 = arith.constant dense<0.000000e+00> : vector<16x8xf32>
    %202 = tpu.matmul %200, %201, %cst_152 {dimension_numbers = #tpu.dot_dimension_numbers<[1], [0], [0], [1], [0, 0, 1, 1], [], []>} : vector<16x16xbf16>, vector<16x8xbf16>, vector<16x8xf32> -> vector<16x8xf32>
    %203 = arith.truncf %202 : vector<16x8xf32> to vector<16x8xbf16>
    %c0_153 = arith.constant 0 : index
    %c3_154 = arith.constant 3 : index
    %c0_155 = arith.constant 0 : index
    %c0_156 = arith.constant 0 : index
    %204 = vector.load %arg13[%c0_153, %c3_154, %c0_155, %c0_156] : memref<1x4x8x32xbf16, #tpu.memory_space<vmem>>, vector<1x1x8x32xbf16>
    %205 = vector.shape_cast %204 : vector<1x1x8x32xbf16> to vector<8x32xbf16>
    %cst_157 = arith.constant dense<0.000000e+00> : vector<16x32xf32>
    %206 = tpu.matmul %203, %205, %cst_157 {dimension_numbers = #tpu.dot_dimension_numbers<[1], [0], [0], [1], [0, 0, 1, 1], [], []>} : vector<16x8xbf16>, vector<8x32xbf16>, vector<16x32xf32> -> vector<16x32xf32>
    %207 = arith.addf %163, %206 : vector<16x32xf32>
    %208 = arith.addf %3, %207 : vector<16x32xf32>
    %c0_158 = arith.constant 0 : index
    %c0_159 = arith.constant 0 : index
    %c0_160 = arith.constant 0 : index
    %209 = vector.load %arg14[%c0_158, %c0_159, %c0_160] : memref<1x1x32xf32, #tpu.memory_space<vmem>>, vector<1x1x32xf32>
    %210 = vector.shape_cast %209 : vector<1x1x32xf32> to vector<1x32xf32>
    %211 = vector.broadcast %210 : vector<1x32xf32> to vector<16x32xf32>
    %212 = arith.addf %208, %211 : vector<16x32xf32>
    %c0_161 = arith.constant 0 : index
    %c0_162 = arith.constant 0 : index
    %c0_163 = arith.constant 0 : index
    %213 = vector.load %arg15[%c0_161, %c0_162, %c0_163] : memref<1x1x32xf32, #tpu.memory_space<vmem>>, vector<1x1x32xf32>
    %214 = vector.shape_cast %213 : vector<1x1x32xf32> to vector<1x32xf32>
    %c0_164 = arith.constant 0 : index
    %c0_165 = arith.constant 0 : index
    %c0_166 = arith.constant 0 : index
    %215 = vector.load %arg16[%c0_164, %c0_165, %c0_166] : memref<1x1x32xf32, #tpu.memory_space<vmem>>, vector<1x1x32xf32>
    %216 = vector.shape_cast %215 : vector<1x1x32xf32> to vector<1x32xf32>
    %cst_167 = arith.constant dense<0.000000e+00> : vector<16xf32>
    %217 = vector.multi_reduction <add>, %212, %cst_167 [1] : vector<16x32xf32> to vector<16xf32>
    %218 = vector.shape_cast %217 : vector<16xf32> to vector<16x1xf32>
    %cst_168 = arith.constant 3.200000e+01 : f32
    %219 = vector.broadcast %cst_168 : f32 to vector<16x1xf32>
    %220 = arith.divf %218, %219 : vector<16x1xf32>
    %221 = vector.broadcast %220 : vector<16x1xf32> to vector<16x32xf32>
    %222 = arith.subf %212, %221 : vector<16x32xf32>
    %223 = arith.mulf %222, %222 : vector<16x32xf32>
    %cst_169 = arith.constant dense<0.000000e+00> : vector<16xf32>
    %224 = vector.multi_reduction <add>, %223, %cst_169 [1] : vector<16x32xf32> to vector<16xf32>
    %225 = vector.shape_cast %224 : vector<16xf32> to vector<16x1xf32>
    %cst_170 = arith.constant 3.200000e+01 : f32
    %226 = vector.broadcast %cst_170 : f32 to vector<16x1xf32>
    %227 = arith.divf %225, %226 : vector<16x1xf32>
    %228 = vector.broadcast %220 : vector<16x1xf32> to vector<16x32xf32>
    %229 = arith.subf %212, %228 : vector<16x32xf32>
    %cst_171 = arith.constant 9.99999997E-7 : f32
    %230 = vector.broadcast %cst_171 : f32 to vector<16x1xf32>
    %231 = arith.addf %227, %230 : vector<16x1xf32>
    %232 = math.rsqrt %231 : vector<16x1xf32>
    %233 = vector.broadcast %232 : vector<16x1xf32> to vector<16x32xf32>
    %234 = arith.mulf %229, %233 : vector<16x32xf32>
    %235 = vector.broadcast %214 : vector<1x32xf32> to vector<16x32xf32>
    %236 = arith.mulf %234, %235 : vector<16x32xf32>
    %237 = vector.broadcast %216 : vector<1x32xf32> to vector<16x32xf32>
    %238 = arith.addf %236, %237 : vector<16x32xf32>
    %239 = arith.truncf %238 : vector<16x32xf32> to vector<16x32xbf16>
    %c0_172 = arith.constant 0 : index
    %c0_173 = arith.constant 0 : index
    %c0_174 = arith.constant 0 : index
    %240 = vector.load %arg17[%c0_172, %c0_173, %c0_174] : memref<1x32x128xbf16, #tpu.memory_space<vmem>>, vector<1x32x128xbf16>
    %241 = vector.shape_cast %240 : vector<1x32x128xbf16> to vector<32x128xbf16>
    %cst_175 = arith.constant dense<0.000000e+00> : vector<16x128xf32>
    %242 = tpu.matmul %239, %241, %cst_175 {dimension_numbers = #tpu.dot_dimension_numbers<[1], [0], [0], [1], [0, 0, 1, 1], [], []>} : vector<16x32xbf16>, vector<32x128xbf16>, vector<16x128xf32> -> vector<16x128xf32>
    %c0_176 = arith.constant 0 : index
    %c0_177 = arith.constant 0 : index
    %c0_178 = arith.constant 0 : index
    %243 = vector.load %arg18[%c0_176, %c0_177, %c0_178] : memref<1x1x128xf32, #tpu.memory_space<vmem>>, vector<1x1x128xf32>
    %244 = vector.shape_cast %243 : vector<1x1x128xf32> to vector<1x128xf32>
    %245 = vector.broadcast %244 : vector<1x128xf32> to vector<16x128xf32>
    %246 = arith.addf %242, %245 : vector<16x128xf32>
    %cst_179 = arith.constant 5.000000e-01 : f32
    %247 = vector.broadcast %cst_179 : f32 to vector<16x128xf32>
    %248 = arith.mulf %247, %246 : vector<16x128xf32>
    %cst_180 = arith.constant 0.707106769 : f32
    %249 = vector.broadcast %cst_180 : f32 to vector<16x128xf32>
    %250 = arith.mulf %246, %249 : vector<16x128xf32>
    %251 = math.erf %250 : vector<16x128xf32>
    %cst_181 = arith.constant 1.000000e+00 : f32
    %252 = vector.broadcast %cst_181 : f32 to vector<16x128xf32>
    %253 = arith.addf %252, %251 : vector<16x128xf32>
    %254 = arith.mulf %248, %253 : vector<16x128xf32>
    %255 = arith.truncf %254 : vector<16x128xf32> to vector<16x128xbf16>
    %c0_182 = arith.constant 0 : index
    %c0_183 = arith.constant 0 : index
    %c0_184 = arith.constant 0 : index
    %256 = vector.load %arg19[%c0_182, %c0_183, %c0_184] : memref<1x128x32xbf16, #tpu.memory_space<vmem>>, vector<1x128x32xbf16>
    %257 = vector.shape_cast %256 : vector<1x128x32xbf16> to vector<128x32xbf16>
    %cst_185 = arith.constant dense<0.000000e+00> : vector<16x32xf32>
    %258 = tpu.matmul %255, %257, %cst_185 {dimension_numbers = #tpu.dot_dimension_numbers<[1], [0], [0], [1], [0, 0, 1, 1], [], []>} : vector<16x128xbf16>, vector<128x32xbf16>, vector<16x32xf32> -> vector<16x32xf32>
    %c0_186 = arith.constant 0 : index
    %c0_187 = arith.constant 0 : index
    %c0_188 = arith.constant 0 : index
    %259 = vector.load %arg20[%c0_186, %c0_187, %c0_188] : memref<1x1x32xf32, #tpu.memory_space<vmem>>, vector<1x1x32xf32>
    %260 = vector.shape_cast %259 : vector<1x1x32xf32> to vector<1x32xf32>
    %261 = vector.broadcast %260 : vector<1x32xf32> to vector<16x32xf32>
    %262 = arith.addf %258, %261 : vector<16x32xf32>
    %263 = arith.addf %212, %262 : vector<16x32xf32>
    %c0_189 = arith.constant 0 : index
    %c0_190 = arith.constant 0 : index
    %264 = vector.load %arg22[%c0_189, %c0_190] : memref<16x32xf32, #tpu.memory_space<vmem>>, vector<16x32xf32>
    tpu.vector_store %arg22[%c0_189, %c0_190], %263 {strides = array<i32>} : memref<16x32xf32, #tpu.memory_space<vmem>>, vector<16x32xf32>,
    %c0_191 = arith.constant 0 : index
    %c0_192 = arith.constant 0 : index
    %c0_193 = arith.constant 0 : index
    %c0_194 = arith.constant 0 : index
    %265 = vector.load %arg21[%c0_191, %c0_192, %c0_193, %c0_194] : memref<1x1x16x32xf32, #tpu.memory_space<vmem>>, vector<1x1x16x32xf32>
    %266 = vector.shape_cast %265 : vector<1x1x16x32xf32> to vector<16x32xf32>
    %267 = vector.shape_cast %263 : vector<16x32xf32> to vector<1x1x16x32xf32>
    tpu.vector_store %arg21[%c0_191, %c0_192, %c0_193, %c0_194], %267 {strides = array<i32>} : memref<1x1x16x32xf32, #tpu.memory_space<vmem>>, vector<1x1x16x32xf32>,
    return
  }
  func.func @transform_0(%arg0: i32, %arg1: i32, %arg2: memref<2xi32, #tpu.memory_space<smem>>) -> (i32, i32, i32) {
    %c0_i32 = arith.constant 0 : i32
    %c0_i32_0 = arith.constant 0 : i32
    %c0_i32_1 = arith.constant 0 : i32
    return %arg0, %c0_i32, %c0_i32_0 : i32, i32, i32
  }
  func.func @transform_1(%arg0: i32, %arg1: i32, %arg2: memref<2xi32, #tpu.memory_space<smem>>) -> (i32, i32, i32) {
    %c0_i32 = arith.constant 0 : i32
    %c0_i32_0 = arith.constant 0 : i32
    %c0_i32_1 = arith.constant 0 : i32
    %c0_i32_2 = arith.constant 0 : i32
    return %c0_i32, %c0_i32_0, %c0_i32_1 : i32, i32, i32
  }
  func.func @transform_2(%arg0: i32, %arg1: i32, %arg2: memref<2xi32, #tpu.memory_space<smem>>) -> (i32, i32, i32) {
    %c0_i32 = arith.constant 0 : i32
    %c0_i32_0 = arith.constant 0 : i32
    %c0_i32_1 = arith.constant 0 : i32
    return %arg1, %c0_i32, %c0_i32_0 : i32, i32, i32
  }
  func.func @transform_3(%arg0: i32, %arg1: i32, %arg2: memref<2xi32, #tpu.memory_space<smem>>) -> (i32, i32, i32) {
    %c0_i32 = arith.constant 0 : i32
    %c0_i32_0 = arith.constant 0 : i32
    %c0_i32_1 = arith.constant 0 : i32
    return %arg1, %c0_i32, %c0_i32_0 : i32, i32, i32
  }
  func.func @transform_4(%arg0: i32, %arg1: i32, %arg2: memref<2xi32, #tpu.memory_space<smem>>) -> (i32, i32, i32, i32) {
    %c0_i32 = arith.constant 0 : i32
    %c0_i32_0 = arith.constant 0 : i32
    %c0_i32_1 = arith.constant 0 : i32
    %c0_i32_2 = arith.constant 0 : i32
    return %arg1, %c0_i32, %c0_i32_0, %c0_i32_1 : i32, i32, i32, i32
  }
  func.func @transform_5(%arg0: i32, %arg1: i32, %arg2: memref<2xi32, #tpu.memory_space<smem>>) -> (i32, i32, i32, i32) {
    %c0_i32 = arith.constant 0 : i32
    %c0_i32_0 = arith.constant 0 : i32
    %c0_i32_1 = arith.constant 0 : i32
    %c0_i32_2 = arith.constant 0 : i32
    return %arg1, %c0_i32, %c0_i32_0, %c0_i32_1 : i32, i32, i32, i32
  }
  func.func @transform_6(%arg0: i32, %arg1: i32, %arg2: memref<2xi32, #tpu.memory_space<smem>>) -> (i32, i32, i32, i32) {
    %c0_i32 = arith.constant 0 : i32
    %c0_i32_0 = arith.constant 0 : i32
    %c0_i32_1 = arith.constant 0 : i32
    %c0_i32_2 = arith.constant 0 : i32
    return %arg1, %c0_i32, %c0_i32_0, %c0_i32_1 : i32, i32, i32, i32
  }
  func.func @transform_7(%arg0: i32, %arg1: i32, %arg2: memref<2xi32, #tpu.memory_space<smem>>) -> (i32, i32, i32, i32) {
    %c0_i32 = arith.constant 0 : i32
    %c0_i32_0 = arith.constant 0 : i32
    %c0_i32_1 = arith.constant 0 : i32
    %c0_i32_2 = arith.constant 0 : i32
    return %arg1, %c0_i32, %c0_i32_0, %c0_i32_1 : i32, i32, i32, i32
  }
  func.func @transform_8(%arg0: i32, %arg1: i32, %arg2: memref<2xi32, #tpu.memory_space<smem>>) -> (i32, i32, i32, i32) {
    %c0_i32 = arith.constant 0 : i32
    %c0_i32_0 = arith.constant 0 : i32
    %c0_i32_1 = arith.constant 0 : i32
    %c0_i32_2 = arith.constant 0 : i32
    return %arg1, %c0_i32, %c0_i32_0, %c0_i32_1 : i32, i32, i32, i32
  }
  func.func @transform_9(%arg0: i32, %arg1: i32, %arg2: memref<2xi32, #tpu.memory_space<smem>>) -> (i32, i32, i32, i32) {
    %c0_i32 = arith.constant 0 : i32
    %c0_i32_0 = arith.constant 0 : i32
    %c0_i32_1 = arith.constant 0 : i32
    %c0_i32_2 = arith.constant 0 : i32
    return %arg1, %c0_i32, %c0_i32_0, %c0_i32_1 : i32, i32, i32, i32
  }
  func.func @transform_10(%arg0: i32, %arg1: i32, %arg2: memref<2xi32, #tpu.memory_space<smem>>) -> (i32, i32, i32, i32) {
    %c0_i32 = arith.constant 0 : i32
    %c0_i32_0 = arith.constant 0 : i32
    %c0_i32_1 = arith.constant 0 : i32
    %c0_i32_2 = arith.constant 0 : i32
    return %arg1, %c0_i32, %c0_i32_0, %c0_i32_1 : i32, i32, i32, i32
  }
  func.func @transform_11(%arg0: i32, %arg1: i32, %arg2: memref<2xi32, #tpu.memory_space<smem>>) -> (i32, i32, i32) {
    %c0_i32 = arith.constant 0 : i32
    %c0_i32_0 = arith.constant 0 : i32
    %c0_i32_1 = arith.constant 0 : i32
    return %arg1, %c0_i32, %c0_i32_0 : i32, i32, i32
  }
  func.func @transform_12(%arg0: i32, %arg1: i32, %arg2: memref<2xi32, #tpu.memory_space<smem>>) -> (i32, i32, i32) {
    %c0_i32 = arith.constant 0 : i32
    %c0_i32_0 = arith.constant 0 : i32
    %c0_i32_1 = arith.constant 0 : i32
    return %arg1, %c0_i32, %c0_i32_0 : i32, i32, i32
  }
  func.func @transform_13(%arg0: i32, %arg1: i32, %arg2: memref<2xi32, #tpu.memory_space<smem>>) -> (i32, i32, i32) {
    %c0_i32 = arith.constant 0 : i32
    %c0_i32_0 = arith.constant 0 : i32
    %c0_i32_1 = arith.constant 0 : i32
    return %arg1, %c0_i32, %c0_i32_0 : i32, i32, i32
  }
  func.func @transform_14(%arg0: i32, %arg1: i32, %arg2: memref<2xi32, #tpu.memory_space<smem>>) -> (i32, i32, i32) {
    %c0_i32 = arith.constant 0 : i32
    %c0_i32_0 = arith.constant 0 : i32
    %c0_i32_1 = arith.constant 0 : i32
    return %arg1, %c0_i32, %c0_i32_0 : i32, i32, i32
  }
  func.func @transform_15(%arg0: i32, %arg1: i32, %arg2: memref<2xi32, #tpu.memory_space<smem>>) -> (i32, i32, i32) {
    %c0_i32 = arith.constant 0 : i32
    %c0_i32_0 = arith.constant 0 : i32
    %c0_i32_1 = arith.constant 0 : i32
    return %arg1, %c0_i32, %c0_i32_0 : i32, i32, i32
  }
  func.func @transform_16(%arg0: i32, %arg1: i32, %arg2: memref<2xi32, #tpu.memory_space<smem>>) -> (i32, i32, i32) {
    %c0_i32 = arith.constant 0 : i32
    %c0_i32_0 = arith.constant 0 : i32
    %c0_i32_1 = arith.constant 0 : i32
    return %arg1, %c0_i32, %c0_i32_0 : i32, i32, i32
  }
  func.func @transform_17(%arg0: i32, %arg1: i32, %arg2: memref<2xi32, #tpu.memory_space<smem>>) -> (i32, i32, i32) {
    %c0_i32 = arith.constant 0 : i32
    %c0_i32_0 = arith.constant 0 : i32
    %c0_i32_1 = arith.constant 0 : i32
    return %arg1, %c0_i32, %c0_i32_0 : i32, i32, i32
  }
  func.func @transform_18(%arg0: i32, %arg1: i32, %arg2: memref<2xi32, #tpu.memory_space<smem>>) -> (i32, i32, i32, i32) {
    %0 = arith.index_cast %arg1 : i32 to index
    %1 = memref.load %arg2[%0] : memref<2xi32, #tpu.memory_space<smem>>
    %c0_i32 = arith.constant 0 : i32
    %c0_i32_0 = arith.constant 0 : i32
    %c0_i32_1 = arith.constant 0 : i32
    return %1, %arg0, %c0_i32, %c0_i32_0 : i32, i32, i32, i32
  }
}

</mosaic_0001>

<llo_original>
// kernel: vit_decoder_forward.1
$region0: #{vit_decoder_forward.1}
  #allocation0 [shape = 'u32[]', space=smem, size = 0x4, offset = 0x4, fixed_abs, tag = 'smem constant byte address 0x4 - core index']
  #allocation1 [shape = 'u32[144,128]{1,0:T(1,128)}', space=vmem, size = 0x12000, scoped, tag = 'internal scratch']
  #allocation2 [shape = 'f32[16,32]{1,0:T(8,128)}', space=vmem, size = 0x2000, scoped, tag = 'scratch operand']
  #allocation3 [shape = 's32[1]{0}', space=sflag, size = 0x4, scoped, tag = 'scoped memory for vit_decoder_forward.1']
  #allocation4 [shape = 'u8[512]{0}', space=smem, size = 0x200, scoped, tag = 'prefetched SMEM operand 0']
  %s0 = inlined_call_operand.vmem [shape: s32[2], index: 0, kind: input, shape index: {}]
  %s1 = inlined_call_operand.vmem [shape: f32[2,16,32], index: 1, kind: input, shape index: {}]
  %s2 = inlined_call_operand.vmem [shape: f32[1,16,32], index: 2, kind: input, shape index: {}]
  %s3 = inlined_call_operand.hbm [shape: f32[2,1,32], index: 3, kind: input, shape index: {}]
  %s4 = inlined_call_operand.hbm [shape: f32[2,1,32], index: 4, kind: input, shape index: {}]
  %s5 = inlined_call_operand.vmem [shape: bf16[2,4,8,32], index: 5, kind: input, shape index: {}]
  %s6 = inlined_call_operand.vmem [shape: bf16[2,4,8,32], index: 6, kind: input, shape index: {}]
  %s7 = inlined_call_operand.vmem [shape: bf16[2,4,8,32], index: 7, kind: input, shape index: {}]
  %s8 = inlined_call_operand.vmem [shape: f32[2,4,1,8], index: 8, kind: input, shape index: {}]
  %s9 = inlined_call_operand.hbm [shape: f32[2,4,1,8], index: 9, kind: input, shape index: {}]
  %s10 = inlined_call_operand.hbm [shape: f32[2,4,1,8], index: 10, kind: input, shape index: {}]
  %s11 = inlined_call_operand.vmem [shape: bf16[2,4,8,32], index: 11, kind: input, shape index: {}]
  %s12 = inlined_call_operand.hbm [shape: f32[2,1,32], index: 12, kind: input, shape index: {}]
  %s13 = inlined_call_operand.hbm [shape: f32[2,1,32], index: 13, kind: input, shape index: {}]
  %s14 = inlined_call_operand.hbm [shape: f32[2,1,32], index: 14, kind: input, shape index: {}]
  %s15 = inlined_call_operand.hbm [shape: bf16[2,32,128], index: 15, kind: input, shape index: {}]
  %s16 = inlined_call_operand.hbm [shape: f32[2,1,128], index: 16, kind: input, shape index: {}]
  %s17 = inlined_call_operand.vmem [shape: bf16[2,128,32], index: 17, kind: input, shape index: {}]
  %s18 = inlined_call_operand.hbm [shape: f32[2,1,32], index: 18, kind: input, shape index: {}]
  %s19 = inlined_call_operand.vmem [shape: f32[3,2,16,32], index: 19, kind: output, shape index: {}]
  %s20 = sld [smem:[#allocation0]]
  $region149: #{vit_decoder_forward.1} parent=0
    _
  %s22 = ssub.s32 1, %s20
  %s23 = scalar_select 0, %s22, %s20
  %s24 = sshll.u32 %s0, 4
  %s25 = int_to_ptr.vmem [resolvable:$true] %s24
  %27 = dma.vmem_to_smem %s25, 16, [#allocation4], [#allocation3]
  %28 = dma.done [#allocation3], 16
  %29 = sfence
  $region1: #{vit_decoder_forward.1} parent=0
    #allocation5 [shape = 'u8[1024]{0}', space=vmem, size = 0x400, scoped, tag = 'input window, operand 3']
    #allocation6 [shape = 's32[2]{0}', space=sflag, size = 0x8, scoped, tag = 'scoped memory for vit_decoder_forward.1']
    #allocation7 [shape = 'u8[1024]{0}', space=vmem, size = 0x400, scoped, tag = 'input window, operand 4']
    #allocation8 [shape = 's32[2]{0}', space=sflag, size = 0x8, scoped, tag = 'scoped memory for vit_decoder_forward.1']
    #allocation9 [shape = 'u8[4096]{0}', space=vmem, size = 0x1000, scoped, tag = 'input window, operand 9']
    #allocation10 [shape = 'u8[4096]{0}', space=vmem, size = 0x1000, scoped, tag = 'input window, operand 10']
    #allocation11 [shape = 's32[2]{0}', space=sflag, size = 0x8, scoped, tag = 'scoped memory for vit_decoder_forward.1']
    #allocation12 [shape = 'u8[1024]{0}', space=vmem, size = 0x400, scoped, tag = 'input window, operand 12']
    #allocation13 [shape = 'u8[1024]{0}', space=vmem, size = 0x400, scoped, tag = 'input window, operand 13']
    #allocation14 [shape = 's32[2]{0}', space=sflag, size = 0x8, scoped, tag = 'scoped memory for vit_decoder_forward.1']
    #allocation15 [shape = 'u8[1024]{0}', space=vmem, size = 0x400, scoped, tag = 'input window, operand 14']
    #allocation16 [shape = 'u8[16384]{0}', space=vmem, size = 0x4000, scoped, tag = 'input window, operand 15']
    #allocation17 [shape = 's32[2]{0}', space=sflag, size = 0x8, scoped, tag = 'scoped memory for vit_decoder_forward.1']
    #allocation18 [shape = 'u8[1024]{0}', space=vmem, size = 0x400, scoped, tag = 'input window, operand 16']
    #allocation19 [shape = 'u8[1024]{0}', space=vmem, size = 0x400, scoped, tag = 'input window, operand 18']
    #allocation20 [shape = 's32[2]{0}', space=sflag, size = 0x8, scoped, tag = 'scoped memory for vit_decoder_forward.1']
    %30 = vsyncpa [#allocation6], 0
    %s31 = scalar_lea.sflag [#allocation6], 1
    %32 = vsyncpa %s31, 0
    %33 = vsyncpa [#allocation8], 0
    %s34 = scalar_lea.sflag [#allocation8], 1
    %35 = vsyncpa %s34, 0
    %36 = vsyncpa [#allocation11], 0
    %s37 = scalar_lea.sflag [#allocation11], 1
    %38 = vsyncpa %s37, 0
    %39 = vsyncpa [#allocation14], 0
    %s40 = scalar_lea.sflag [#allocation14], 1
    %41 = vsyncpa %s40, 0
    %42 = vsyncpa [#allocation17], 0
    %s43 = scalar_lea.sflag [#allocation17], 1
    %44 = vsyncpa %s43, 0
    %45 = vsyncpa [#allocation20], 0
    %s46 = scalar_lea.sflag [#allocation20], 1
    %47 = vsyncpa %s46, 0
    loop: start=0, step=1, limit=6
    $region2: #{vit_decoder_forward.1} parent=1 // loop_pre_header
      _
    $region3: #{vit_decoder_forward.1} parent=1 // loop_header
      %s49 = sphi 0, %s53
      %p50 = scmp.ge.s32.totalorder %s49, 6
      %s56 = sphi 0, %s68
      %s57 = sphi 0, %s64
      %s58 = sphi 0, %s56
      %s59 = sphi 0, %s57
      %s60 = sphi 0, %s58
      %s61 = sphi 0, %s59
      %s71 = sphi 0, %s73
      %s74 = sphi 0, %s71
      %s75 = sphi 0, %s74
      %s91 = sphi 0, %s75
      %s95 = sphi 0, %s95
      %s97 = sphi 0, %s95
      %s98 = sphi 0, %s97
      %s112 = sphi 0, %s98
      %s118 = sphi 0, %s120
      %s121 = sphi 0, %s118
      %s122 = sphi 0, %s121
      %s138 = sphi 0, %s122
      %s144 = sphi 0, %s146
      %s147 = sphi 0, %s144
      %s148 = sphi 0, %s147
      %s164 = sphi 0, %s148
      %s170 = sphi 0, %s172
      %s173 = sphi 0, %s170
      %s174 = sphi 0, %s173
      %s190 = sphi 0, %s174
      %s196 = sphi 0, %s198
      %s199 = sphi 0, %s196
      %s200 = sphi 0, %s199
      %s216 = sphi 0, %s200
      %s222 = sphi 0, %s224
      %s225 = sphi 0, %s222
      %s226 = sphi 0, %s225
      %s242 = sphi 0, %s226
      %s248 = sphi 0, %s250
      %s251 = sphi 0, %s248
      %s252 = sphi 0, %s251
      %s268 = sphi 0, %s252
      %s274 = sphi 0, %s276
      %s277 = sphi 0, %s274
      %s278 = sphi 0, %s277
      %s294 = sphi 0, %s278
      %s300 = sphi 0, %s302
      %s303 = sphi 0, %s300
      %s304 = sphi 0, %s303
      %s320 = sphi 0, %s304
      %s326 = sphi 0, %s328
      %s329 = sphi 0, %s326
      %s330 = sphi 0, %s329
      %s346 = sphi 0, %s330
      %s352 = sphi 0, %s354
      %s355 = sphi 0, %s352
      %s356 = sphi 0, %s355
      %s372 = sphi 0, %s356
      %s378 = sphi 0, %s380
      %s381 = sphi 0, %s378
      %s382 = sphi 0, %s381
      %s398 = sphi 0, %s382
      %s404 = sphi 0, %s406
      %s407 = sphi 0, %s404
      %s408 = sphi 0, %s407
      %s424 = sphi 0, %s408
      %s430 = sphi 0, %s432
      %s433 = sphi 0, %s430
      %s434 = sphi 0, %s433
      %s450 = sphi 0, %s434
      %s456 = sphi 0, %s458
      %s459 = sphi 0, %s456
      %s460 = sphi 0, %s459
      %s476 = sphi 0, %s460
      %s482 = sphi 0, %s484
      %s485 = sphi 0, %s482
      %s486 = sphi 0, %s485
      %s502 = sphi 0, %s486
      %s508 = sphi 0, %s510
      %s511 = sphi 0, %s508
      %s512 = sphi 0, %s511
      %s528 = sphi 0, %s512
      %s538 = sphi 0, %s540
      %s541 = sphi 0, %s538
      %s542 = sphi 0, %s541
      %s558 = sphi 0, %s542
    $region4: #{vit_decoder_forward.1} parent=1 // loop_header_branch
      %52 = sbr.rel (%p50) target = $region8
    $region5: #{vit_decoder_forward.1} parent=1 // loop_body
      %s54 = ssub.s32 %s49, 1
      %s55 = ssub.s32 %s49, 2
      %s62 = sadd.s32 1, %s57
      %p63 = scmp.ge.s32.totalorder %s62, 2
      %s64 = scalar_select %p63, 0, %s62
      %s65 = sadd.s32 1, %s56
      %s66 = scalar_select %p63, %s65, %s56
      %p67 = scmp.ge.s32.totalorder %s66, 2
      %s68 = scalar_select %p67, 0, %s66
      %s69 = ssub.s32 %s56, %s68
      %p70 = scmp.eq.s32.totalorder %s69, 0
      %s72 = sadd.s32 %s71, 1
      %s73 = scalar_select %p70, %s71, %s72
      %p76 = pneg %p70
      %p77 = scmp.eq.s32.totalorder %s49, 3
      %p78 = por %p76, %p77
      %p79 = scmp.ne.s32.totalorder %s71, %s74
      %p80 = scmp.eq.s32.totalorder %s49, 0
      %p81 = por %p79, %p80
      %p82 = scmp.ne.s32.totalorder %s71, %s74
      %p83 = scmp.eq.s32.totalorder %s54, 3
      %p84 = por %p82, %p83
      %p85 = scmp.ne.s32.totalorder %s74, %s75
      %p86 = scmp.eq.s32.totalorder %s54, 0
      %p87 = por %p85, %p86
      %p88 = scmp.ne.s32.totalorder %s74, %s75
      %p89 = scmp.eq.s32.totalorder %s55, 3
      %p90 = por %p88, %p89
      %p92 = scmp.ne.s32.totalorder %s75, %s91
      %p93 = scmp.eq.s32.totalorder %s55, 0
      %p94 = por %p92, %p93
      %s96 = sadd.s32 %s95, 1
      %p99 = scmp.eq.s32.totalorder %s49, 3
      %p100 = scmp.ne.s32.totalorder %s95, %s97
      %p101 = scmp.eq.s32.totalorder %s49, 0
      %p102 = por %p100, %p101
      %p103 = scmp.ne.s32.totalorder %s95, %s97
      %p104 = scmp.eq.s32.totalorder %s54, 3
      %p105 = por %p103, %p104
      %p106 = scmp.ne.s32.totalorder %s97, %s98
      %p107 = scmp.eq.s32.totalorder %s54, 0
      %p108 = por %p106, %p107
      %p109 = scmp.ne.s32.totalorder %s97, %s98
      %p110 = scmp.eq.s32.totalorder %s55, 3
      %p111 = por %p109, %p110
      %p113 = scmp.ne.s32.totalorder %s98, %s112
      %p114 = scmp.eq.s32.totalorder %s55, 0
      %p115 = por %p113, %p114
      %s116 = ssub.s32 %s57, %s64
      %p117 = scmp.eq.s32.totalorder %s116, 0
      %s119 = sadd.s32 %s118, 1
      %s120 = scalar_select %p117, %s118, %s119
      %p123 = pneg %p117
      %p124 = scmp.eq.s32.totalorder %s49, 3
      %p125 = por %p123, %p124
      %p126 = scmp.ne.s32.totalorder %s118, %s121
      %p127 = scmp.eq.s32.totalorder %s49, 0
      %p128 = por %p126, %p127
      %p129 = scmp.ne.s32.totalorder %s118, %s121
      %p130 = scmp.eq.s32.totalorder %s54, 3
      %p131 = por %p129, %p130
      %p132 = scmp.ne.s32.totalorder %s121, %s122
      %p133 = scmp.eq.s32.totalorder %s54, 0
      %p134 = por %p132, %p133
      %p135 = scmp.ne.s32.totalorder %s121, %s122
      %p136 = scmp.eq.s32.totalorder %s55, 3
      %p137 = por %p135, %p136
      %p139 = scmp.ne.s32.totalorder %s122, %s138
      %p140 = scmp.eq.s32.totalorder %s55, 0
      %p141 = por %p139, %p140
      %s142 = ssub.s32 %s57, %s64
      %p143 = scmp.eq.s32.totalorder %s142, 0
      %s145 = sadd.s32 %s144, 1
      %s146 = scalar_select %p143, %s144, %s145
      %p149 = pneg %p143
      %p150 = scmp.eq.s32.totalorder %s49, 3
      %p151 = por %p149, %p150
      %p152 = scmp.ne.s32.totalorder %s144, %s147
      %p153 = scmp.eq.s32.totalorder %s49, 0
      %p154 = por %p152, %p153
      %p155 = scmp.ne.s32.totalorder %s144, %s147
      %p156 = scmp.eq.s32.totalorder %s54, 3
      %p157 = por %p155, %p156
      %p158 = scmp.ne.s32.totalorder %s147, %s148
      %p159 = scmp.eq.s32.totalorder %s54, 0
      %p160 = por %p158, %p159
      %p161 = scmp.ne.s32.totalorder %s147, %s148
      %p162 = scmp.eq.s32.totalorder %s55, 3
      %p163 = por %p161, %p162
      %p165 = scmp.ne.s32.totalorder %s148, %s164
      %p166 = scmp.eq.s32.totalorder %s55, 0
      %p167 = por %p165, %p166
      %s168 = ssub.s32 %s57, %s64
      %p169 = scmp.eq.s32.totalorder %s168, 0
      %s171 = sadd.s32 %s170, 1
      %s172 = scalar_select %p169, %s170, %s171
      %p175 = pneg %p169
      %p176 = scmp.eq.s32.totalorder %s49, 3
      %p177 = por %p175, %p176
      %p178 = scmp.ne.s32.totalorder %s170, %s173
      %p179 = scmp.eq.s32.totalorder %s49, 0
      %p180 = por %p178, %p179
      %p181 = scmp.ne.s32.totalorder %s170, %s173
      %p182 = scmp.eq.s32.totalorder %s54, 3
      %p183 = por %p181, %p182
      %p184 = scmp.ne.s32.totalorder %s173, %s174
      %p185 = scmp.eq.s32.totalorder %s54, 0
      %p186 = por %p184, %p185
      %p187 = scmp.ne.s32.totalorder %s173, %s174
      %p188 = scmp.eq.s32.totalorder %s55, 3
      %p189 = por %p187, %p188
      %p191 = scmp.ne.s32.totalorder %s174, %s190
      %p192 = scmp.eq.s32.totalorder %s55, 0
      %p193 = por %p191, %p192
      %s194 = ssub.s32 %s57, %s64
      %p195 = scmp.eq.s32.totalorder %s194, 0
      %s197 = sadd.s32 %s196, 1
      %s198 = scalar_select %p195, %s196, %s197
      %p201 = pneg %p195
      %p202 = scmp.eq.s32.totalorder %s49, 3
      %p203 = por %p201, %p202
      %p204 = scmp.ne.s32.totalorder %s196, %s199
      %p205 = scmp.eq.s32.totalorder %s49, 0
      %p206 = por %p204, %p205
      %p207 = scmp.ne.s32.totalorder %s196, %s199
      %p208 = scmp.eq.s32.totalorder %s54, 3
      %p209 = por %p207, %p208
      %p210 = scmp.ne.s32.totalorder %s199, %s200
      %p211 = scmp.eq.s32.totalorder %s54, 0
      %p212 = por %p210, %p211
      %p213 = scmp.ne.s32.totalorder %s199, %s200
      %p214 = scmp.eq.s32.totalorder %s55, 3
      %p215 = por %p213, %p214
      %p217 = scmp.ne.s32.totalorder %s200, %s216
      %p218 = scmp.eq.s32.totalorder %s55, 0
      %p219 = por %p217, %p218
      %s220 = ssub.s32 %s57, %s64
      %p221 = scmp.eq.s32.totalorder %s220, 0
      %s223 = sadd.s32 %s222, 1
      %s224 = scalar_select %p221, %s222, %s223
      %p227 = pneg %p221
      %p228 = scmp.eq.s32.totalorder %s49, 3
      %p229 = por %p227, %p228
      %p230 = scmp.ne.s32.totalorder %s222, %s225
      %p231 = scmp.eq.s32.totalorder %s49, 0
      %p232 = por %p230, %p231
      %p233 = scmp.ne.s32.totalorder %s222, %s225
      %p234 = scmp.eq.s32.totalorder %s54, 3
      %p235 = por %p233, %p234
      %p236 = scmp.ne.s32.totalorder %s225, %s226
      %p237 = scmp.eq.s32.totalorder %s54, 0
      %p238 = por %p236, %p237
      %p239 = scmp.ne.s32.totalorder %s225, %s226
      %p240 = scmp.eq.s32.totalorder %s55, 3
      %p241 = por %p239, %p240
      %p243 = scmp.ne.s32.totalorder %s226, %s242
      %p244 = scmp.eq.s32.totalorder %s55, 0
      %p245 = por %p243, %p244
      %s246 = ssub.s32 %s57, %s64
      %p247 = scmp.eq.s32.totalorder %s246, 0
      %s249 = sadd.s32 %s248, 1
      %s250 = scalar_select %p247, %s248, %s249
      %p253 = pneg %p247
      %p254 = scmp.eq.s32.totalorder %s49, 3
      %p255 = por %p253, %p254
      %p256 = scmp.ne.s32.totalorder %s248, %s251
      %p257 = scmp.eq.s32.totalorder %s49, 0
      %p258 = por %p256, %p257
      %p259 = scmp.ne.s32.totalorder %s248, %s251
      %p260 = scmp.eq.s32.totalorder %s54, 3
      %p261 = por %p259, %p260
      %p262 = scmp.ne.s32.totalorder %s251, %s252
      %p263 = scmp.eq.s32.totalorder %s54, 0
      %p264 = por %p262, %p263
      %p265 = scmp.ne.s32.totalorder %s251, %s252
      %p266 = scmp.eq.s32.totalorder %s55, 3
      %p267 = por %p265, %p266
      %p269 = scmp.ne.s32.totalorder %s252, %s268
      %p270 = scmp.eq.s32.totalorder %s55, 0
      %p271 = por %p269, %p270
      %s272 = ssub.s32 %s57, %s64
      %p273 = scmp.eq.s32.totalorder %s272, 0
      %s275 = sadd.s32 %s274, 1
      %s276 = scalar_select %p273, %s274, %s275
      %p279 = pneg %p273
      %p280 = scmp.eq.s32.totalorder %s49, 3
      %p281 = por %p279, %p280
      %p282 = scmp.ne.s32.totalorder %s274, %s277
      %p283 = scmp.eq.s32.totalorder %s49, 0
      %p284 = por %p282, %p283
      %p285 = scmp.ne.s32.totalorder %s274, %s277
      %p286 = scmp.eq.s32.totalorder %s54, 3
      %p287 = por %p285, %p286
      %p288 = scmp.ne.s32.totalorder %s277, %s278
      %p289 = scmp.eq.s32.totalorder %s54, 0
      %p290 = por %p288, %p289
      %p291 = scmp.ne.s32.totalorder %s277, %s278
      %p292 = scmp.eq.s32.totalorder %s55, 3
      %p293 = por %p291, %p292
      %p295 = scmp.ne.s32.totalorder %s278, %s294
      %p296 = scmp.eq.s32.totalorder %s55, 0
      %p297 = por %p295, %p296
      %s298 = ssub.s32 %s57, %s64
      %p299 = scmp.eq.s32.totalorder %s298, 0
      %s301 = sadd.s32 %s300, 1
      %s302 = scalar_select %p299, %s300, %s301
      %p305 = pneg %p299
      %p306 = scmp.eq.s32.totalorder %s49, 3
      %p307 = por %p305, %p306
      %p308 = scmp.ne.s32.totalorder %s300, %s303
      %p309 = scmp.eq.s32.totalorder %s49, 0
      %p310 = por %p308, %p309
      %p311 = scmp.ne.s32.totalorder %s300, %s303
      %p312 = scmp.eq.s32.totalorder %s54, 3
      %p313 = por %p311, %p312
      %p314 = scmp.ne.s32.totalorder %s303, %s304
      %p315 = scmp.eq.s32.totalorder %s54, 0
      %p316 = por %p314, %p315
      %p317 = scmp.ne.s32.totalorder %s303, %s304
      %p318 = scmp.eq.s32.totalorder %s55, 3
      %p319 = por %p317, %p318
      %p321 = scmp.ne.s32.totalorder %s304, %s320
      %p322 = scmp.eq.s32.totalorder %s55, 0
      %p323 = por %p321, %p322
      %s324 = ssub.s32 %s57, %s64
      %p325 = scmp.eq.s32.totalorder %s324, 0
      %s327 = sadd.s32 %s326, 1
      %s328 = scalar_select %p325, %s326, %s327
      %p331 = pneg %p325
      %p332 = scmp.eq.s32.totalorder %s49, 3
      %p333 = por %p331, %p332
      %p334 = scmp.ne.s32.totalorder %s326, %s329
      %p335 = scmp.eq.s32.totalorder %s49, 0
      %p336 = por %p334, %p335
      %p337 = scmp.ne.s32.totalorder %s326, %s329
      %p338 = scmp.eq.s32.totalorder %s54, 3
      %p339 = por %p337, %p338
      %p340 = scmp.ne.s32.totalorder %s329, %s330
      %p341 = scmp.eq.s32.totalorder %s54, 0
      %p342 = por %p340, %p341
      %p343 = scmp.ne.s32.totalorder %s329, %s330
      %p344 = scmp.eq.s32.totalorder %s55, 3
      %p345 = por %p343, %p344
      %p347 = scmp.ne.s32.totalorder %s330, %s346
      %p348 = scmp.eq.s32.totalorder %s55, 0
      %p349 = por %p347, %p348
      %s350 = ssub.s32 %s57, %s64
      %p351 = scmp.eq.s32.totalorder %s350, 0
      %s353 = sadd.s32 %s352, 1
      %s354 = scalar_select %p351, %s352, %s353
      %p357 = pneg %p351
      %p358 = scmp.eq.s32.totalorder %s49, 3
      %p359 = por %p357, %p358
      %p360 = scmp.ne.s32.totalorder %s352, %s355
      %p361 = scmp.eq.s32.totalorder %s49, 0
      %p362 = por %p360, %p361
      %p363 = scmp.ne.s32.totalorder %s352, %s355
      %p364 = scmp.eq.s32.totalorder %s54, 3
      %p365 = por %p363, %p364
      %p366 = scmp.ne.s32.totalorder %s355, %s356
      %p367 = scmp.eq.s32.totalorder %s54, 0
      %p368 = por %p366, %p367
      %p369 = scmp.ne.s32.totalorder %s355, %s356
      %p370 = scmp.eq.s32.totalorder %s55, 3
      %p371 = por %p369, %p370
      %p373 = scmp.ne.s32.totalorder %s356, %s372
      %p374 = scmp.eq.s32.totalorder %s55, 0
      %p375 = por %p373, %p374
      %s376 = ssub.s32 %s57, %s64
      %p377 = scmp.eq.s32.totalorder %s376, 0
      %s379 = sadd.s32 %s378, 1
      %s380 = scalar_select %p377, %s378, %s379
      %p383 = pneg %p377
      %p384 = scmp.eq.s32.totalorder %s49, 3
      %p385 = por %p383, %p384
      %p386 = scmp.ne.s32.totalorder %s378, %s381
      %p387 = scmp.eq.s32.totalorder %s49, 0
      %p388 = por %p386, %p387
      %p389 = scmp.ne.s32.totalorder %s378, %s381
      %p390 = scmp.eq.s32.totalorder %s54, 3
      %p391 = por %p389, %p390
      %p392 = scmp.ne.s32.totalorder %s381, %s382
      %p393 = scmp.eq.s32.totalorder %s54, 0
      %p394 = por %p392, %p393
      %p395 = scmp.ne.s32.totalorder %s381, %s382
      %p396 = scmp.eq.s32.totalorder %s55, 3
      %p397 = por %p395, %p396
      %p399 = scmp.ne.s32.totalorder %s382, %s398
      %p400 = scmp.eq.s32.totalorder %s55, 0
      %p401 = por %p399, %p400
      %s402 = ssub.s32 %s57, %s64
      %p403 = scmp.eq.s32.totalorder %s402, 0
      %s405 = sadd.s32 %s404, 1
      %s406 = scalar_select %p403, %s404, %s405
      %p409 = pneg %p403
      %p410 = scmp.eq.s32.totalorder %s49, 3
      %p411 = por %p409, %p410
      %p412 = scmp.ne.s32.totalorder %s404, %s407
      %p413 = scmp.eq.s32.totalorder %s49, 0
      %p414 = por %p412, %p413
      %p415 = scmp.ne.s32.totalorder %s404, %s407
      %p416 = scmp.eq.s32.totalorder %s54, 3
      %p417 = por %p415, %p416
      %p418 = scmp.ne.s32.totalorder %s407, %s408
      %p419 = scmp.eq.s32.totalorder %s54, 0
      %p420 = por %p418, %p419
      %p421 = scmp.ne.s32.totalorder %s407, %s408
      %p422 = scmp.eq.s32.totalorder %s55, 3
      %p423 = por %p421, %p422
      %p425 = scmp.ne.s32.totalorder %s408, %s424
      %p426 = scmp.eq.s32.totalorder %s55, 0
      %p427 = por %p425, %p426
      %s428 = ssub.s32 %s57, %s64
      %p429 = scmp.eq.s32.totalorder %s428, 0
      %s431 = sadd.s32 %s430, 1
      %s432 = scalar_select %p429, %s430, %s431
      %p435 = pneg %p429
      %p436 = scmp.eq.s32.totalorder %s49, 3
      %p437 = por %p435, %p436
      %p438 = scmp.ne.s32.totalorder %s430, %s433
      %p439 = scmp.eq.s32.totalorder %s49, 0
      %p440 = por %p438, %p439
      %p441 = scmp.ne.s32.totalorder %s430, %s433
      %p442 = scmp.eq.s32.totalorder %s54, 3
      %p443 = por %p441, %p442
      %p444 = scmp.ne.s32.totalorder %s433, %s434
      %p445 = scmp.eq.s32.totalorder %s54, 0
      %p446 = por %p444, %p445
      %p447 = scmp.ne.s32.totalorder %s433, %s434
      %p448 = scmp.eq.s32.totalorder %s55, 3
      %p449 = por %p447, %p448
      %p451 = scmp.ne.s32.totalorder %s434, %s450
      %p452 = scmp.eq.s32.totalorder %s55, 0
      %p453 = por %p451, %p452
      %s454 = ssub.s32 %s57, %s64
      %p455 = scmp.eq.s32.totalorder %s454, 0
      %s457 = sadd.s32 %s456, 1
      %s458 = scalar_select %p455, %s456, %s457
      %p461 = pneg %p455
      %p462 = scmp.eq.s32.totalorder %s49, 3
      %p463 = por %p461, %p462
      %p464 = scmp.ne.s32.totalorder %s456, %s459
      %p465 = scmp.eq.s32.totalorder %s49, 0
      %p466 = por %p464, %p465
      %p467 = scmp.ne.s32.totalorder %s456, %s459
      %p468 = scmp.eq.s32.totalorder %s54, 3
      %p469 = por %p467, %p468
      %p470 = scmp.ne.s32.totalorder %s459, %s460
      %p471 = scmp.eq.s32.totalorder %s54, 0
      %p472 = por %p470, %p471
      %p473 = scmp.ne.s32.totalorder %s459, %s460
      %p474 = scmp.eq.s32.totalorder %s55, 3
      %p475 = por %p473, %p474
      %p477 = scmp.ne.s32.totalorder %s460, %s476
      %p478 = scmp.eq.s32.totalorder %s55, 0
      %p479 = por %p477, %p478
      %s480 = ssub.s32 %s57, %s64
      %p481 = scmp.eq.s32.totalorder %s480, 0
      %s483 = sadd.s32 %s482, 1
      %s484 = scalar_select %p481, %s482, %s483
      %p487 = pneg %p481
      %p488 = scmp.eq.s32.totalorder %s49, 3
      %p489 = por %p487, %p488
      %p490 = scmp.ne.s32.totalorder %s482, %s485
      %p491 = scmp.eq.s32.totalorder %s49, 0
      %p492 = por %p490, %p491
      %p493 = scmp.ne.s32.totalorder %s482, %s485
      %p494 = scmp.eq.s32.totalorder %s54, 3
      %p495 = por %p493, %p494
      %p496 = scmp.ne.s32.totalorder %s485, %s486
      %p497 = scmp.eq.s32.totalorder %s54, 0
      %p498 = por %p496, %p497
      %p499 = scmp.ne.s32.totalorder %s485, %s486
      %p500 = scmp.eq.s32.totalorder %s55, 3
      %p501 = por %p499, %p500
      %p503 = scmp.ne.s32.totalorder %s486, %s502
      %p504 = scmp.eq.s32.totalorder %s55, 0
      %p505 = por %p503, %p504
      %s506 = ssub.s32 %s57, %s64
      %p507 = scmp.eq.s32.totalorder %s506, 0
      %s509 = sadd.s32 %s508, 1
      %s510 = scalar_select %p507, %s508, %s509
      %p513 = pneg %p507
      %p514 = scmp.eq.s32.totalorder %s49, 3
      %p515 = por %p513, %p514
      %p516 = scmp.ne.s32.totalorder %s508, %s511
      %p517 = scmp.eq.s32.totalorder %s49, 0
      %p518 = por %p516, %p517
      %p519 = scmp.ne.s32.totalorder %s508, %s511
      %p520 = scmp.eq.s32.totalorder %s54, 3
      %p521 = por %p519, %p520
      %p522 = scmp.ne.s32.totalorder %s511, %s512
      %p523 = scmp.eq.s32.totalorder %s54, 0
      %p524 = por %p522, %p523
      %p525 = scmp.ne.s32.totalorder %s511, %s512
      %p526 = scmp.eq.s32.totalorder %s55, 3
      %p527 = por %p525, %p526
      %p529 = scmp.ne.s32.totalorder %s512, %s528
      %p530 = scmp.eq.s32.totalorder %s55, 0
      %p531 = por %p529, %p530
      %s532 = sld [smem:[#allocation4 + %s57]]
      %s533 = sld [smem:[#allocation4 + %s64]]
      %s534 = ssub.s32 %s532, %s533
      %s535 = ssub.s32 %s56, %s68
      %s536 = sor.u32 %s534, %s535
      %p537 = scmp.eq.s32.totalorder %s536, 0
      %s539 = sadd.s32 %s538, 1
      %s540 = scalar_select %p537, %s538, %s539
      %p543 = pneg %p537
      %p544 = scmp.eq.s32.totalorder %s49, 3
      %p545 = por %p543, %p544
      %p546 = scmp.ne.s32.totalorder %s538, %s541
      %p547 = scmp.eq.s32.totalorder %s49, 0
      %p548 = por %p546, %p547
      %p549 = scmp.ne.s32.totalorder %s538, %s541
      %p550 = scmp.eq.s32.totalorder %s54, 3
      %p551 = por %p549, %p550
      %p552 = scmp.ne.s32.totalorder %s541, %s542
      %p553 = scmp.eq.s32.totalorder %s54, 0
      %p554 = por %p552, %p553
      %p555 = scmp.ne.s32.totalorder %s541, %s542
      %p556 = scmp.eq.s32.totalorder %s55, 3
      %p557 = por %p555, %p556
      %p559 = scmp.ne.s32.totalorder %s542, %s558
      %p560 = scmp.eq.s32.totalorder %s55, 0
      %p561 = por %p559, %p560
      %p562 = scmp.le.s32.totalorder 1, %s49
      %p563 = scmp.lt.s32.totalorder %s49, 5
      %p564 = pnand %p562, %p563
      %p565 = pneg %p564
      // Predicated region
      $region9: #{vit_decoder_forward.1} parent=5 // pred_check
        _
      $region10: #{vit_decoder_forward.1} parent=5 // pred_check_branch
        %567 = sbr.rel (%p564) target = $region12
      $region11: #{vit_decoder_forward.1} parent=5 // pred_region
        %s568 = ssub.s32 %s49, 1
        // Predicated region
        $region13: #{vit_decoder_forward.1} parent=11 // pred_check
          %p569 = pneg %p108
        $region14: #{vit_decoder_forward.1} parent=11 // pred_check_branch
          %571 = sbr.rel (%p569) target = $region16
        $region15: #{vit_decoder_forward.1} parent=11 // pred_region
          _
        $region16: #{vit_decoder_forward.1} parent=11 // pred_fallthru
          _
      $region12: #{vit_decoder_forward.1} parent=5 // pred_fallthru
        _
      %p572 = scmp.lt.s32.totalorder %s49, 4
      // Predicated region
      $region17: #{vit_decoder_forward.1} parent=5 // pred_check
        %p573 = pneg %p572
      $region18: #{vit_decoder_forward.1} parent=5 // pred_check_branch
        %575 = sbr.rel (%p573) target = $region20
      $region19: #{vit_decoder_forward.1} parent=5 // pred_region
        // Predicated region
        $region21: #{vit_decoder_forward.1} parent=19 // pred_check
          %p576 = pneg %p81
        $region22: #{vit_decoder_forward.1} parent=19 // pred_check_branch
          %578 = sbr.rel (%p576) target = $region24
        $region23: #{vit_decoder_forward.1} parent=19 // pred_region
          %p579 = scmp.lt.s32.totalorder %s56, 1
          %s580 = scalar_select %p579, %s56, 1
          %s581 = smul.addr %s580, 2
          %s582 = smul.addr %s581, 8
          %s583 = scalar_lea.vmem %s1, %s582
        $region24: #{vit_decoder_forward.1} parent=19 // pred_fallthru
          _
        // Predicated region
        $region25: #{vit_decoder_forward.1} parent=19 // pred_check
          %p584 = pneg %p128
        $region26: #{vit_decoder_forward.1} parent=19 // pred_check_branch
          %586 = sbr.rel (%p584) target = $region28
        $region27: #{vit_decoder_forward.1} parent=19 // pred_region
          %s587 = sand.u32 %s118, 1
          %s588 = scalar_lea.sflag [#allocation6], %s587
          %s589 = sand.u32 %s118, 1
          %s590 = scalar_lea.vmem [#allocation5], %s589
          %s592 = ssub.s32 16, 16
          %593 = vsyncadd %s588, %s592
          %s594 = smul.addr %s57, 16
          %s595 = scalar_lea.hbm %s3, %s594
          %s597 = sshll.u32 %s590, 4
          %s598 = int_to_ptr.vmem [resolvable:$true] %s597
          %600 = dma.hbm_to_vmem [thread:$0]  %s595, 16, %s598, %s588
        $region28: #{vit_decoder_forward.1} parent=19 // pred_fallthru
          _
        // Predicated region
        $region29: #{vit_decoder_forward.1} parent=19 // pred_check
          %p601 = pneg %p154
        $region30: #{vit_decoder_forward.1} parent=19 // pred_check_branch
          %603 = sbr.rel (%p601) target = $region32
        $region31: #{vit_decoder_forward.1} parent=19 // pred_region
          %s604 = sand.u32 %s49, 1
          %s605 = scalar_lea.sflag [#allocation8], %s604
          %s606 = sand.u32 %s144, 1
          %s607 = scalar_lea.vmem [#allocation7], %s606
          %s609 = ssub.s32 16, 16
          %610 = vsyncadd %s605, %s609
          %s611 = smul.addr %s57, 16
          %s612 = scalar_lea.hbm %s4, %s611
          %s614 = sshll.u32 %s607, 4
          %s615 = int_to_ptr.vmem [resolvable:$true] %s614
          %617 = dma.hbm_to_vmem [thread:$0]  %s612, 16, %s615, %s605
        $region32: #{vit_decoder_forward.1} parent=19 // pred_fallthru
          _
        // Predicated region
        $region33: #{vit_decoder_forward.1} parent=19 // pred_check
          %p618 = pneg %p180
        $region34: #{vit_decoder_forward.1} parent=19 // pred_check_branch
          %620 = sbr.rel (%p618) target = $region36
        $region35: #{vit_decoder_forward.1} parent=19 // pred_region
          %p621 = scmp.lt.s32.totalorder %s57, 1
          %s622 = scalar_select %p621, %s57, 1
          %s623 = smul.addr %s622, 4
          %s624 = smul.addr %s623, 4
          %s625 = scalar_lea.vmem %s5, %s624
        $region36: #{vit_decoder_forward.1} parent=19 // pred_fallthru
          _
        // Predicated region
        $region37: #{vit_decoder_forward.1} parent=19 // pred_check
          %p626 = pneg %p206
        $region38: #{vit_decoder_forward.1} parent=19 // pred_check_branch
          %628 = sbr.rel (%p626) target = $region40
        $region39: #{vit_decoder_forward.1} parent=19 // pred_region
          %p629 = scmp.lt.s32.totalorder %s57, 1
          %s630 = scalar_select %p629, %s57, 1
          %s631 = smul.addr %s630, 4
          %s632 = smul.addr %s631, 4
          %s633 = scalar_lea.vmem %s6, %s632
        $region40: #{vit_decoder_forward.1} parent=19 // pred_fallthru
          _
        // Predicated region
        $region41: #{vit_decoder_forward.1} parent=19 // pred_check
          %p634 = pneg %p232
        $region42: #{vit_decoder_forward.1} parent=19 // pred_check_branch
          %636 = sbr.rel (%p634) target = $region44
        $region43: #{vit_decoder_forward.1} parent=19 // pred_region
          %p637 = scmp.lt.s32.totalorder %s57, 1
          %s638 = scalar_select %p637, %s57, 1
          %s639 = smul.addr %s638, 4
          %s640 = smul.addr %s639, 4
          %s641 = scalar_lea.vmem %s7, %s640
        $region44: #{vit_decoder_forward.1} parent=19 // pred_fallthru
          _
        // Predicated region
        $region45: #{vit_decoder_forward.1} parent=19 // pred_check
          %p642 = pneg %p258
        $region46: #{vit_decoder_forward.1} parent=19 // pred_check_branch
          %644 = sbr.rel (%p642) target = $region48
        $region47: #{vit_decoder_forward.1} parent=19 // pred_region
          %p645 = scmp.lt.s32.totalorder %s57, 1
          %s646 = scalar_select %p645, %s57, 1
          %s647 = smul.addr %s646, 4
          %s648 = scalar_lea.vmem %s8, %s647
        $region48: #{vit_decoder_forward.1} parent=19 // pred_fallthru
          _
        // Predicated region
        $region49: #{vit_decoder_forward.1} parent=19 // pred_check
          %p649 = pneg %p284
        $region50: #{vit_decoder_forward.1} parent=19 // pred_check_branch
          %651 = sbr.rel (%p649) target = $region52
        $region51: #{vit_decoder_forward.1} parent=19 // pred_region
          %s652 = sand.u32 %s49, 1
          %s653 = scalar_lea.sflag [#allocation8], %s652
          %s654 = sand.u32 %s274, 1
          %s655 = smul.addr %s654, 4
          %s656 = scalar_lea.vmem [#allocation9], %s655
          %s658 = ssub.s32 64, 64
          %659 = vsyncadd %s653, %s658
          %s660 = smul.addr %s57, 4
          %s661 = smul.addr %s660, 16
          %s662 = scalar_lea.hbm %s9, %s661
          %s663 = sshll.u32 %s656, 4
          %s664 = int_to_ptr.vmem [resolvable:$true] %s663
          %669 = dma.hbm_to_vmem [thread:$0]  %s662, 64, %s664, %s653, 16, 16, 1
        $region52: #{vit_decoder_forward.1} parent=19 // pred_fallthru
          _
        // Predicated region
        $region53: #{vit_decoder_forward.1} parent=19 // pred_check
          %p670 = pneg %p310
        $region54: #{vit_decoder_forward.1} parent=19 // pred_check_branch
          %672 = sbr.rel (%p670) target = $region56
        $region55: #{vit_decoder_forward.1} parent=19 // pred_region
          %s673 = sand.u32 %s49, 1
          %s674 = scalar_lea.sflag [#allocation11], %s673
          %s675 = sand.u32 %s300, 1
          %s676 = smul.addr %s675, 4
          %s677 = scalar_lea.vmem [#allocation10], %s676
          %s679 = ssub.s32 64, 64
          %680 = vsyncadd %s674, %s679
          %s681 = smul.addr %s57, 4
          %s682 = smul.addr %s681, 16
          %s683 = scalar_lea.hbm %s10, %s682
          %s684 = sshll.u32 %s677, 4
          %s685 = int_to_ptr.vmem [resolvable:$true] %s684
          %690 = dma.hbm_to_vmem [thread:$0]  %s683, 64, %s685, %s674, 16, 16, 1
        $region56: #{vit_decoder_forward.1} parent=19 // pred_fallthru
          _
        // Predicated region
        $region57: #{vit_decoder_forward.1} parent=19 // pred_check
          %p691 = pneg %p336
        $region58: #{vit_decoder_forward.1} parent=19 // pred_check_branch
          %693 = sbr.rel (%p691) target = $region60
        $region59: #{vit_decoder_forward.1} parent=19 // pred_region
          %p694 = scmp.lt.s32.totalorder %s57, 1
          %s695 = scalar_select %p694, %s57, 1
          %s696 = smul.addr %s695, 4
          %s697 = smul.addr %s696, 4
          %s698 = scalar_lea.vmem %s11, %s697
        $region60: #{vit_decoder_forward.1} parent=19 // pred_fallthru
          _
        // Predicated region
        $region61: #{vit_decoder_forward.1} parent=19 // pred_check
          %p699 = pneg %p362
        $region62: #{vit_decoder_forward.1} parent=19 // pred_check_branch
          %701 = sbr.rel (%p699) target = $region64
        $region63: #{vit_decoder_forward.1} parent=19 // pred_region
          %s702 = sand.u32 %s49, 1
          %s703 = scalar_lea.sflag [#allocation11], %s702
          %s704 = sand.u32 %s352, 1
          %s705 = scalar_lea.vmem [#allocation12], %s704
          %s707 = ssub.s32 16, 16
          %708 = vsyncadd %s703, %s707
          %s709 = smul.addr %s57, 16
          %s710 = scalar_lea.hbm %s12, %s709
          %s712 = sshll.u32 %s705, 4
          %s713 = int_to_ptr.vmem [resolvable:$true] %s712
          %715 = dma.hbm_to_vmem [thread:$0]  %s710, 16, %s713, %s703
        $region64: #{vit_decoder_forward.1} parent=19 // pred_fallthru
          _
        // Predicated region
        $region65: #{vit_decoder_forward.1} parent=19 // pred_check
          %p716 = pneg %p388
        $region66: #{vit_decoder_forward.1} parent=19 // pred_check_branch
          %718 = sbr.rel (%p716) target = $region68
        $region67: #{vit_decoder_forward.1} parent=19 // pred_region
          %s719 = sand.u32 %s49, 1
          %s720 = scalar_lea.sflag [#allocation14], %s719
          %s721 = sand.u32 %s378, 1
          %s722 = scalar_lea.vmem [#allocation13], %s721
          %s724 = ssub.s32 16, 16
          %725 = vsyncadd %s720, %s724
          %s726 = smul.addr %s57, 16
          %s727 = scalar_lea.hbm %s13, %s726
          %s729 = sshll.u32 %s722, 4
          %s730 = int_to_ptr.vmem [resolvable:$true] %s729
          %732 = dma.hbm_to_vmem [thread:$0]  %s727, 16, %s730, %s720
        $region68: #{vit_decoder_forward.1} parent=19 // pred_fallthru
          _
        // Predicated region
        $region69: #{vit_decoder_forward.1} parent=19 // pred_check
          %p733 = pneg %p414
        $region70: #{vit_decoder_forward.1} parent=19 // pred_check_branch
          %735 = sbr.rel (%p733) target = $region72
        $region71: #{vit_decoder_forward.1} parent=19 // pred_region
          %s736 = sand.u32 %s49, 1
          %s737 = scalar_lea.sflag [#allocation14], %s736
          %s738 = sand.u32 %s404, 1
          %s739 = scalar_lea.vmem [#allocation15], %s738
          %s741 = ssub.s32 16, 16
          %742 = vsyncadd %s737, %s741
          %s743 = smul.addr %s57, 16
          %s744 = scalar_lea.hbm %s14, %s743
          %s746 = sshll.u32 %s739, 4
          %s747 = int_to_ptr.vmem [resolvable:$true] %s746
          %749 = dma.hbm_to_vmem [thread:$0]  %s744, 16, %s747, %s737
        $region72: #{vit_decoder_forward.1} parent=19 // pred_fallthru
          _
        // Predicated region
        $region73: #{vit_decoder_forward.1} parent=19 // pred_check
          %p750 = pneg %p440
        $region74: #{vit_decoder_forward.1} parent=19 // pred_check_branch
          %752 = sbr.rel (%p750) target = $region76
        $region75: #{vit_decoder_forward.1} parent=19 // pred_region
          %s753 = sand.u32 %s49, 1
          %s754 = scalar_lea.sflag [#allocation17], %s753
          %s755 = sand.u32 %s430, 1
          %s756 = smul.addr %s755, 16
          %s757 = scalar_lea.vmem [#allocation16], %s756
          %s759 = ssub.s32 256, 256
          %760 = vsyncadd %s754, %s759
          %s761 = smul.addr %s57, 4
          %s762 = smul.addr %s761, 64
          %s763 = scalar_lea.hbm %s15, %s762
          %s764 = sshll.u32 %s757, 4
          %s765 = int_to_ptr.vmem [resolvable:$true] %s764
          %770 = dma.hbm_to_vmem [thread:$0]  %s763, 256, %s765, %s754, 64, 64, 4
        $region76: #{vit_decoder_forward.1} parent=19 // pred_fallthru
          _
        // Predicated region
        $region77: #{vit_decoder_forward.1} parent=19 // pred_check
          %p771 = pneg %p466
        $region78: #{vit_decoder_forward.1} parent=19 // pred_check_branch
          %773 = sbr.rel (%p771) target = $region80
        $region79: #{vit_decoder_forward.1} parent=19 // pred_region
          %s774 = sand.u32 %s49, 1
          %s775 = scalar_lea.sflag [#allocation17], %s774
          %s776 = sand.u32 %s456, 1
          %s777 = scalar_lea.vmem [#allocation18], %s776
          %s779 = ssub.s32 16, 16
          %780 = vsyncadd %s775, %s779
          %s781 = smul.addr %s57, 16
          %s782 = scalar_lea.hbm %s16, %s781
          %s784 = sshll.u32 %s777, 4
          %s785 = int_to_ptr.vmem [resolvable:$true] %s784
          %787 = dma.hbm_to_vmem [thread:$0]  %s782, 16, %s785, %s775
        $region80: #{vit_decoder_forward.1} parent=19 // pred_fallthru
          _
        // Predicated region
        $region81: #{vit_decoder_forward.1} parent=19 // pred_check
          %p788 = pneg %p492
        $region82: #{vit_decoder_forward.1} parent=19 // pred_check_branch
          %790 = sbr.rel (%p788) target = $region84
        $region83: #{vit_decoder_forward.1} parent=19 // pred_region
          %p791 = scmp.lt.s32.totalorder %s57, 1
          %s792 = scalar_select %p791, %s57, 1
          %s793 = smul.addr %s792, 16
          %s794 = smul.addr %s793, 4
          %s795 = scalar_lea.vmem %s17, %s794
        $region84: #{vit_decoder_forward.1} parent=19 // pred_fallthru
          _
        // Predicated region
        $region85: #{vit_decoder_forward.1} parent=19 // pred_check
          %p796 = pneg %p518
        $region86: #{vit_decoder_forward.1} parent=19 // pred_check_branch
          %798 = sbr.rel (%p796) target = $region88
        $region87: #{vit_decoder_forward.1} parent=19 // pred_region
          %s799 = sand.u32 %s508, 1
          %s800 = scalar_lea.sflag [#allocation20], %s799
          %s801 = sand.u32 %s508, 1
          %s802 = scalar_lea.vmem [#allocation19], %s801
          %s804 = ssub.s32 16, 16
          %805 = vsyncadd %s800, %s804
          %s806 = smul.addr %s57, 16
          %s807 = scalar_lea.hbm %s18, %s806
          %s809 = sshll.u32 %s802, 4
          %s810 = int_to_ptr.vmem [resolvable:$true] %s809
          %812 = dma.hbm_to_vmem [thread:$0]  %s807, 16, %s810, %s800
        $region88: #{vit_decoder_forward.1} parent=19 // pred_fallthru
          _
      $region20: #{vit_decoder_forward.1} parent=5 // pred_fallthru
        _
      %p813 = scmp.le.s32.totalorder 1, %s49
      %p814 = scmp.lt.s32.totalorder %s49, 5
      %p815 = pnand %p813, %p814
      %p816 = pneg %p815
      // Predicated region
      $region89: #{vit_decoder_forward.1} parent=5 // pred_check
        _
      $region90: #{vit_decoder_forward.1} parent=5 // pred_check_branch
        %818 = sbr.rel (%p815) target = $region92
      $region91: #{vit_decoder_forward.1} parent=5 // pred_region
        %s819 = ssub.s32 %s49, 1
        %s820 = sand.u32 %s121, 1
        %s821 = scalar_lea.sflag [#allocation6], %s820
        %s822 = sand.u32 %s121, 1
        %s823 = scalar_lea.vmem [#allocation5], %s822
        // Predicated region
        $region93: #{vit_decoder_forward.1} parent=91 // pred_check
          %p824 = pneg %p134
        $region94: #{vit_decoder_forward.1} parent=91 // pred_check_branch
          %826 = sbr.rel (%p824) target = $region96
        $region95: #{vit_decoder_forward.1} parent=91 // pred_region
          %827 = dma.done %s821, 16
        $region96: #{vit_decoder_forward.1} parent=91 // pred_fallthru
          _
        %s828 = sand.u32 %s54, 1
        %s829 = scalar_lea.sflag [#allocation8], %s828
        %s830 = sand.u32 %s147, 1
        %s831 = scalar_lea.vmem [#allocation7], %s830
        // Predicated region
        $region97: #{vit_decoder_forward.1} parent=91 // pred_check
          %p832 = pneg %p160
        $region98: #{vit_decoder_forward.1} parent=91 // pred_check_branch
          %834 = sbr.rel (%p832) target = $region100
        $region99: #{vit_decoder_forward.1} parent=91 // pred_region
          %835 = dma.done %s829, 16
        $region100: #{vit_decoder_forward.1} parent=91 // pred_fallthru
          _
        %s836 = sand.u32 %s54, 1
        %s837 = scalar_lea.sflag [#allocation8], %s836
        %s838 = sand.u32 %s277, 1
        %s839 = smul.addr %s838, 4
        %s840 = scalar_lea.vmem [#allocation9], %s839
        // Predicated region
        $region101: #{vit_decoder_forward.1} parent=91 // pred_check
          %p841 = pneg %p290
        $region102: #{vit_decoder_forward.1} parent=91 // pred_check_branch
          %843 = sbr.rel (%p841) target = $region104
        $region103: #{vit_decoder_forward.1} parent=91 // pred_region
          %844 = dma.done %s837, 64
        $region104: #{vit_decoder_forward.1} parent=91 // pred_fallthru
          _
        %s845 = sand.u32 %s54, 1
        %s846 = scalar_lea.sflag [#allocation11], %s845
        %s847 = sand.u32 %s303, 1
        %s848 = smul.addr %s847, 4
        %s849 = scalar_lea.vmem [#allocation10], %s848
        // Predicated region
        $region105: #{vit_decoder_forward.1} parent=91 // pred_check
          %p850 = pneg %p316
        $region106: #{vit_decoder_forward.1} parent=91 // pred_check_branch
          %852 = sbr.rel (%p850) target = $region108
        $region107: #{vit_decoder_forward.1} parent=91 // pred_region
          %853 = dma.done %s846, 64
        $region108: #{vit_decoder_forward.1} parent=91 // pred_fallthru
          _
        %s854 = sand.u32 %s54, 1
        %s855 = scalar_lea.sflag [#allocation11], %s854
        %s856 = sand.u32 %s355, 1
        %s857 = scalar_lea.vmem [#allocation12], %s856
        // Predicated region
        $region109: #{vit_decoder_forward.1} parent=91 // pred_check
          %p858 = pneg %p368
        $region110: #{vit_decoder_forward.1} parent=91 // pred_check_branch
          %860 = sbr.rel (%p858) target = $region112
        $region111: #{vit_decoder_forward.1} parent=91 // pred_region
          %861 = dma.done %s855, 16
        $region112: #{vit_decoder_forward.1} parent=91 // pred_fallthru
          _
        %s862 = sand.u32 %s54, 1
        %s863 = scalar_lea.sflag [#allocation14], %s862
        %s864 = sand.u32 %s381, 1
        %s865 = scalar_lea.vmem [#allocation13], %s864
        // Predicated region
        $region113: #{vit_decoder_forward.1} parent=91 // pred_check
          %p866 = pneg %p394
        $region114: #{vit_decoder_forward.1} parent=91 // pred_check_branch
          %868 = sbr.rel (%p866) target = $region116
        $region115: #{vit_decoder_forward.1} parent=91 // pred_region
          %869 = dma.done %s863, 16
        $region116: #{vit_decoder_forward.1} parent=91 // pred_fallthru
          _
        %s870 = sand.u32 %s54, 1
        %s871 = scalar_lea.sflag [#allocation14], %s870
        %s872 = sand.u32 %s407, 1
        %s873 = scalar_lea.vmem [#allocation15], %s872
        // Predicated region
        $region117: #{vit_decoder_forward.1} parent=91 // pred_check
          %p874 = pneg %p420
        $region118: #{vit_decoder_forward.1} parent=91 // pred_check_branch
          %876 = sbr.rel (%p874) target = $region120
        $region119: #{vit_decoder_forward.1} parent=91 // pred_region
          %877 = dma.done %s871, 16
        $region120: #{vit_decoder_forward.1} parent=91 // pred_fallthru
          _
        %s878 = sand.u32 %s54, 1
        %s879 = scalar_lea.sflag [#allocation17], %s878
        %s880 = sand.u32 %s433, 1
        %s881 = smul.addr %s880, 16
        %s882 = scalar_lea.vmem [#allocation16], %s881
        // Predicated region
        $region121: #{vit_decoder_forward.1} parent=91 // pred_check
          %p883 = pneg %p446
        $region122: #{vit_decoder_forward.1} parent=91 // pred_check_branch
          %885 = sbr.rel (%p883) target = $region124
        $region123: #{vit_decoder_forward.1} parent=91 // pred_region
          %886 = dma.done %s879, 256
        $region124: #{vit_decoder_forward.1} parent=91 // pred_fallthru
          _
        %s887 = sand.u32 %s54, 1
        %s888 = scalar_lea.sflag [#allocation17], %s887
        %s889 = sand.u32 %s459, 1
        %s890 = scalar_lea.vmem [#allocation18], %s889
        // Predicated region
        $region125: #{vit_decoder_forward.1} parent=91 // pred_check
          %p891 = pneg %p472
        $region126: #{vit_decoder_forward.1} parent=91 // pred_check_branch
          %893 = sbr.rel (%p891) target = $region128
        $region127: #{vit_decoder_forward.1} parent=91 // pred_region
          %894 = dma.done %s888, 16
        $region128: #{vit_decoder_forward.1} parent=91 // pred_fallthru
          _
        %s895 = sand.u32 %s511, 1
        %s896 = scalar_lea.sflag [#allocation20], %s895
        %s897 = sand.u32 %s511, 1
        %s898 = scalar_lea.vmem [#allocation19], %s897
        // Predicated region
        $region129: #{vit_decoder_forward.1} parent=91 // pred_check
          %p899 = pneg %p524
        $region130: #{vit_decoder_forward.1} parent=91 // pred_check_branch
          %901 = sbr.rel (%p899) target = $region132
        $region131: #{vit_decoder_forward.1} parent=91 // pred_region
          %902 = dma.done %s896, 16
        $region132: #{vit_decoder_forward.1} parent=91 // pred_fallthru
          _
        %p903 = scmp.lt.s32.totalorder %s58, 1
        %s904 = scalar_select %p903, %s58, 1
        %s905 = smul.addr %s904, 2
        %s906 = smul.addr %s905, 8
        %s907 = scalar_lea.vmem %s1, %s906
        %p908 = pneg %p87
        %p909 = pneg %p84
        %p910 = pneg %p108
        %p911 = pneg %p105
        %s912 = sand.u32 %s121, 1
        %s913 = scalar_lea.sflag [#allocation6], %s912
        %s914 = sand.u32 %s121, 1
        %s915 = scalar_lea.vmem [#allocation5], %s914
        %p916 = pneg %p134
        %p917 = pneg %p131
        %s918 = sand.u32 %s54, 1
        %s919 = scalar_lea.sflag [#allocation8], %s918
        %s920 = sand.u32 %s147, 1
        %s921 = scalar_lea.vmem [#allocation7], %s920
        %p922 = pneg %p160
        %p923 = pneg %p157
        %p924 = scmp.lt.s32.totalorder %s59, 1
        %s925 = scalar_select %p924, %s59, 1
        %s926 = smul.addr %s925, 4
        %s927 = smul.addr %s926, 4
        %s928 = scalar_lea.vmem %s5, %s927
        %p929 = pneg %p186
        %p930 = pneg %p183
        %p931 = scmp.lt.s32.totalorder %s59, 1
        %s932 = scalar_select %p931, %s59, 1
        %s933 = smul.addr %s932, 4
        %s934 = smul.addr %s933, 4
        %s935 = scalar_lea.vmem %s6, %s934
        %p936 = pneg %p212
        %p937 = pneg %p209
        %p938 = scmp.lt.s32.totalorder %s59, 1
        %s939 = scalar_select %p938, %s59, 1
        %s940 = smul.addr %s939, 4
        %s941 = smul.addr %s940, 4
        %s942 = scalar_lea.vmem %s7, %s941
        %p943 = pneg %p238
        %p944 = pneg %p235
        %p945 = scmp.lt.s32.totalorder %s59, 1
        %s946 = scalar_select %p945, %s59, 1
        %s947 = smul.addr %s946, 4
        %s948 = scalar_lea.vmem %s8, %s947
        %p949 = pneg %p264
        %p950 = pneg %p261
        %s951 = sand.u32 %s54, 1
        %s952 = scalar_lea.sflag [#allocation8], %s951
        %s953 = sand.u32 %s277, 1
        %s954 = smul.addr %s953, 4
        %s955 = scalar_lea.vmem [#allocation9], %s954
        %p956 = pneg %p290
        %p957 = pneg %p287
        %s958 = sand.u32 %s54, 1
        %s959 = scalar_lea.sflag [#allocation11], %s958
        %s960 = sand.u32 %s303, 1
        %s961 = smul.addr %s960, 4
        %s962 = scalar_lea.vmem [#allocation10], %s961
        %p963 = pneg %p316
        %p964 = pneg %p313
        %p965 = scmp.lt.s32.totalorder %s59, 1
        %s966 = scalar_select %p965, %s59, 1
        %s967 = smul.addr %s966, 4
        %s968 = smul.addr %s967, 4
        %s969 = scalar_lea.vmem %s11, %s968
        %p970 = pneg %p342
        %p971 = pneg %p339
        %s972 = sand.u32 %s54, 1
        %s973 = scalar_lea.sflag [#allocation11], %s972
        %s974 = sand.u32 %s355, 1
        %s975 = scalar_lea.vmem [#allocation12], %s974
        %p976 = pneg %p368
        %p977 = pneg %p365
        %s978 = sand.u32 %s54, 1
        %s979 = scalar_lea.sflag [#allocation14], %s978
        %s980 = sand.u32 %s381, 1
        %s981 = scalar_lea.vmem [#allocation13], %s980
        %p982 = pneg %p394
        %p983 = pneg %p391
        %s984 = sand.u32 %s54, 1
        %s985 = scalar_lea.sflag [#allocation14], %s984
        %s986 = sand.u32 %s407, 1
        %s987 = scalar_lea.vmem [#allocation15], %s986
        %p988 = pneg %p420
        %p989 = pneg %p417
        %s990 = sand.u32 %s54, 1
        %s991 = scalar_lea.sflag [#allocation17], %s990
        %s992 = sand.u32 %s433, 1
        %s993 = smul.addr %s992, 16
        %s994 = scalar_lea.vmem [#allocation16], %s993
        %p995 = pneg %p446
        %p996 = pneg %p443
        %s997 = sand.u32 %s54, 1
        %s998 = scalar_lea.sflag [#allocation17], %s997
        %s999 = sand.u32 %s459, 1
        %s1000 = scalar_lea.vmem [#allocation18], %s999
        %p1001 = pneg %p472
        %p1002 = pneg %p469
        %p1003 = scmp.lt.s32.totalorder %s59, 1
        %s1004 = scalar_select %p1003, %s59, 1
        %s1005 = smul.addr %s1004, 16
        %s1006 = smul.addr %s1005, 4
        %s1007 = scalar_lea.vmem %s17, %s1006
        %p1008 = pneg %p498
        %p1009 = pneg %p495
        %s1010 = sand.u32 %s511, 1
        %s1011 = scalar_lea.sflag [#allocation20], %s1010
        %s1012 = sand.u32 %s511, 1
        %s1013 = scalar_lea.vmem [#allocation19], %s1012
        %p1014 = pneg %p524
        %p1015 = pneg %p521
        %p1016 = pneg %p554
        %p1017 = pneg %p551
        %s1018 = sld [smem:[#allocation4 + %s59]]
        %p1019 = scmp.lt.s32.totalorder %s1018, 2
        %s1020 = scalar_select %p1019, %s1018, 2
        %p1021 = scmp.lt.s32.totalorder %s58, 1
        %s1022 = scalar_select %p1021, %s58, 1
        %s1023 = smul.addr %s1022, 2
        %s1024 = smul.addr %s1020, 4
        %s1025 = sadd.s32 %s1023, %s1024
        %s1026 = smul.addr %s1025, 8
        %s1027 = scalar_lea.vmem %s19, %s1026
        %p1028 = scmp.lt.s32.totalorder %s58, 1
        %s1029 = scalar_select %p1028, %s58, 1
        %s1030 = smul.addr %s1029, 2
        %s1031 = smul.addr %s1030, 8
        %s1032 = scalar_lea.vmem %s1, %s1031
        %p1033 = scmp.lt.s32.totalorder %s59, 1
        %s1034 = scalar_select %p1033, %s59, 1
        %s1035 = smul.addr %s1034, 4
        %s1036 = smul.addr %s1035, 4
        %s1037 = scalar_lea.vmem %s5, %s1036
        %p1038 = scmp.lt.s32.totalorder %s59, 1
        %s1039 = scalar_select %p1038, %s59, 1
        %s1040 = smul.addr %s1039, 4
        %s1041 = smul.addr %s1040, 4
        %s1042 = scalar_lea.vmem %s6, %s1041
        %p1043 = scmp.lt.s32.totalorder %s59, 1
        %s1044 = scalar_select %p1043, %s59, 1
        %s1045 = smul.addr %s1044, 4
        %s1046 = smul.addr %s1045, 4
        %s1047 = scalar_lea.vmem %s7, %s1046
        %p1048 = scmp.lt.s32.totalorder %s59, 1
        %s1049 = scalar_select %p1048, %s59, 1
        %s1050 = smul.addr %s1049, 4
        %s1051 = scalar_lea.vmem %s8, %s1050
        %p1052 = scmp.lt.s32.totalorder %s59, 1
        %s1053 = scalar_select %p1052, %s59, 1
        %s1054 = smul.addr %s1053, 4
        %s1055 = smul.addr %s1054, 4
        %s1056 = scalar_lea.vmem %s11, %s1055
        %p1057 = scmp.lt.s32.totalorder %s59, 1
        %s1058 = scalar_select %p1057, %s59, 1
        %s1059 = smul.addr %s1058, 16
        %s1060 = smul.addr %s1059, 4
        %s1061 = scalar_lea.vmem %s17, %s1060
        %s1062 = sld [smem:[#allocation4 + %s59]]
        %p1063 = scmp.lt.s32.totalorder %s1062, 2
        %s1064 = scalar_select %p1063, %s1062, 2
        %p1065 = scmp.lt.s32.totalorder %s58, 1
        %s1066 = scalar_select %p1065, %s58, 1
        %s1067 = smul.addr %s1066, 2
        %s1068 = smul.addr %s1064, 4
        %s1069 = sadd.s32 %s1067, %s1068
        %s1070 = smul.addr %s1069, 8
        %s1071 = scalar_lea.vmem %s19, %s1070
        %s1072 = sld [smem:[#allocation4 + %s59]]
        %p1074 = scmp.eq.s32.totalorder %s59, 0
        // Predicated region
        $region133: #{vit_decoder_forward.1} parent=91 // pred_check
          %p1075 = pneg %p1074
        $region134: #{vit_decoder_forward.1} parent=91 // pred_check_branch
          %1077 = sbr.rel (%p1075) target = $region136
        $region135: #{vit_decoder_forward.1} parent=91 // pred_region
          %v1078 = vld [vmem:[%s1032] sm:$0xff]
          %v1079 = vld [vmem:[%s1032 + $0x8] sm:$0xff]
          %v1080 = vld [vmem:[%s2] sm:$0xff]
          %v1081 = vld [vmem:[%s2 + $0x8] sm:$0xff]
          %v1082 = vadd.f32 %v1078, %v1080
          %v1083 = vadd.f32 %v1079, %v1081
          %vm1084 = vcmask 261120
          %1085 = vst.msk [vmem:[#allocation2] sm:$0xff] %vm1084, %v1082
          %1086 = vst.msk [vmem:[#allocation2 + $0x8] sm:$0xff] %vm1084, %v1083
        $region136: #{vit_decoder_forward.1} parent=91 // pred_fallthru
          _
        %v1087 = vld [vmem:[#allocation2] sm:$0xff]
        %v1088 = vld [vmem:[#allocation2 + $0x8] sm:$0xff]
        %v1089 = vld [vmem:[%s823] sm:$0x1]
        %v1090 = vld [vmem:[%s831] sm:$0x1]
        %vm1091 = vcmask 261120
        %v1092 = vsel %vm1091, %v1087, 0.0
        %1093 = vadd.xlane.f32.xlu0 %v1092
        %v1094 = vpop.xlane.xlu0 %1093
        %v1095 = vsel %vm1091, %v1088, 0.0
        %1096 = vadd.xlane.f32.xlu0 %v1095
        %v1097 = vpop.xlane.xlu0 %1096
        %v1098 = vrcp.pop 32.0
        %v1099 = vmul.f32 %v1094, %v1098
        %v1100 = vmul.f32 %v1097, %v1098
        %v1101 = vsub.f32 %v1087, %v1099
        %v1102 = vsub.f32 %v1088, %v1100
        %v1103 = vmul.f32 %v1101, %v1101
        %v1104 = vmul.f32 %v1102, %v1102
        %v1105 = vsel %vm1091, %v1103, 0.0
        %1106 = vadd.xlane.f32.xlu0 %v1105
        %v1107 = vpop.xlane.xlu0 %1106
        %v1108 = vsel %vm1091, %v1104, 0.0
        %1109 = vadd.xlane.f32.xlu0 %v1108
        %v1110 = vpop.xlane.xlu0 %1109
        %v1111 = vmul.f32 %v1107, %v1098
        %v1112 = vmul.f32 %v1110, %v1098
        %v1113 = vadd.f32 %v1111, 1e-06
        %v1114 = vadd.f32 %v1112, 1e-06
        %v1115 = vrsqrt.pop %v1113
        %v1116 = vrsqrt.pop %v1114
        %v1117 = vmul.f32 %v1101, %v1115
        %v1118 = vmul.f32 %v1102, %v1116
        %v1120 = vlaneseq
        %v1121 = vshrl.u32 %v1120, 7
        %v1122 = vsub.s32 0, %v1121
        %v1123 = vrot.slane %v1089, %v1122
        %v1125 = vmul.f32 %v1117, %v1123
        %v1126 = vmul.f32 %v1118, %v1123
        %v1128 = vlaneseq
        %v1129 = vshrl.u32 %v1128, 7
        %v1130 = vsub.s32 0, %v1129
        %v1131 = vrot.slane %v1090, %v1130
        %v1133 = vadd.f32 %v1125, %v1131
        %v1134 = vadd.f32 %v1126, %v1131
        %v1135 = vpack.c.bf16 %v1134, %v1133
        %v1136 = vld [vmem:[%s1037] sm:$0xf]
        %v1137 = vld [vmem:[%s1051] sm:$0x1]
        %v1139 = vlaneseq
        %v1140 = vshrl.u32 %v1139, 7
        %v1141 = vsub.s32 0, %v1140
        %v1142 = vrot.slane %v1137, %v1141
        %v1145 = vsel %vm1091, %v1135, 0
        %v1148 = vsel %vm1091, %v1136, 0
        %1150 = vmatprep.subr.bf16.mxu0 0
        %1151 = vmatpush1.bf16.xpose.msra.mxu0 0
        %1152 = vmatprep.subr.bf16.mxu0 0
        %1153 = vmatpush1.bf16.xpose.msra.mxu0 0
        %1154 = vmatprep.subr.bf16.mxu0 0
        %1155 = vmatpush1.bf16.xpose.msra.mxu0 0
        %1156 = vmatprep.subr.bf16.mxu0 0
        %1157 = vmatpush1.bf16.xpose.msra.mxu0 0
        %1158 = vmatprep.subr.bf16.mxu0 0
        %1159 = vmatpush1.bf16.xpose.msra.mxu0 0
        %1160 = vmatprep.subr.bf16.mxu0 0
        %1161 = vmatpush1.bf16.xpose.msra.mxu0 0
        %1162 = vmatprep.subr.bf16.mxu0 0
        %1163 = vmatpush1.bf16.xpose.msra.mxu0 0
        %1164 = vmatprep.subr.bf16.mxu0 0
        %1165 = vmatpush1.bf16.xpose.msra.mxu0 %v1148
        %1166 = vmatprep.subr.bf16.mxu0 0
        %1167 = vmatpush2.bf16.xpose.msra.mxu0 0
        %1168 = vmatprep.subr.bf16.mxu0 0
        %1169 = vmatpush2.bf16.xpose.msra.mxu0 0
        %1170 = vmatprep.subr.bf16.mxu0 0
        %1171 = vmatpush2.bf16.xpose.msra.mxu0 0
        %1172 = vmatprep.subr.bf16.mxu0 0
        %1173 = vmatpush2.bf16.xpose.msra.mxu0 0
        %1174 = vmatprep.subr.bf16.mxu0 0
        %1175 = vmatpush2.bf16.xpose.msra.mxu0 0
        %1176 = vmatprep.subr.bf16.mxu0 0
        %1177 = vmatpush2.bf16.xpose.msra.mxu0 0
        %1178 = vmatprep.subr.bf16.mxu0 0
        %1179 = vmatpush2.bf16.xpose.msra.mxu0 0
        %1180 = vmatprep.subr.bf16.mxu0 0
        %1181 = vmatpush2.bf16.xpose.msra.mxu0 0
        %1182 = vmatprep.mubr.bf16.mxu0 0
        %1183 = vmatmul.mubr.bf16.gmra.mxu0 %v1145
        %v1184 = vpop.f32.mrf.mxu0
        %v1185 = vadd.f32 %v1142, %v1184
        %v1186 = vpop.f32.mrf.mxu0
        %v1187 = vpop.f32.mrf.mxu0
        %v1188 = vadd.f32 %v1142, %v1187
        %v1189 = vpop.f32.mrf.mxu0
        %1190 = vdwg.mxu0
        %v1191 = vld [vmem:[%s1042] sm:$0xf]
        %v1192 = vld [vmem:[%s840] sm:$0x1]
        %v1194 = vlaneseq
        %v1195 = vshrl.u32 %v1194, 7
        %v1196 = vsub.s32 0, %v1195
        %v1197 = vrot.slane %v1192, %v1196
        %v1200 = vsel %vm1091, %v1191, 0
        %1202 = vmatprep.subr.bf16.mxu0 0
        %1203 = vmatpush1.bf16.xpose.msra.mxu0 0
        %1204 = vmatprep.subr.bf16.mxu0 0
        %1205 = vmatpush1.bf16.xpose.msra.mxu0 0
        %1206 = vmatprep.subr.bf16.mxu0 0
        %1207 = vmatpush1.bf16.xpose.msra.mxu0 0
        %1208 = vmatprep.subr.bf16.mxu0 0
        %1209 = vmatpush1.bf16.xpose.msra.mxu0 0
        %1210 = vmatprep.subr.bf16.mxu0 0
        %1211 = vmatpush1.bf16.xpose.msra.mxu0 0
        %1212 = vmatprep.subr.bf16.mxu0 0
        %1213 = vmatpush1.bf16.xpose.msra.mxu0 0
        %1214 = vmatprep.subr.bf16.mxu0 0
        %1215 = vmatpush1.bf16.xpose.msra.mxu0 0
        %1216 = vmatprep.subr.bf16.mxu0 0
        %1217 = vmatpush1.bf16.xpose.msra.mxu0 %v1200
        %1218 = vmatprep.subr.bf16.mxu0 0
        %1219 = vmatpush2.bf16.xpose.msra.mxu0 0
        %1220 = vmatprep.subr.bf16.mxu0 0
        %1221 = vmatpush2.bf16.xpose.msra.mxu0 0
        %1222 = vmatprep.subr.bf16.mxu0 0
        %1223 = vmatpush2.bf16.xpose.msra.mxu0 0
        %1224 = vmatprep.subr.bf16.mxu0 0
        %1225 = vmatpush2.bf16.xpose.msra.mxu0 0
        %1226 = vmatprep.subr.bf16.mxu0 0
        %1227 = vmatpush2.bf16.xpose.msra.mxu0 0
        %1228 = vmatprep.subr.bf16.mxu0 0
        %1229 = vmatpush2.bf16.xpose.msra.mxu0 0
        %1230 = vmatprep.subr.bf16.mxu0 0
        %1231 = vmatpush2.bf16.xpose.msra.mxu0 0
        %1232 = vmatprep.subr.bf16.mxu0 0
        %1233 = vmatpush2.bf16.xpose.msra.mxu0 0
        %1234 = vmatprep.mubr.bf16.mxu0 0
        %1235 = vmatmul.mubr.bf16.gmra.mxu0 %v1145
        %v1236 = vpop.f32.mrf.mxu0
        %v1237 = vadd.f32 %v1197, %v1236
        %v1238 = vpop.f32.mrf.mxu0
        %v1239 = vpop.f32.mrf.mxu0
        %v1240 = vadd.f32 %v1197, %v1239
        %v1241 = vpop.f32.mrf.mxu0
        %1242 = vdwg.mxu0
        %v1243 = vld [vmem:[%s1047] sm:$0xf]
        %v1244 = vld [vmem:[%s849] sm:$0x1]
        %v1246 = vlaneseq
        %v1247 = vshrl.u32 %v1246, 7
        %v1248 = vsub.s32 0, %v1247
        %v1249 = vrot.slane %v1244, %v1248
        %v1252 = vsel %vm1091, %v1243, 0
        %1254 = vmatprep.subr.bf16.mxu0 0
        %1255 = vmatpush1.bf16.xpose.msra.mxu0 0
        %1256 = vmatprep.subr.bf16.mxu0 0
        %1257 = vmatpush1.bf16.xpose.msra.mxu0 0
        %1258 = vmatprep.subr.bf16.mxu0 0
        %1259 = vmatpush1.bf16.xpose.msra.mxu0 0
        %1260 = vmatprep.subr.bf16.mxu0 0
        %1261 = vmatpush1.bf16.xpose.msra.mxu0 0
        %1262 = vmatprep.subr.bf16.mxu0 0
        %1263 = vmatpush1.bf16.xpose.msra.mxu0 0
        %1264 = vmatprep.subr.bf16.mxu0 0
        %1265 = vmatpush1.bf16.xpose.msra.mxu0 0
        %1266 = vmatprep.subr.bf16.mxu0 0
        %1267 = vmatpush1.bf16.xpose.msra.mxu0 0
        %1268 = vmatprep.subr.bf16.mxu0 0
        %1269 = vmatpush1.bf16.xpose.msra.mxu0 %v1252
        %1270 = vmatprep.subr.bf16.mxu0 0
        %1271 = vmatpush2.bf16.xpose.msra.mxu0 0
        %1272 = vmatprep.subr.bf16.mxu0 0
        %1273 = vmatpush2.bf16.xpose.msra.mxu0 0
        %1274 = vmatprep.subr.bf16.mxu0 0
        %1275 = vmatpush2.bf16.xpose.msra.mxu0 0
        %1276 = vmatprep.subr.bf16.mxu0 0
        %1277 = vmatpush2.bf16.xpose.msra.mxu0 0
        %1278 = vmatprep.subr.bf16.mxu0 0
        %1279 = vmatpush2.bf16.xpose.msra.mxu0 0
        %1280 = vmatprep.subr.bf16.mxu0 0
        %1281 = vmatpush2.bf16.xpose.msra.mxu0 0
        %1282 = vmatprep.subr.bf16.mxu0 0
        %1283 = vmatpush2.bf16.xpose.msra.mxu0 0
        %1284 = vmatprep.subr.bf16.mxu0 0
        %1285 = vmatpush2.bf16.xpose.msra.mxu0 0
        %1286 = vmatprep.mubr.bf16.mxu0 0
        %1287 = vmatmul.mubr.bf16.gmra.mxu0 %v1145
        %v1288 = vpop.f32.mrf.mxu0
        %v1289 = vadd.f32 %v1249, %v1288
        %v1290 = vpop.f32.mrf.mxu0
        %v1291 = vpop.f32.mrf.mxu0
        %v1292 = vadd.f32 %v1249, %v1291
        %v1293 = vpop.f32.mrf.mxu0
        %1294 = vdwg.mxu0
        %v1295 = vpack.c.bf16 %v1188, %v1185
        %v1296 = vpack.c.bf16 %v1240, %v1237
        %vm1297 = vcmask 64512
        %v1299 = vsel %vm1297, %v1295, 0
        %v1302 = vsel %vm1297, %v1296, 0
        %1304 = vmatprep.subr.bf16.mxu0 0
        %1305 = vmatpush1.bf16.xpose.msra.mxu0 0
        %1306 = vmatprep.subr.bf16.mxu0 0
        %1307 = vmatpush1.bf16.xpose.msra.mxu0 0
        %1308 = vmatprep.subr.bf16.mxu0 0
        %1309 = vmatpush1.bf16.xpose.msra.mxu0 0
        %1310 = vmatprep.subr.bf16.mxu0 0
        %1311 = vmatpush1.bf16.xpose.msra.mxu0 0
        %1312 = vmatprep.subr.bf16.mxu0 0
        %1313 = vmatpush1.bf16.xpose.msra.mxu0 0
        %1314 = vmatprep.subr.bf16.mxu0 0
        %1315 = vmatpush1.bf16.xpose.msra.mxu0 0
        %1316 = vmatprep.subr.bf16.mxu0 0
        %1317 = vmatpush1.bf16.xpose.msra.mxu0 0
        %1318 = vmatprep.subr.bf16.mxu0 0
        %1319 = vmatpush1.bf16.xpose.msra.mxu0 %v1302
        %1320 = vmatprep.subr.bf16.mxu0 0
        %1321 = vmatpush2.bf16.xpose.msra.mxu0 0
        %1322 = vmatprep.subr.bf16.mxu0 0
        %1323 = vmatpush2.bf16.xpose.msra.mxu0 0
        %1324 = vmatprep.subr.bf16.mxu0 0
        %1325 = vmatpush2.bf16.xpose.msra.mxu0 0
        %1326 = vmatprep.subr.bf16.mxu0 0
        %1327 = vmatpush2.bf16.xpose.msra.mxu0 0
        %1328 = vmatprep.subr.bf16.mxu0 0
        %1329 = vmatpush2.bf16.xpose.msra.mxu0 0
        %1330 = vmatprep.subr.bf16.mxu0 0
        %1331 = vmatpush2.bf16.xpose.msra.mxu0 0
        %1332 = vmatprep.subr.bf16.mxu0 0
        %1333 = vmatpush2.bf16.xpose.msra.mxu0 0
        %1334 = vmatprep.subr.bf16.mxu0 0
        %1335 = vmatpush2.bf16.xpose.msra.mxu0 0
        %1336 = vmatprep.mubr.bf16.mxu0 0
        %1337 = vmatmul.mubr.bf16.gmra.mxu0 %v1299
        %v1338 = vpop.f32.mrf.mxu0
        %v1339 = vadd.f32 0.0, %v1338
        %v1340 = vpop.f32.mrf.mxu0
        %v1341 = vpop.f32.mrf.mxu0
        %v1342 = vadd.f32 0.0, %v1341
        %v1343 = vpop.f32.mrf.mxu0
        %1344 = vdwg.mxu0
        %v1345 = vmul.f32 %v1339, 0.35355338
        %v1346 = vmul.f32 %v1342, 0.35355338
        %vm1347 = vcmask 130048
        %v1348 = vsel %vm1347, %v1345, -inf
        %1349 = vmax.xlane.f32.xlu0 %v1348
        %v1350 = vpop.xlane.xlu0 %1349
        %v1351 = vsel %vm1347, %v1346, -inf
        %1352 = vmax.xlane.f32.xlu0 %v1351
        %v1353 = vpop.xlane.xlu0 %1352
        %v1354 = vsub.f32 %v1345, %v1350
        %v1355 = vsub.f32 %v1346, %v1353
        %v1356 = vmul.f32 %v1354, 1.442695
        %v1357 = vpow.pop %v1356
        %v1358 = vmul.f32 %v1355, 1.442695
        %v1359 = vpow.pop %v1358
        %v1360 = vsel %vm1347, %v1357, 0.0
        %1361 = vadd.xlane.f32.xlu0 %v1360
        %v1362 = vpop.xlane.xlu0 %1361
        %v1363 = vsel %vm1347, %v1359, 0.0
        %1364 = vadd.xlane.f32.xlu0 %v1363
        %v1365 = vpop.xlane.xlu0 %1364
        %v1366 = vrcp.pop %v1362
        %v1367 = vrcp.pop %v1365
        %v1368 = vmul.f32 %v1357, %v1366
        %v1369 = vmul.f32 %v1359, %v1367
        %v1370 = vpack.c.bf16 %v1369, %v1368
        %v1371 = vpack.c.bf16 %v1292, %v1289
        %v1373 = vsel %vm1347, %v1370, 0
        %1375 = vmatprep.subr.bf16.mxu0 0
        %1376 = vmatpush1.bf16.msra.mxu0 0
        %1377 = vmatprep.subr.bf16.mxu0 0
        %1378 = vmatpush1.bf16.msra.mxu0 0
        %1379 = vmatprep.subr.bf16.mxu0 0
        %1380 = vmatpush1.bf16.msra.mxu0 0
        %1381 = vmatprep.subr.bf16.mxu0 0
        %1382 = vmatpush1.bf16.msra.mxu0 0
        %1383 = vmatprep.subr.bf16.mxu0 0
        %1384 = vmatpush1.bf16.msra.mxu0 0
        %1385 = vmatprep.subr.bf16.mxu0 0
        %1386 = vmatpush1.bf16.msra.mxu0 0
        %1387 = vmatprep.subr.bf16.mxu0 0
        %1388 = vmatpush1.bf16.msra.mxu0 0
        %1389 = vmatprep.subr.bf16.mxu0 0
        %1390 = vmatpush1.bf16.msra.mxu0 %v1371
        %1391 = vmatprep.subr.bf16.mxu0 0
        %1392 = vmatpush2.bf16.msra.mxu0 0
        %1393 = vmatprep.subr.bf16.mxu0 0
        %1394 = vmatpush2.bf16.msra.mxu0 0
        %1395 = vmatprep.subr.bf16.mxu0 0
        %1396 = vmatpush2.bf16.msra.mxu0 0
        %1397 = vmatprep.subr.bf16.mxu0 0
        %1398 = vmatpush2.bf16.msra.mxu0 0
        %1399 = vmatprep.subr.bf16.mxu0 0
        %1400 = vmatpush2.bf16.msra.mxu0 0
        %1401 = vmatprep.subr.bf16.mxu0 0
        %1402 = vmatpush2.bf16.msra.mxu0 0
        %1403 = vmatprep.subr.bf16.mxu0 0
        %1404 = vmatpush2.bf16.msra.mxu0 0
        %1405 = vmatprep.subr.bf16.mxu0 0
        %1406 = vmatpush2.bf16.msra.mxu0 0
        %1407 = vmatprep.mubr.bf16.mxu0 0
        %1408 = vmatmul.mubr.bf16.gmra.mxu0 %v1373
        %v1409 = vpop.f32.mrf.mxu0
        %v1410 = vadd.f32 0.0, %v1409
        %v1411 = vpop.f32.mrf.mxu0
        %v1412 = vpop.f32.mrf.mxu0
        %v1413 = vadd.f32 0.0, %v1412
        %v1414 = vpop.f32.mrf.mxu0
        %1415 = vdwg.mxu0
        %v1416 = vpack.c.bf16 %v1413, %v1410
        %v1417 = vld [vmem:[%s1056] sm:$0xf]
        %s1418 = scalar_lea.vmem %s1037, 4
        %v1419 = vld [vmem:[%s1418] sm:$0xf]
        %s1420 = scalar_lea.vmem %s1051, 1
        %v1421 = vld [vmem:[%s1420] sm:$0x1]
        %v1423 = vlaneseq
        %v1424 = vshrl.u32 %v1423, 7
        %v1425 = vsub.s32 0, %v1424
        %v1426 = vrot.slane %v1421, %v1425
        %v1429 = vsel %vm1091, %v1419, 0
        %1431 = vmatprep.subr.bf16.mxu0 0
        %1432 = vmatpush1.bf16.xpose.msra.mxu0 0
        %1433 = vmatprep.subr.bf16.mxu0 0
        %1434 = vmatpush1.bf16.xpose.msra.mxu0 0
        %1435 = vmatprep.subr.bf16.mxu0 0
        %1436 = vmatpush1.bf16.xpose.msra.mxu0 0
        %1437 = vmatprep.subr.bf16.mxu0 0
        %1438 = vmatpush1.bf16.xpose.msra.mxu0 0
        %1439 = vmatprep.subr.bf16.mxu0 0
        %1440 = vmatpush1.bf16.xpose.msra.mxu0 0
        %1441 = vmatprep.subr.bf16.mxu0 0
        %1442 = vmatpush1.bf16.xpose.msra.mxu0 0
        %1443 = vmatprep.subr.bf16.mxu0 0
        %1444 = vmatpush1.bf16.xpose.msra.mxu0 0
        %1445 = vmatprep.subr.bf16.mxu0 0
        %1446 = vmatpush1.bf16.xpose.msra.mxu0 %v1429
        %1447 = vmatprep.subr.bf16.mxu0 0
        %1448 = vmatpush2.bf16.xpose.msra.mxu0 0
        %1449 = vmatprep.subr.bf16.mxu0 0
        %1450 = vmatpush2.bf16.xpose.msra.mxu0 0
        %1451 = vmatprep.subr.bf16.mxu0 0
        %1452 = vmatpush2.bf16.xpose.msra.mxu0 0
        %1453 = vmatprep.subr.bf16.mxu0 0
        %1454 = vmatpush2.bf16.xpose.msra.mxu0 0
        %1455 = vmatprep.subr.bf16.mxu0 0
        %1456 = vmatpush2.bf16.xpose.msra.mxu0 0
        %1457 = vmatprep.subr.bf16.mxu0 0
        %1458 = vmatpush2.bf16.xpose.msra.mxu0 0
        %1459 = vmatprep.subr.bf16.mxu0 0
        %1460 = vmatpush2.bf16.xpose.msra.mxu0 0
        %1461 = vmatprep.subr.bf16.mxu0 0
        %1462 = vmatpush2.bf16.xpose.msra.mxu0 0
        %1463 = vmatprep.mubr.bf16.mxu0 0
        %1464 = vmatmul.mubr.bf16.gmra.mxu0 %v1145
        %v1465 = vpop.f32.mrf.mxu0
        %v1466 = vadd.f32 %v1426, %v1465
        %v1467 = vpop.f32.mrf.mxu0
        %v1468 = vpop.f32.mrf.mxu0
        %v1469 = vadd.f32 %v1426, %v1468
        %v1470 = vpop.f32.mrf.mxu0
        %1471 = vdwg.mxu0
        %s1472 = scalar_lea.vmem %s1042, 4
        %v1473 = vld [vmem:[%s1472] sm:$0xf]
        %s1474 = scalar_lea.vmem %s840, 1 [#allocation9]
        %v1475 = vld [vmem:[%s1474] sm:$0x1]
        %v1477 = vlaneseq
        %v1478 = vshrl.u32 %v1477, 7
        %v1479 = vsub.s32 0, %v1478
        %v1480 = vrot.slane %v1475, %v1479
        %v1483 = vsel %vm1091, %v1473, 0
        %1485 = vmatprep.subr.bf16.mxu0 0
        %1486 = vmatpush1.bf16.xpose.msra.mxu0 0
        %1487 = vmatprep.subr.bf16.mxu0 0
        %1488 = vmatpush1.bf16.xpose.msra.mxu0 0
        %1489 = vmatprep.subr.bf16.mxu0 0
        %1490 = vmatpush1.bf16.xpose.msra.mxu0 0
        %1491 = vmatprep.subr.bf16.mxu0 0
        %1492 = vmatpush1.bf16.xpose.msra.mxu0 0
        %1493 = vmatprep.subr.bf16.mxu0 0
        %1494 = vmatpush1.bf16.xpose.msra.mxu0 0
        %1495 = vmatprep.subr.bf16.mxu0 0
        %1496 = vmatpush1.bf16.xpose.msra.mxu0 0
        %1497 = vmatprep.subr.bf16.mxu0 0
        %1498 = vmatpush1.bf16.xpose.msra.mxu0 0
        %1499 = vmatprep.subr.bf16.mxu0 0
        %1500 = vmatpush1.bf16.xpose.msra.mxu0 %v1483
        %1501 = vmatprep.subr.bf16.mxu0 0
        %1502 = vmatpush2.bf16.xpose.msra.mxu0 0
        %1503 = vmatprep.subr.bf16.mxu0 0
        %1504 = vmatpush2.bf16.xpose.msra.mxu0 0
        %1505 = vmatprep.subr.bf16.mxu0 0
        %1506 = vmatpush2.bf16.xpose.msra.mxu0 0
        %1507 = vmatprep.subr.bf16.mxu0 0
        %1508 = vmatpush2.bf16.xpose.msra.mxu0 0
        %1509 = vmatprep.subr.bf16.mxu0 0
        %1510 = vmatpush2.bf16.xpose.msra.mxu0 0
        %1511 = vmatprep.subr.bf16.mxu0 0
        %1512 = vmatpush2.bf16.xpose.msra.mxu0 0
        %1513 = vmatprep.subr.bf16.mxu0 0
        %1514 = vmatpush2.bf16.xpose.msra.mxu0 0
        %1515 = vmatprep.subr.bf16.mxu0 0
        %1516 = vmatpush2.bf16.xpose.msra.mxu0 0
        %1517 = vmatprep.mubr.bf16.mxu0 0
        %1518 = vmatmul.mubr.bf16.gmra.mxu0 %v1145
        %v1519 = vpop.f32.mrf.mxu0
        %v1520 = vadd.f32 %v1480, %v1519
        %v1521 = vpop.f32.mrf.mxu0
        %v1522 = vpop.f32.mrf.mxu0
        %v1523 = vadd.f32 %v1480, %v1522
        %v1524 = vpop.f32.mrf.mxu0
        %1525 = vdwg.mxu0
        %s1526 = scalar_lea.vmem %s1047, 4
        %v1527 = vld [vmem:[%s1526] sm:$0xf]
        %s1528 = scalar_lea.vmem %s849, 1 [#allocation10]
        %v1529 = vld [vmem:[%s1528] sm:$0x1]
        %v1531 = vlaneseq
        %v1532 = vshrl.u32 %v1531, 7
        %v1533 = vsub.s32 0, %v1532
        %v1534 = vrot.slane %v1529, %v1533
        %v1537 = vsel %vm1091, %v1527, 0
        %1539 = vmatprep.subr.bf16.mxu0 0
        %1540 = vmatpush1.bf16.xpose.msra.mxu0 0
        %1541 = vmatprep.subr.bf16.mxu0 0
        %1542 = vmatpush1.bf16.xpose.msra.mxu0 0
        %1543 = vmatprep.subr.bf16.mxu0 0
        %1544 = vmatpush1.bf16.xpose.msra.mxu0 0
        %1545 = vmatprep.subr.bf16.mxu0 0
        %1546 = vmatpush1.bf16.xpose.msra.mxu0 0
        %1547 = vmatprep.subr.bf16.mxu0 0
        %1548 = vmatpush1.bf16.xpose.msra.mxu0 0
        %1549 = vmatprep.subr.bf16.mxu0 0
        %1550 = vmatpush1.bf16.xpose.msra.mxu0 0
        %1551 = vmatprep.subr.bf16.mxu0 0
        %1552 = vmatpush1.bf16.xpose.msra.mxu0 0
        %1553 = vmatprep.subr.bf16.mxu0 0
        %1554 = vmatpush1.bf16.xpose.msra.mxu0 %v1537
        %1555 = vmatprep.subr.bf16.mxu0 0
        %1556 = vmatpush2.bf16.xpose.msra.mxu0 0
        %1557 = vmatprep.subr.bf16.mxu0 0
        %1558 = vmatpush2.bf16.xpose.msra.mxu0 0
        %1559 = vmatprep.subr.bf16.mxu0 0
        %1560 = vmatpush2.bf16.xpose.msra.mxu0 0
        %1561 = vmatprep.subr.bf16.mxu0 0
        %1562 = vmatpush2.bf16.xpose.msra.mxu0 0
        %1563 = vmatprep.subr.bf16.mxu0 0
        %1564 = vmatpush2.bf16.xpose.msra.mxu0 0
        %1565 = vmatprep.subr.bf16.mxu0 0
        %1566 = vmatpush2.bf16.xpose.msra.mxu0 0
        %1567 = vmatprep.subr.bf16.mxu0 0
        %1568 = vmatpush2.bf16.xpose.msra.mxu0 0
        %1569 = vmatprep.subr.bf16.mxu0 0
        %1570 = vmatpush2.bf16.xpose.msra.mxu0 0
        %1571 = vmatprep.mubr.bf16.mxu0 0
        %1572 = vmatmul.mubr.bf16.gmra.mxu0 %v1145
        %v1573 = vpop.f32.mrf.mxu0
        %v1574 = vadd.f32 %v1534, %v1573
        %v1575 = vpop.f32.mrf.mxu0
        %v1576 = vpop.f32.mrf.mxu0
        %v1577 = vadd.f32 %v1534, %v1576
        %v1578 = vpop.f32.mrf.mxu0
        %1579 = vdwg.mxu0
        %v1580 = vpack.c.bf16 %v1469, %v1466
        %v1581 = vpack.c.bf16 %v1523, %v1520
        %v1583 = vsel %vm1297, %v1580, 0
        %v1586 = vsel %vm1297, %v1581, 0
        %1588 = vmatprep.subr.bf16.mxu0 0
        %1589 = vmatpush1.bf16.xpose.msra.mxu0 0
        %1590 = vmatprep.subr.bf16.mxu0 0
        %1591 = vmatpush1.bf16.xpose.msra.mxu0 0
        %1592 = vmatprep.subr.bf16.mxu0 0
        %1593 = vmatpush1.bf16.xpose.msra.mxu0 0
        %1594 = vmatprep.subr.bf16.mxu0 0
        %1595 = vmatpush1.bf16.xpose.msra.mxu0 0
        %1596 = vmatprep.subr.bf16.mxu0 0
        %1597 = vmatpush1.bf16.xpose.msra.mxu0 0
        %1598 = vmatprep.subr.bf16.mxu0 0
        %1599 = vmatpush1.bf16.xpose.msra.mxu0 0
        %1600 = vmatprep.subr.bf16.mxu0 0
        %1601 = vmatpush1.bf16.xpose.msra.mxu0 0
        %1602 = vmatprep.subr.bf16.mxu0 0
        %1603 = vmatpush1.bf16.xpose.msra.mxu0 %v1586
        %1604 = vmatprep.subr.bf16.mxu0 0
        %1605 = vmatpush2.bf16.xpose.msra.mxu0 0
        %1606 = vmatprep.subr.bf16.mxu0 0
        %1607 = vmatpush2.bf16.xpose.msra.mxu0 0
        %1608 = vmatprep.subr.bf16.mxu0 0
        %1609 = vmatpush2.bf16.xpose.msra.mxu0 0
        %1610 = vmatprep.subr.bf16.mxu0 0
        %1611 = vmatpush2.bf16.xpose.msra.mxu0 0
        %1612 = vmatprep.subr.bf16.mxu0 0
        %1613 = vmatpush2.bf16.xpose.msra.mxu0 0
        %1614 = vmatprep.subr.bf16.mxu0 0
        %1615 = vmatpush2.bf16.xpose.msra.mxu0 0
        %1616 = vmatprep.subr.bf16.mxu0 0
        %1617 = vmatpush2.bf16.xpose.msra.mxu0 0
        %1618 = vmatprep.subr.bf16.mxu0 0
        %1619 = vmatpush2.bf16.xpose.msra.mxu0 0
        %1620 = vmatprep.mubr.bf16.mxu0 0
        %1621 = vmatmul.mubr.bf16.gmra.mxu0 %v1583
        %v1622 = vpop.f32.mrf.mxu0
        %v1623 = vadd.f32 0.0, %v1622
        %v1624 = vpop.f32.mrf.mxu0
        %v1625 = vpop.f32.mrf.mxu0
        %v1626 = vadd.f32 0.0, %v1625
        %v1627 = vpop.f32.mrf.mxu0
        %1628 = vdwg.mxu0
        %v1629 = vmul.f32 %v1623, 0.35355338
        %v1630 = vmul.f32 %v1626, 0.35355338
        %v1631 = vsel %vm1347, %v1629, -inf
        %1632 = vmax.xlane.f32.xlu0 %v1631
        %v1633 = vpop.xlane.xlu0 %1632
        %v1634 = vsel %vm1347, %v1630, -inf
        %1635 = vmax.xlane.f32.xlu0 %v1634
        %v1636 = vpop.xlane.xlu0 %1635
        %v1637 = vsub.f32 %v1629, %v1633
        %v1638 = vsub.f32 %v1630, %v1636
        %v1639 = vmul.f32 %v1637, 1.442695
        %v1640 = vpow.pop %v1639
        %v1641 = vmul.f32 %v1638, 1.442695
        %v1642 = vpow.pop %v1641
        %v1643 = vsel %vm1347, %v1640, 0.0
        %1644 = vadd.xlane.f32.xlu0 %v1643
        %v1645 = vpop.xlane.xlu0 %1644
        %v1646 = vsel %vm1347, %v1642, 0.0
        %1647 = vadd.xlane.f32.xlu0 %v1646
        %v1648 = vpop.xlane.xlu0 %1647
        %v1649 = vrcp.pop %v1645
        %v1650 = vrcp.pop %v1648
        %v1651 = vmul.f32 %v1640, %v1649
        %v1652 = vmul.f32 %v1642, %v1650
        %v1653 = vpack.c.bf16 %v1652, %v1651
        %v1654 = vpack.c.bf16 %v1577, %v1574
        %v1656 = vsel %vm1347, %v1653, 0
        %1658 = vmatprep.subr.bf16.mxu0 0
        %1659 = vmatpush1.bf16.msra.mxu0 0
        %1660 = vmatprep.subr.bf16.mxu0 0
        %1661 = vmatpush1.bf16.msra.mxu0 0
        %1662 = vmatprep.subr.bf16.mxu0 0
        %1663 = vmatpush1.bf16.msra.mxu0 0
        %1664 = vmatprep.subr.bf16.mxu0 0
        %1665 = vmatpush1.bf16.msra.mxu0 0
        %1666 = vmatprep.subr.bf16.mxu0 0
        %1667 = vmatpush1.bf16.msra.mxu0 0
        %1668 = vmatprep.subr.bf16.mxu0 0
        %1669 = vmatpush1.bf16.msra.mxu0 0
        %1670 = vmatprep.subr.bf16.mxu0 0
        %1671 = vmatpush1.bf16.msra.mxu0 0
        %1672 = vmatprep.subr.bf16.mxu0 0
        %1673 = vmatpush1.bf16.msra.mxu0 %v1654
        %1674 = vmatprep.subr.bf16.mxu0 0
        %1675 = vmatpush2.bf16.msra.mxu0 0
        %1676 = vmatprep.subr.bf16.mxu0 0
        %1677 = vmatpush2.bf16.msra.mxu0 0
        %1678 = vmatprep.subr.bf16.mxu0 0
        %1679 = vmatpush2.bf16.msra.mxu0 0
        %1680 = vmatprep.subr.bf16.mxu0 0
        %1681 = vmatpush2.bf16.msra.mxu0 0
        %1682 = vmatprep.subr.bf16.mxu0 0
        %1683 = vmatpush2.bf16.msra.mxu0 0
        %1684 = vmatprep.subr.bf16.mxu0 0
        %1685 = vmatpush2.bf16.msra.mxu0 0
        %1686 = vmatprep.subr.bf16.mxu0 0
        %1687 = vmatpush2.bf16.msra.mxu0 0
        %1688 = vmatprep.subr.bf16.mxu0 0
        %1689 = vmatpush2.bf16.msra.mxu0 0
        %1690 = vmatprep.mubr.bf16.mxu0 0
        %1691 = vmatmul.mubr.bf16.gmra.mxu0 %v1656
        %v1692 = vpop.f32.mrf.mxu0
        %v1693 = vadd.f32 0.0, %v1692
        %v1694 = vpop.f32.mrf.mxu0
        %v1695 = vpop.f32.mrf.mxu0
        %v1696 = vadd.f32 0.0, %v1695
        %v1697 = vpop.f32.mrf.mxu0
        %1698 = vdwg.mxu0
        %v1699 = vpack.c.bf16 %v1696, %v1693
        %s1700 = scalar_lea.vmem %s1056, 4
        %v1701 = vld [vmem:[%s1700] sm:$0xf]
        %v1703 = vsel %vm1297, %v1699, 0
        %vm1705 = vcmask 1043456
        %v1707 = vsel %vm1705, %v1701, 0
        %1709 = vmatprep.subr.bf16.mxu0 0
        %1710 = vmatpush1.bf16.msra.mxu0 0
        %1711 = vmatprep.subr.bf16.mxu0 0
        %1712 = vmatpush1.bf16.msra.mxu0 0
        %1713 = vmatprep.subr.bf16.mxu0 0
        %1714 = vmatpush1.bf16.msra.mxu0 0
        %1715 = vmatprep.subr.bf16.mxu0 0
        %1716 = vmatpush1.bf16.msra.mxu0 0
        %1717 = vmatprep.subr.bf16.mxu0 0
        %1718 = vmatpush1.bf16.msra.mxu0 0
        %1719 = vmatprep.subr.bf16.mxu0 0
        %1720 = vmatpush1.bf16.msra.mxu0 0
        %1721 = vmatprep.subr.bf16.mxu0 0
        %1722 = vmatpush1.bf16.msra.mxu0 0
        %1723 = vmatprep.subr.bf16.mxu0 0
        %1724 = vmatpush1.bf16.msra.mxu0 %v1707
        %1725 = vmatprep.subr.bf16.mxu0 0
        %1726 = vmatpush2.bf16.msra.mxu0 0
        %1727 = vmatprep.subr.bf16.mxu0 0
        %1728 = vmatpush2.bf16.msra.mxu0 0
        %1729 = vmatprep.subr.bf16.mxu0 0
        %1730 = vmatpush2.bf16.msra.mxu0 0
        %1731 = vmatprep.subr.bf16.mxu0 0
        %1732 = vmatpush2.bf16.msra.mxu0 0
        %1733 = vmatprep.subr.bf16.mxu0 0
        %1734 = vmatpush2.bf16.msra.mxu0 0
        %1735 = vmatprep.subr.bf16.mxu0 0
        %1736 = vmatpush2.bf16.msra.mxu0 0
        %1737 = vmatprep.subr.bf16.mxu0 0
        %1738 = vmatpush2.bf16.msra.mxu0 0
        %1739 = vmatprep.subr.bf16.mxu0 0
        %1740 = vmatpush2.bf16.msra.mxu0 0
        %1741 = vmatprep.mubr.bf16.mxu0 0
        %1742 = vmatmul.mubr.bf16.gmra.mxu0 %v1703
        %v1743 = vpop.f32.mrf.mxu0
        %v1744 = vadd.f32 0.0, %v1743
        %v1745 = vpop.f32.mrf.mxu0
        %v1746 = vpop.f32.mrf.mxu0
        %v1747 = vadd.f32 0.0, %v1746
        %v1748 = vpop.f32.mrf.mxu0
        %1749 = vdwg.mxu0
        %v1751 = vsel %vm1297, %v1416, 0
        %v1754 = vsel %vm1705, %v1417, 0
        %1756 = vmatprep.subr.bf16.mxu0 0
        %1757 = vmatpush1.bf16.msra.mxu0 0
        %1758 = vmatprep.subr.bf16.mxu0 0
        %1759 = vmatpush1.bf16.msra.mxu0 0
        %1760 = vmatprep.subr.bf16.mxu0 0
        %1761 = vmatpush1.bf16.msra.mxu0 0
        %1762 = vmatprep.subr.bf16.mxu0 0
        %1763 = vmatpush1.bf16.msra.mxu0 0
        %1764 = vmatprep.subr.bf16.mxu0 0
        %1765 = vmatpush1.bf16.msra.mxu0 0
        %1766 = vmatprep.subr.bf16.mxu0 0
        %1767 = vmatpush1.bf16.msra.mxu0 0
        %1768 = vmatprep.subr.bf16.mxu0 0
        %1769 = vmatpush1.bf16.msra.mxu0 0
        %1770 = vmatprep.subr.bf16.mxu0 0
        %1771 = vmatpush1.bf16.msra.mxu0 %v1754
        %1772 = vmatprep.subr.bf16.mxu0 0
        %1773 = vmatpush2.bf16.msra.mxu0 0
        %1774 = vmatprep.subr.bf16.mxu0 0
        %1775 = vmatpush2.bf16.msra.mxu0 0
        %1776 = vmatprep.subr.bf16.mxu0 0
        %1777 = vmatpush2.bf16.msra.mxu0 0
        %1778 = vmatprep.subr.bf16.mxu0 0
        %1779 = vmatpush2.bf16.msra.mxu0 0
        %1780 = vmatprep.subr.bf16.mxu0 0
        %1781 = vmatpush2.bf16.msra.mxu0 0
        %1782 = vmatprep.subr.bf16.mxu0 0
        %1783 = vmatpush2.bf16.msra.mxu0 0
        %1784 = vmatprep.subr.bf16.mxu0 0
        %1785 = vmatpush2.bf16.msra.mxu0 0
        %1786 = vmatprep.subr.bf16.mxu0 0
        %1787 = vmatpush2.bf16.msra.mxu0 0
        %1788 = vmatprep.mubr.bf16.mxu0 0
        %1789 = vmatmul.mubr.bf16.gmra.mxu0 %v1751
        %v1790 = vpop.f32.mrf.mxu0
        %v1791 = vadd.f32 %v1744, %v1790
        %v1792 = vpop.f32.mrf.mxu0
        %v1793 = vpop.f32.mrf.mxu0
        %v1794 = vadd.f32 %v1747, %v1793
        %v1795 = vpop.f32.mrf.mxu0
        %1796 = vdwg.mxu0
        %s1797 = scalar_lea.vmem %s1037, 8
        %v1798 = vld [vmem:[%s1797] sm:$0xf]
        %s1799 = scalar_lea.vmem %s1051, 2
        %v1800 = vld [vmem:[%s1799] sm:$0x1]
        %v1802 = vlaneseq
        %v1803 = vshrl.u32 %v1802, 7
        %v1804 = vsub.s32 0, %v1803
        %v1805 = vrot.slane %v1800, %v1804
        %v1808 = vsel %vm1091, %v1798, 0
        %1810 = vmatprep.subr.bf16.mxu0 0
        %1811 = vmatpush1.bf16.xpose.msra.mxu0 0
        %1812 = vmatprep.subr.bf16.mxu0 0
        %1813 = vmatpush1.bf16.xpose.msra.mxu0 0
        %1814 = vmatprep.subr.bf16.mxu0 0
        %1815 = vmatpush1.bf16.xpose.msra.mxu0 0
        %1816 = vmatprep.subr.bf16.mxu0 0
        %1817 = vmatpush1.bf16.xpose.msra.mxu0 0
        %1818 = vmatprep.subr.bf16.mxu0 0
        %1819 = vmatpush1.bf16.xpose.msra.mxu0 0
        %1820 = vmatprep.subr.bf16.mxu0 0
        %1821 = vmatpush1.bf16.xpose.msra.mxu0 0
        %1822 = vmatprep.subr.bf16.mxu0 0
        %1823 = vmatpush1.bf16.xpose.msra.mxu0 0
        %1824 = vmatprep.subr.bf16.mxu0 0
        %1825 = vmatpush1.bf16.xpose.msra.mxu0 %v1808
        %1826 = vmatprep.subr.bf16.mxu0 0
        %1827 = vmatpush2.bf16.xpose.msra.mxu0 0
        %1828 = vmatprep.subr.bf16.mxu0 0
        %1829 = vmatpush2.bf16.xpose.msra.mxu0 0
        %1830 = vmatprep.subr.bf16.mxu0 0
        %1831 = vmatpush2.bf16.xpose.msra.mxu0 0
        %1832 = vmatprep.subr.bf16.mxu0 0
        %1833 = vmatpush2.bf16.xpose.msra.mxu0 0
        %1834 = vmatprep.subr.bf16.mxu0 0
        %1835 = vmatpush2.bf16.xpose.msra.mxu0 0
        %1836 = vmatprep.subr.bf16.mxu0 0
        %1837 = vmatpush2.bf16.xpose.msra.mxu0 0
        %1838 = vmatprep.subr.bf16.mxu0 0
        %1839 = vmatpush2.bf16.xpose.msra.mxu0 0
        %1840 = vmatprep.subr.bf16.mxu0 0
        %1841 = vmatpush2.bf16.xpose.msra.mxu0 0
        %1842 = vmatprep.mubr.bf16.mxu0 0
        %1843 = vmatmul.mubr.bf16.gmra.mxu0 %v1145
        %v1844 = vpop.f32.mrf.mxu0
        %v1845 = vadd.f32 %v1805, %v1844
        %v1846 = vpop.f32.mrf.mxu0
        %v1847 = vpop.f32.mrf.mxu0
        %v1848 = vadd.f32 %v1805, %v1847
        %v1849 = vpop.f32.mrf.mxu0
        %1850 = vdwg.mxu0
        %s1851 = scalar_lea.vmem %s1042, 8
        %v1852 = vld [vmem:[%s1851] sm:$0xf]
        %s1853 = scalar_lea.vmem %s840, 2 [#allocation9]
        %v1854 = vld [vmem:[%s1853] sm:$0x1]
        %v1856 = vlaneseq
        %v1857 = vshrl.u32 %v1856, 7
        %v1858 = vsub.s32 0, %v1857
        %v1859 = vrot.slane %v1854, %v1858
        %v1862 = vsel %vm1091, %v1852, 0
        %1864 = vmatprep.subr.bf16.mxu0 0
        %1865 = vmatpush1.bf16.xpose.msra.mxu0 0
        %1866 = vmatprep.subr.bf16.mxu0 0
        %1867 = vmatpush1.bf16.xpose.msra.mxu0 0
        %1868 = vmatprep.subr.bf16.mxu0 0
        %1869 = vmatpush1.bf16.xpose.msra.mxu0 0
        %1870 = vmatprep.subr.bf16.mxu0 0
        %1871 = vmatpush1.bf16.xpose.msra.mxu0 0
        %1872 = vmatprep.subr.bf16.mxu0 0
        %1873 = vmatpush1.bf16.xpose.msra.mxu0 0
        %1874 = vmatprep.subr.bf16.mxu0 0
        %1875 = vmatpush1.bf16.xpose.msra.mxu0 0
        %1876 = vmatprep.subr.bf16.mxu0 0
        %1877 = vmatpush1.bf16.xpose.msra.mxu0 0
        %1878 = vmatprep.subr.bf16.mxu0 0
        %1879 = vmatpush1.bf16.xpose.msra.mxu0 %v1862
        %1880 = vmatprep.subr.bf16.mxu0 0
        %1881 = vmatpush2.bf16.xpose.msra.mxu0 0
        %1882 = vmatprep.subr.bf16.mxu0 0
        %1883 = vmatpush2.bf16.xpose.msra.mxu0 0
        %1884 = vmatprep.subr.bf16.mxu0 0
        %1885 = vmatpush2.bf16.xpose.msra.mxu0 0
        %1886 = vmatprep.subr.bf16.mxu0 0
        %1887 = vmatpush2.bf16.xpose.msra.mxu0 0
        %1888 = vmatprep.subr.bf16.mxu0 0
        %1889 = vmatpush2.bf16.xpose.msra.mxu0 0
        %1890 = vmatprep.subr.bf16.mxu0 0
        %1891 = vmatpush2.bf16.xpose.msra.mxu0 0
        %1892 = vmatprep.subr.bf16.mxu0 0
        %1893 = vmatpush2.bf16.xpose.msra.mxu0 0
        %1894 = vmatprep.subr.bf16.mxu0 0
        %1895 = vmatpush2.bf16.xpose.msra.mxu0 0
        %1896 = vmatprep.mubr.bf16.mxu0 0
        %1897 = vmatmul.mubr.bf16.gmra.mxu0 %v1145
        %v1898 = vpop.f32.mrf.mxu0
        %v1899 = vadd.f32 %v1859, %v1898
        %v1900 = vpop.f32.mrf.mxu0
        %v1901 = vpop.f32.mrf.mxu0
        %v1902 = vadd.f32 %v1859, %v1901
        %v1903 = vpop.f32.mrf.mxu0
        %1904 = vdwg.mxu0
        %s1905 = scalar_lea.vmem %s1047, 8
        %v1906 = vld [vmem:[%s1905] sm:$0xf]
        %s1907 = scalar_lea.vmem %s849, 2 [#allocation10]
        %v1908 = vld [vmem:[%s1907] sm:$0x1]
        %v1910 = vlaneseq
        %v1911 = vshrl.u32 %v1910, 7
        %v1912 = vsub.s32 0, %v1911
        %v1913 = vrot.slane %v1908, %v1912
        %v1916 = vsel %vm1091, %v1906, 0
        %1918 = vmatprep.subr.bf16.mxu0 0
        %1919 = vmatpush1.bf16.xpose.msra.mxu0 0
        %1920 = vmatprep.subr.bf16.mxu0 0
        %1921 = vmatpush1.bf16.xpose.msra.mxu0 0
        %1922 = vmatprep.subr.bf16.mxu0 0
        %1923 = vmatpush1.bf16.xpose.msra.mxu0 0
        %1924 = vmatprep.subr.bf16.mxu0 0
        %1925 = vmatpush1.bf16.xpose.msra.mxu0 0
        %1926 = vmatprep.subr.bf16.mxu0 0
        %1927 = vmatpush1.bf16.xpose.msra.mxu0 0
        %1928 = vmatprep.subr.bf16.mxu0 0
        %1929 = vmatpush1.bf16.xpose.msra.mxu0 0
        %1930 = vmatprep.subr.bf16.mxu0 0
        %1931 = vmatpush1.bf16.xpose.msra.mxu0 0
        %1932 = vmatprep.subr.bf16.mxu0 0
        %1933 = vmatpush1.bf16.xpose.msra.mxu0 %v1916
        %1934 = vmatprep.subr.bf16.mxu0 0
        %1935 = vmatpush2.bf16.xpose.msra.mxu0 0
        %1936 = vmatprep.subr.bf16.mxu0 0
        %1937 = vmatpush2.bf16.xpose.msra.mxu0 0
        %1938 = vmatprep.subr.bf16.mxu0 0
        %1939 = vmatpush2.bf16.xpose.msra.mxu0 0
        %1940 = vmatprep.subr.bf16.mxu0 0
        %1941 = vmatpush2.bf16.xpose.msra.mxu0 0
        %1942 = vmatprep.subr.bf16.mxu0 0
        %1943 = vmatpush2.bf16.xpose.msra.mxu0 0
        %1944 = vmatprep.subr.bf16.mxu0 0
        %1945 = vmatpush2.bf16.xpose.msra.mxu0 0
        %1946 = vmatprep.subr.bf16.mxu0 0
        %1947 = vmatpush2.bf16.xpose.msra.mxu0 0
        %1948 = vmatprep.subr.bf16.mxu0 0
        %1949 = vmatpush2.bf16.xpose.msra.mxu0 0
        %1950 = vmatprep.mubr.bf16.mxu0 0
        %1951 = vmatmul.mubr.bf16.gmra.mxu0 %v1145
        %v1952 = vpop.f32.mrf.mxu0
        %v1953 = vadd.f32 %v1913, %v1952
        %v1954 = vpop.f32.mrf.mxu0
        %v1955 = vpop.f32.mrf.mxu0
        %v1956 = vadd.f32 %v1913, %v1955
        %v1957 = vpop.f32.mrf.mxu0
        %1958 = vdwg.mxu0
        %v1959 = vpack.c.bf16 %v1848, %v1845
        %v1960 = vpack.c.bf16 %v1902, %v1899
        %v1962 = vsel %vm1297, %v1959, 0
        %v1965 = vsel %vm1297, %v1960, 0
        %1967 = vmatprep.subr.bf16.mxu0 0
        %1968 = vmatpush1.bf16.xpose.msra.mxu0 0
        %1969 = vmatprep.subr.bf16.mxu0 0
        %1970 = vmatpush1.bf16.xpose.msra.mxu0 0
        %1971 = vmatprep.subr.bf16.mxu0 0
        %1972 = vmatpush1.bf16.xpose.msra.mxu0 0
        %1973 = vmatprep.subr.bf16.mxu0 0
        %1974 = vmatpush1.bf16.xpose.msra.mxu0 0
        %1975 = vmatprep.subr.bf16.mxu0 0
        %1976 = vmatpush1.bf16.xpose.msra.mxu0 0
        %1977 = vmatprep.subr.bf16.mxu0 0
        %1978 = vmatpush1.bf16.xpose.msra.mxu0 0
        %1979 = vmatprep.subr.bf16.mxu0 0
        %1980 = vmatpush1.bf16.xpose.msra.mxu0 0
        %1981 = vmatprep.subr.bf16.mxu0 0
        %1982 = vmatpush1.bf16.xpose.msra.mxu0 %v1965
        %1983 = vmatprep.subr.bf16.mxu0 0
        %1984 = vmatpush2.bf16.xpose.msra.mxu0 0
        %1985 = vmatprep.subr.bf16.mxu0 0
        %1986 = vmatpush2.bf16.xpose.msra.mxu0 0
        %1987 = vmatprep.subr.bf16.mxu0 0
        %1988 = vmatpush2.bf16.xpose.msra.mxu0 0
        %1989 = vmatprep.subr.bf16.mxu0 0
        %1990 = vmatpush2.bf16.xpose.msra.mxu0 0
        %1991 = vmatprep.subr.bf16.mxu0 0
        %1992 = vmatpush2.bf16.xpose.msra.mxu0 0
        %1993 = vmatprep.subr.bf16.mxu0 0
        %1994 = vmatpush2.bf16.xpose.msra.mxu0 0
        %1995 = vmatprep.subr.bf16.mxu0 0
        %1996 = vmatpush2.bf16.xpose.msra.mxu0 0
        %1997 = vmatprep.subr.bf16.mxu0 0
        %1998 = vmatpush2.bf16.xpose.msra.mxu0 0
        %1999 = vmatprep.mubr.bf16.mxu0 0
        %2000 = vmatmul.mubr.bf16.gmra.mxu0 %v1962
        %v2001 = vpop.f32.mrf.mxu0
        %v2002 = vadd.f32 0.0, %v2001
        %v2003 = vpop.f32.mrf.mxu0
        %v2004 = vpop.f32.mrf.mxu0
        %v2005 = vadd.f32 0.0, %v2004
        %v2006 = vpop.f32.mrf.mxu0
        %2007 = vdwg.mxu0
        %v2008 = vmul.f32 %v2002, 0.35355338
        %v2009 = vmul.f32 %v2005, 0.35355338
        %v2010 = vsel %vm1347, %v2008, -inf
        %2011 = vmax.xlane.f32.xlu0 %v2010
        %v2012 = vpop.xlane.xlu0 %2011
        %v2013 = vsel %vm1347, %v2009, -inf
        %2014 = vmax.xlane.f32.xlu0 %v2013
        %v2015 = vpop.xlane.xlu0 %2014
        %v2016 = vsub.f32 %v2008, %v2012
        %v2017 = vsub.f32 %v2009, %v2015
        %v2018 = vmul.f32 %v2016, 1.442695
        %v2019 = vpow.pop %v2018
        %v2020 = vmul.f32 %v2017, 1.442695
        %v2021 = vpow.pop %v2020
        %v2022 = vsel %vm1347, %v2019, 0.0
        %2023 = vadd.xlane.f32.xlu0 %v2022
        %v2024 = vpop.xlane.xlu0 %2023
        %v2025 = vsel %vm1347, %v2021, 0.0
        %2026 = vadd.xlane.f32.xlu0 %v2025
        %v2027 = vpop.xlane.xlu0 %2026
        %v2028 = vrcp.pop %v2024
        %v2029 = vrcp.pop %v2027
        %v2030 = vmul.f32 %v2019, %v2028
        %v2031 = vmul.f32 %v2021, %v2029
        %v2032 = vpack.c.bf16 %v2031, %v2030
        %v2033 = vpack.c.bf16 %v1956, %v1953
        %v2035 = vsel %vm1347, %v2032, 0
        %2037 = vmatprep.subr.bf16.mxu0 0
        %2038 = vmatpush1.bf16.msra.mxu0 0
        %2039 = vmatprep.subr.bf16.mxu0 0
        %2040 = vmatpush1.bf16.msra.mxu0 0
        %2041 = vmatprep.subr.bf16.mxu0 0
        %2042 = vmatpush1.bf16.msra.mxu0 0
        %2043 = vmatprep.subr.bf16.mxu0 0
        %2044 = vmatpush1.bf16.msra.mxu0 0
        %2045 = vmatprep.subr.bf16.mxu0 0
        %2046 = vmatpush1.bf16.msra.mxu0 0
        %2047 = vmatprep.subr.bf16.mxu0 0
        %2048 = vmatpush1.bf16.msra.mxu0 0
        %2049 = vmatprep.subr.bf16.mxu0 0
        %2050 = vmatpush1.bf16.msra.mxu0 0
        %2051 = vmatprep.subr.bf16.mxu0 0
        %2052 = vmatpush1.bf16.msra.mxu0 %v2033
        %2053 = vmatprep.subr.bf16.mxu0 0
        %2054 = vmatpush2.bf16.msra.mxu0 0
        %2055 = vmatprep.subr.bf16.mxu0 0
        %2056 = vmatpush2.bf16.msra.mxu0 0
        %2057 = vmatprep.subr.bf16.mxu0 0
        %2058 = vmatpush2.bf16.msra.mxu0 0
        %2059 = vmatprep.subr.bf16.mxu0 0
        %2060 = vmatpush2.bf16.msra.mxu0 0
        %2061 = vmatprep.subr.bf16.mxu0 0
        %2062 = vmatpush2.bf16.msra.mxu0 0
        %2063 = vmatprep.subr.bf16.mxu0 0
        %2064 = vmatpush2.bf16.msra.mxu0 0
        %2065 = vmatprep.subr.bf16.mxu0 0
        %2066 = vmatpush2.bf16.msra.mxu0 0
        %2067 = vmatprep.subr.bf16.mxu0 0
        %2068 = vmatpush2.bf16.msra.mxu0 0
        %2069 = vmatprep.mubr.bf16.mxu0 0
        %2070 = vmatmul.mubr.bf16.gmra.mxu0 %v2035
        %v2071 = vpop.f32.mrf.mxu0
        %v2072 = vadd.f32 0.0, %v2071
        %v2073 = vpop.f32.mrf.mxu0
        %v2074 = vpop.f32.mrf.mxu0
        %v2075 = vadd.f32 0.0, %v2074
        %v2076 = vpop.f32.mrf.mxu0
        %2077 = vdwg.mxu0
        %v2078 = vpack.c.bf16 %v2075, %v2072
        %s2079 = scalar_lea.vmem %s1056, 8
        %v2080 = vld [vmem:[%s2079] sm:$0xf]
        %v2082 = vsel %vm1297, %v2078, 0
        %v2085 = vsel %vm1705, %v2080, 0
        %2087 = vmatprep.subr.bf16.mxu0 0
        %2088 = vmatpush1.bf16.msra.mxu0 0
        %2089 = vmatprep.subr.bf16.mxu0 0
        %2090 = vmatpush1.bf16.msra.mxu0 0
        %2091 = vmatprep.subr.bf16.mxu0 0
        %2092 = vmatpush1.bf16.msra.mxu0 0
        %2093 = vmatprep.subr.bf16.mxu0 0
        %2094 = vmatpush1.bf16.msra.mxu0 0
        %2095 = vmatprep.subr.bf16.mxu0 0
        %2096 = vmatpush1.bf16.msra.mxu0 0
        %2097 = vmatprep.subr.bf16.mxu0 0
        %2098 = vmatpush1.bf16.msra.mxu0 0
        %2099 = vmatprep.subr.bf16.mxu0 0
        %2100 = vmatpush1.bf16.msra.mxu0 0
        %2101 = vmatprep.subr.bf16.mxu0 0
        %2102 = vmatpush1.bf16.msra.mxu0 %v2085
        %2103 = vmatprep.subr.bf16.mxu0 0
        %2104 = vmatpush2.bf16.msra.mxu0 0
        %2105 = vmatprep.subr.bf16.mxu0 0
        %2106 = vmatpush2.bf16.msra.mxu0 0
        %2107 = vmatprep.subr.bf16.mxu0 0
        %2108 = vmatpush2.bf16.msra.mxu0 0
        %2109 = vmatprep.subr.bf16.mxu0 0
        %2110 = vmatpush2.bf16.msra.mxu0 0
        %2111 = vmatprep.subr.bf16.mxu0 0
        %2112 = vmatpush2.bf16.msra.mxu0 0
        %2113 = vmatprep.subr.bf16.mxu0 0
        %2114 = vmatpush2.bf16.msra.mxu0 0
        %2115 = vmatprep.subr.bf16.mxu0 0
        %2116 = vmatpush2.bf16.msra.mxu0 0
        %2117 = vmatprep.subr.bf16.mxu0 0
        %2118 = vmatpush2.bf16.msra.mxu0 0
        %2119 = vmatprep.mubr.bf16.mxu0 0
        %2120 = vmatmul.mubr.bf16.gmra.mxu0 %v2082
        %v2121 = vpop.f32.mrf.mxu0
        %v2122 = vadd.f32 0.0, %v2121
        %v2123 = vpop.f32.mrf.mxu0
        %v2124 = vpop.f32.mrf.mxu0
        %v2125 = vadd.f32 0.0, %v2124
        %v2126 = vpop.f32.mrf.mxu0
        %2127 = vdwg.mxu0
        %v2128 = vadd.f32 %v1791, %v2122
        %v2129 = vadd.f32 %v1794, %v2125
        %s2130 = scalar_lea.vmem %s1037, 12
        %v2131 = vld [vmem:[%s2130] sm:$0xf]
        %s2132 = scalar_lea.vmem %s1051, 3
        %v2133 = vld [vmem:[%s2132] sm:$0x1]
        %v2135 = vlaneseq
        %v2136 = vshrl.u32 %v2135, 7
        %v2137 = vsub.s32 0, %v2136
        %v2138 = vrot.slane %v2133, %v2137
        %v2141 = vsel %vm1091, %v2131, 0
        %2143 = vmatprep.subr.bf16.mxu0 0
        %2144 = vmatpush1.bf16.xpose.msra.mxu0 0
        %2145 = vmatprep.subr.bf16.mxu0 0
        %2146 = vmatpush1.bf16.xpose.msra.mxu0 0
        %2147 = vmatprep.subr.bf16.mxu0 0
        %2148 = vmatpush1.bf16.xpose.msra.mxu0 0
        %2149 = vmatprep.subr.bf16.mxu0 0
        %2150 = vmatpush1.bf16.xpose.msra.mxu0 0
        %2151 = vmatprep.subr.bf16.mxu0 0
        %2152 = vmatpush1.bf16.xpose.msra.mxu0 0
        %2153 = vmatprep.subr.bf16.mxu0 0
        %2154 = vmatpush1.bf16.xpose.msra.mxu0 0
        %2155 = vmatprep.subr.bf16.mxu0 0
        %2156 = vmatpush1.bf16.xpose.msra.mxu0 0
        %2157 = vmatprep.subr.bf16.mxu0 0
        %2158 = vmatpush1.bf16.xpose.msra.mxu0 %v2141
        %2159 = vmatprep.subr.bf16.mxu0 0
        %2160 = vmatpush2.bf16.xpose.msra.mxu0 0
        %2161 = vmatprep.subr.bf16.mxu0 0
        %2162 = vmatpush2.bf16.xpose.msra.mxu0 0
        %2163 = vmatprep.subr.bf16.mxu0 0
        %2164 = vmatpush2.bf16.xpose.msra.mxu0 0
        %2165 = vmatprep.subr.bf16.mxu0 0
        %2166 = vmatpush2.bf16.xpose.msra.mxu0 0
        %2167 = vmatprep.subr.bf16.mxu0 0
        %2168 = vmatpush2.bf16.xpose.msra.mxu0 0
        %2169 = vmatprep.subr.bf16.mxu0 0
        %2170 = vmatpush2.bf16.xpose.msra.mxu0 0
        %2171 = vmatprep.subr.bf16.mxu0 0
        %2172 = vmatpush2.bf16.xpose.msra.mxu0 0
        %2173 = vmatprep.subr.bf16.mxu0 0
        %2174 = vmatpush2.bf16.xpose.msra.mxu0 0
        %2175 = vmatprep.mubr.bf16.mxu0 0
        %2176 = vmatmul.mubr.bf16.gmra.mxu0 %v1145
        %v2177 = vpop.f32.mrf.mxu0
        %v2178 = vadd.f32 %v2138, %v2177
        %v2179 = vpop.f32.mrf.mxu0
        %v2180 = vpop.f32.mrf.mxu0
        %v2181 = vadd.f32 %v2138, %v2180
        %v2182 = vpop.f32.mrf.mxu0
        %2183 = vdwg.mxu0
        %s2184 = scalar_lea.vmem %s1042, 12
        %v2185 = vld [vmem:[%s2184] sm:$0xf]
        %s2186 = scalar_lea.vmem %s840, 3 [#allocation9]
        %v2187 = vld [vmem:[%s2186] sm:$0x1]
        %v2189 = vlaneseq
        %v2190 = vshrl.u32 %v2189, 7
        %v2191 = vsub.s32 0, %v2190
        %v2192 = vrot.slane %v2187, %v2191
        %v2195 = vsel %vm1091, %v2185, 0
        %2197 = vmatprep.subr.bf16.mxu0 0
        %2198 = vmatpush1.bf16.xpose.msra.mxu0 0
        %2199 = vmatprep.subr.bf16.mxu0 0
        %2200 = vmatpush1.bf16.xpose.msra.mxu0 0
        %2201 = vmatprep.subr.bf16.mxu0 0
        %2202 = vmatpush1.bf16.xpose.msra.mxu0 0
        %2203 = vmatprep.subr.bf16.mxu0 0
        %2204 = vmatpush1.bf16.xpose.msra.mxu0 0
        %2205 = vmatprep.subr.bf16.mxu0 0
        %2206 = vmatpush1.bf16.xpose.msra.mxu0 0
        %2207 = vmatprep.subr.bf16.mxu0 0
        %2208 = vmatpush1.bf16.xpose.msra.mxu0 0
        %2209 = vmatprep.subr.bf16.mxu0 0
        %2210 = vmatpush1.bf16.xpose.msra.mxu0 0
        %2211 = vmatprep.subr.bf16.mxu0 0
        %2212 = vmatpush1.bf16.xpose.msra.mxu0 %v2195
        %2213 = vmatprep.subr.bf16.mxu0 0
        %2214 = vmatpush2.bf16.xpose.msra.mxu0 0
        %2215 = vmatprep.subr.bf16.mxu0 0
        %2216 = vmatpush2.bf16.xpose.msra.mxu0 0
        %2217 = vmatprep.subr.bf16.mxu0 0
        %2218 = vmatpush2.bf16.xpose.msra.mxu0 0
        %2219 = vmatprep.subr.bf16.mxu0 0
        %2220 = vmatpush2.bf16.xpose.msra.mxu0 0
        %2221 = vmatprep.subr.bf16.mxu0 0
        %2222 = vmatpush2.bf16.xpose.msra.mxu0 0
        %2223 = vmatprep.subr.bf16.mxu0 0
        %2224 = vmatpush2.bf16.xpose.msra.mxu0 0
        %2225 = vmatprep.subr.bf16.mxu0 0
        %2226 = vmatpush2.bf16.xpose.msra.mxu0 0
        %2227 = vmatprep.subr.bf16.mxu0 0
        %2228 = vmatpush2.bf16.xpose.msra.mxu0 0
        %2229 = vmatprep.mubr.bf16.mxu0 0
        %2230 = vmatmul.mubr.bf16.gmra.mxu0 %v1145
        %v2231 = vpop.f32.mrf.mxu0
        %v2232 = vadd.f32 %v2192, %v2231
        %v2233 = vpop.f32.mrf.mxu0
        %v2234 = vpop.f32.mrf.mxu0
        %v2235 = vadd.f32 %v2192, %v2234
        %v2236 = vpop.f32.mrf.mxu0
        %2237 = vdwg.mxu0
        %s2238 = scalar_lea.vmem %s1047, 12
        %v2239 = vld [vmem:[%s2238] sm:$0xf]
        %s2240 = scalar_lea.vmem %s849, 3 [#allocation10]
        %v2241 = vld [vmem:[%s2240] sm:$0x1]
        %v2243 = vlaneseq
        %v2244 = vshrl.u32 %v2243, 7
        %v2245 = vsub.s32 0, %v2244
        %v2246 = vrot.slane %v2241, %v2245
        %v2249 = vsel %vm1091, %v2239, 0
        %2251 = vmatprep.subr.bf16.mxu0 0
        %2252 = vmatpush1.bf16.xpose.msra.mxu0 0
        %2253 = vmatprep.subr.bf16.mxu0 0
        %2254 = vmatpush1.bf16.xpose.msra.mxu0 0
        %2255 = vmatprep.subr.bf16.mxu0 0
        %2256 = vmatpush1.bf16.xpose.msra.mxu0 0
        %2257 = vmatprep.subr.bf16.mxu0 0
        %2258 = vmatpush1.bf16.xpose.msra.mxu0 0
        %2259 = vmatprep.subr.bf16.mxu0 0
        %2260 = vmatpush1.bf16.xpose.msra.mxu0 0
        %2261 = vmatprep.subr.bf16.mxu0 0
        %2262 = vmatpush1.bf16.xpose.msra.mxu0 0
        %2263 = vmatprep.subr.bf16.mxu0 0
        %2264 = vmatpush1.bf16.xpose.msra.mxu0 0
        %2265 = vmatprep.subr.bf16.mxu0 0
        %2266 = vmatpush1.bf16.xpose.msra.mxu0 %v2249
        %2267 = vmatprep.subr.bf16.mxu0 0
        %2268 = vmatpush2.bf16.xpose.msra.mxu0 0
        %2269 = vmatprep.subr.bf16.mxu0 0
        %2270 = vmatpush2.bf16.xpose.msra.mxu0 0
        %2271 = vmatprep.subr.bf16.mxu0 0
        %2272 = vmatpush2.bf16.xpose.msra.mxu0 0
        %2273 = vmatprep.subr.bf16.mxu0 0
        %2274 = vmatpush2.bf16.xpose.msra.mxu0 0
        %2275 = vmatprep.subr.bf16.mxu0 0
        %2276 = vmatpush2.bf16.xpose.msra.mxu0 0
        %2277 = vmatprep.subr.bf16.mxu0 0
        %2278 = vmatpush2.bf16.xpose.msra.mxu0 0
        %2279 = vmatprep.subr.bf16.mxu0 0
        %2280 = vmatpush2.bf16.xpose.msra.mxu0 0
        %2281 = vmatprep.subr.bf16.mxu0 0
        %2282 = vmatpush2.bf16.xpose.msra.mxu0 0
        %2283 = vmatprep.mubr.bf16.mxu0 0
        %2284 = vmatmul.mubr.bf16.gmra.mxu0 %v1145
        %v2285 = vpop.f32.mrf.mxu0
        %v2286 = vadd.f32 %v2246, %v2285
        %v2287 = vpop.f32.mrf.mxu0
        %v2288 = vpop.f32.mrf.mxu0
        %v2289 = vadd.f32 %v2246, %v2288
        %v2290 = vpop.f32.mrf.mxu0
        %2291 = vdwg.mxu0
        %v2292 = vpack.c.bf16 %v2181, %v2178
        %v2293 = vpack.c.bf16 %v2235, %v2232
        %v2295 = vsel %vm1297, %v2292, 0
        %v2298 = vsel %vm1297, %v2293, 0
        %2300 = vmatprep.subr.bf16.mxu0 0
        %2301 = vmatpush1.bf16.xpose.msra.mxu0 0
        %2302 = vmatprep.subr.bf16.mxu0 0
        %2303 = vmatpush1.bf16.xpose.msra.mxu0 0
        %2304 = vmatprep.subr.bf16.mxu0 0
        %2305 = vmatpush1.bf16.xpose.msra.mxu0 0
        %2306 = vmatprep.subr.bf16.mxu0 0
        %2307 = vmatpush1.bf16.xpose.msra.mxu0 0
        %2308 = vmatprep.subr.bf16.mxu0 0
        %2309 = vmatpush1.bf16.xpose.msra.mxu0 0
        %2310 = vmatprep.subr.bf16.mxu0 0
        %2311 = vmatpush1.bf16.xpose.msra.mxu0 0
        %2312 = vmatprep.subr.bf16.mxu0 0
        %2313 = vmatpush1.bf16.xpose.msra.mxu0 0
        %2314 = vmatprep.subr.bf16.mxu0 0
        %2315 = vmatpush1.bf16.xpose.msra.mxu0 %v2298
        %2316 = vmatprep.subr.bf16.mxu0 0
        %2317 = vmatpush2.bf16.xpose.msra.mxu0 0
        %2318 = vmatprep.subr.bf16.mxu0 0
        %2319 = vmatpush2.bf16.xpose.msra.mxu0 0
        %2320 = vmatprep.subr.bf16.mxu0 0
        %2321 = vmatpush2.bf16.xpose.msra.mxu0 0
        %2322 = vmatprep.subr.bf16.mxu0 0
        %2323 = vmatpush2.bf16.xpose.msra.mxu0 0
        %2324 = vmatprep.subr.bf16.mxu0 0
        %2325 = vmatpush2.bf16.xpose.msra.mxu0 0
        %2326 = vmatprep.subr.bf16.mxu0 0
        %2327 = vmatpush2.bf16.xpose.msra.mxu0 0
        %2328 = vmatprep.subr.bf16.mxu0 0
        %2329 = vmatpush2.bf16.xpose.msra.mxu0 0
        %2330 = vmatprep.subr.bf16.mxu0 0
        %2331 = vmatpush2.bf16.xpose.msra.mxu0 0
        %2332 = vmatprep.mubr.bf16.mxu0 0
        %2333 = vmatmul.mubr.bf16.gmra.mxu0 %v2295
        %v2334 = vpop.f32.mrf.mxu0
        %v2335 = vadd.f32 0.0, %v2334
        %v2336 = vpop.f32.mrf.mxu0
        %v2337 = vpop.f32.mrf.mxu0
        %v2338 = vadd.f32 0.0, %v2337
        %v2339 = vpop.f32.mrf.mxu0
        %2340 = vdwg.mxu0
        %v2341 = vmul.f32 %v2335, 0.35355338
        %v2342 = vmul.f32 %v2338, 0.35355338
        %v2343 = vsel %vm1347, %v2341, -inf
        %2344 = vmax.xlane.f32.xlu0 %v2343
        %v2345 = vpop.xlane.xlu0 %2344
        %v2346 = vsel %vm1347, %v2342, -inf
        %2347 = vmax.xlane.f32.xlu0 %v2346
        %v2348 = vpop.xlane.xlu0 %2347
        %v2349 = vsub.f32 %v2341, %v2345
        %v2350 = vsub.f32 %v2342, %v2348
        %v2351 = vmul.f32 %v2349, 1.442695
        %v2352 = vpow.pop %v2351
        %v2353 = vmul.f32 %v2350, 1.442695
        %v2354 = vpow.pop %v2353
        %v2355 = vsel %vm1347, %v2352, 0.0
        %2356 = vadd.xlane.f32.xlu0 %v2355
        %v2357 = vpop.xlane.xlu0 %2356
        %v2358 = vsel %vm1347, %v2354, 0.0
        %2359 = vadd.xlane.f32.xlu0 %v2358
        %v2360 = vpop.xlane.xlu0 %2359
        %v2361 = vrcp.pop %v2357
        %v2362 = vrcp.pop %v2360
        %v2363 = vmul.f32 %v2352, %v2361
        %v2364 = vmul.f32 %v2354, %v2362
        %v2365 = vpack.c.bf16 %v2364, %v2363
        %v2366 = vpack.c.bf16 %v2289, %v2286
        %v2368 = vsel %vm1347, %v2365, 0
        %2370 = vmatprep.subr.bf16.mxu0 0
        %2371 = vmatpush1.bf16.msra.mxu0 0
        %2372 = vmatprep.subr.bf16.mxu0 0
        %2373 = vmatpush1.bf16.msra.mxu0 0
        %2374 = vmatprep.subr.bf16.mxu0 0
        %2375 = vmatpush1.bf16.msra.mxu0 0
        %2376 = vmatprep.subr.bf16.mxu0 0
        %2377 = vmatpush1.bf16.msra.mxu0 0
        %2378 = vmatprep.subr.bf16.mxu0 0
        %2379 = vmatpush1.bf16.msra.mxu0 0
        %2380 = vmatprep.subr.bf16.mxu0 0
        %2381 = vmatpush1.bf16.msra.mxu0 0
        %2382 = vmatprep.subr.bf16.mxu0 0
        %2383 = vmatpush1.bf16.msra.mxu0 0
        %2384 = vmatprep.subr.bf16.mxu0 0
        %2385 = vmatpush1.bf16.msra.mxu0 %v2366
        %2386 = vmatprep.subr.bf16.mxu0 0
        %2387 = vmatpush2.bf16.msra.mxu0 0
        %2388 = vmatprep.subr.bf16.mxu0 0
        %2389 = vmatpush2.bf16.msra.mxu0 0
        %2390 = vmatprep.subr.bf16.mxu0 0
        %2391 = vmatpush2.bf16.msra.mxu0 0
        %2392 = vmatprep.subr.bf16.mxu0 0
        %2393 = vmatpush2.bf16.msra.mxu0 0
        %2394 = vmatprep.subr.bf16.mxu0 0
        %2395 = vmatpush2.bf16.msra.mxu0 0
        %2396 = vmatprep.subr.bf16.mxu0 0
        %2397 = vmatpush2.bf16.msra.mxu0 0
        %2398 = vmatprep.subr.bf16.mxu0 0
        %2399 = vmatpush2.bf16.msra.mxu0 0
        %2400 = vmatprep.subr.bf16.mxu0 0
        %2401 = vmatpush2.bf16.msra.mxu0 0
        %2402 = vmatprep.mubr.bf16.mxu0 0
        %2403 = vmatmul.mubr.bf16.gmra.mxu0 %v2368
        %v2404 = vpop.f32.mrf.mxu0
        %v2405 = vadd.f32 0.0, %v2404
        %v2406 = vpop.f32.mrf.mxu0
        %v2407 = vpop.f32.mrf.mxu0
        %v2408 = vadd.f32 0.0, %v2407
        %v2409 = vpop.f32.mrf.mxu0
        %2410 = vdwg.mxu0
        %v2411 = vpack.c.bf16 %v2408, %v2405
        %s2412 = scalar_lea.vmem %s1056, 12
        %v2413 = vld [vmem:[%s2412] sm:$0xf]
        %v2415 = vsel %vm1297, %v2411, 0
        %v2418 = vsel %vm1705, %v2413, 0
        %2420 = vmatprep.subr.bf16.mxu0 0
        %2421 = vmatpush1.bf16.msra.mxu0 0
        %2422 = vmatprep.subr.bf16.mxu0 0
        %2423 = vmatpush1.bf16.msra.mxu0 0
        %2424 = vmatprep.subr.bf16.mxu0 0
        %2425 = vmatpush1.bf16.msra.mxu0 0
        %2426 = vmatprep.subr.bf16.mxu0 0
        %2427 = vmatpush1.bf16.msra.mxu0 0
        %2428 = vmatprep.subr.bf16.mxu0 0
        %2429 = vmatpush1.bf16.msra.mxu0 0
        %2430 = vmatprep.subr.bf16.mxu0 0
        %2431 = vmatpush1.bf16.msra.mxu0 0
        %2432 = vmatprep.subr.bf16.mxu0 0
        %2433 = vmatpush1.bf16.msra.mxu0 0
        %2434 = vmatprep.subr.bf16.mxu0 0
        %2435 = vmatpush1.bf16.msra.mxu0 %v2418
        %2436 = vmatprep.subr.bf16.mxu0 0
        %2437 = vmatpush2.bf16.msra.mxu0 0
        %2438 = vmatprep.subr.bf16.mxu0 0
        %2439 = vmatpush2.bf16.msra.mxu0 0
        %2440 = vmatprep.subr.bf16.mxu0 0
        %2441 = vmatpush2.bf16.msra.mxu0 0
        %2442 = vmatprep.subr.bf16.mxu0 0
        %2443 = vmatpush2.bf16.msra.mxu0 0
        %2444 = vmatprep.subr.bf16.mxu0 0
        %2445 = vmatpush2.bf16.msra.mxu0 0
        %2446 = vmatprep.subr.bf16.mxu0 0
        %2447 = vmatpush2.bf16.msra.mxu0 0
        %2448 = vmatprep.subr.bf16.mxu0 0
        %2449 = vmatpush2.bf16.msra.mxu0 0
        %2450 = vmatprep.subr.bf16.mxu0 0
        %2451 = vmatpush2.bf16.msra.mxu0 0
        %2452 = vmatprep.mubr.bf16.mxu0 0
        %2453 = vmatmul.mubr.bf16.gmra.mxu0 %v2415
        %v2454 = vpop.f32.mrf.mxu0
        %v2455 = vadd.f32 0.0, %v2454
        %v2456 = vpop.f32.mrf.mxu0
        %v2457 = vpop.f32.mrf.mxu0
        %v2458 = vadd.f32 0.0, %v2457
        %v2459 = vpop.f32.mrf.mxu0
        %2460 = vdwg.mxu0
        %v2461 = vadd.f32 %v2128, %v2455
        %v2462 = vadd.f32 %v2129, %v2458
        %v2463 = vadd.f32 %v1087, %v2461
        %v2464 = vadd.f32 %v1088, %v2462
        %v2465 = vld [vmem:[%s857] sm:$0x1]
        %v2467 = vlaneseq
        %v2468 = vshrl.u32 %v2467, 7
        %v2469 = vsub.s32 0, %v2468
        %v2470 = vrot.slane %v2465, %v2469
        %v2472 = vadd.f32 %v2463, %v2470
        %v2473 = vadd.f32 %v2464, %v2470
        %v2474 = vld [vmem:[%s865] sm:$0x1]
        %v2475 = vld [vmem:[%s873] sm:$0x1]
        %v2476 = vsel %vm1091, %v2472, 0.0
        %2477 = vadd.xlane.f32.xlu0 %v2476
        %v2478 = vpop.xlane.xlu0 %2477
        %v2479 = vsel %vm1091, %v2473, 0.0
        %2480 = vadd.xlane.f32.xlu0 %v2479
        %v2481 = vpop.xlane.xlu0 %2480
        %v2482 = vmul.f32 %v2478, %v1098
        %v2483 = vmul.f32 %v2481, %v1098
        %v2484 = vsub.f32 %v2472, %v2482
        %v2485 = vsub.f32 %v2473, %v2483
        %v2486 = vmul.f32 %v2484, %v2484
        %v2487 = vmul.f32 %v2485, %v2485
        %v2488 = vsel %vm1091, %v2486, 0.0
        %2489 = vadd.xlane.f32.xlu0 %v2488
        %v2490 = vpop.xlane.xlu0 %2489
        %v2491 = vsel %vm1091, %v2487, 0.0
        %2492 = vadd.xlane.f32.xlu0 %v2491
        %v2493 = vpop.xlane.xlu0 %2492
        %v2494 = vmul.f32 %v2490, %v1098
        %v2495 = vmul.f32 %v2493, %v1098
        %v2496 = vadd.f32 %v2494, 1e-06
        %v2497 = vadd.f32 %v2495, 1e-06
        %v2498 = vrsqrt.pop %v2496
        %v2499 = vrsqrt.pop %v2497
        %v2500 = vmul.f32 %v2484, %v2498
        %v2501 = vmul.f32 %v2485, %v2499
        %v2503 = vlaneseq
        %v2504 = vshrl.u32 %v2503, 7
        %v2505 = vsub.s32 0, %v2504
        %v2506 = vrot.slane %v2474, %v2505
        %v2508 = vmul.f32 %v2500, %v2506
        %v2509 = vmul.f32 %v2501, %v2506
        %v2511 = vlaneseq
        %v2512 = vshrl.u32 %v2511, 7
        %v2513 = vsub.s32 0, %v2512
        %v2514 = vrot.slane %v2475, %v2513
        %v2516 = vadd.f32 %v2508, %v2514
        %v2517 = vadd.f32 %v2509, %v2514
        %v2518 = vpack.c.bf16 %v2517, %v2516
        %v2519 = vld [vmem:[%s882] sm:$0xf]
        %v2520 = vld [vmem:[%s882 + $0x4] sm:$0xf]
        %v2521 = vld [vmem:[%s882 + $0x8] sm:$0xf]
        %v2522 = vld [vmem:[%s882 + $0xc] sm:$0xf]
        %v2523 = vld [vmem:[%s890] sm:$0x1]
        %v2525 = vlaneseq
        %v2526 = vshrl.u32 %v2525, 7
        %v2527 = vsub.s32 0, %v2526
        %v2528 = vrot.slane %v2523, %v2527
        %v2534 = vunpack.c.l.b16 %v2519
        %v2535 = vunpack.c.l.b16 %v2520
        %v2536 = vunpack.c.l.b16 %v2521
        %v2537 = vunpack.c.l.b16 %v2522
        %v2538 = vpack.c.b16 %v2535, %v2534
        %v2539 = vpack.c.b16 %v2537, %v2536
        %v2543 = vsel %vm1091, %v2518, 0
        %2545 = vmatprep.subr.bf16.mxu0 0
        %2546 = vmatpush1.bf16.msra.mxu0 0
        %2547 = vmatprep.subr.bf16.mxu0 0
        %2548 = vmatpush1.bf16.msra.mxu0 0
        %2549 = vmatprep.subr.bf16.mxu0 0
        %2550 = vmatpush1.bf16.msra.mxu0 0
        %2551 = vmatprep.subr.bf16.mxu0 0
        %2552 = vmatpush1.bf16.msra.mxu0 0
        %2553 = vmatprep.subr.bf16.mxu0 0
        %2554 = vmatpush1.bf16.msra.mxu0 0
        %2555 = vmatprep.subr.bf16.mxu0 0
        %2556 = vmatpush1.bf16.msra.mxu0 0
        %2557 = vmatprep.subr.bf16.mxu0 0
        %2558 = vmatpush1.bf16.msra.mxu0 %v2539
        %2559 = vmatprep.subr.bf16.mxu0 0
        %2560 = vmatpush1.bf16.msra.mxu0 %v2538
        %2561 = vmatprep.subr.bf16.mxu0 0
        %2562 = vmatpush2.bf16.msra.mxu0 0
        %2563 = vmatprep.subr.bf16.mxu0 0
        %2564 = vmatpush2.bf16.msra.mxu0 0
        %2565 = vmatprep.subr.bf16.mxu0 0
        %2566 = vmatpush2.bf16.msra.mxu0 0
        %2567 = vmatprep.subr.bf16.mxu0 0
        %2568 = vmatpush2.bf16.msra.mxu0 0
        %2569 = vmatprep.subr.bf16.mxu0 0
        %2570 = vmatpush2.bf16.msra.mxu0 0
        %2571 = vmatprep.subr.bf16.mxu0 0
        %2572 = vmatpush2.bf16.msra.mxu0 0
        %2573 = vmatprep.subr.bf16.mxu0 0
        %2574 = vmatpush2.bf16.msra.mxu0 0
        %2575 = vmatprep.subr.bf16.mxu0 0
        %2576 = vmatpush2.bf16.msra.mxu0 0
        %2577 = vmatprep.mubr.bf16.mxu0 0
        %2578 = vmatmul.mubr.bf16.gmra.mxu0 %v2543
        %v2579 = vpop.f32.mrf.mxu0
        %v2580 = vadd.f32 %v2528, %v2579
        %v2581 = vpop.f32.mrf.mxu0
        %v2582 = vpop.f32.mrf.mxu0
        %v2583 = vadd.f32 %v2528, %v2582
        %v2584 = vpop.f32.mrf.mxu0
        %2585 = vdwg.mxu0
        %v2586 = vmul.f32 %v2580, 0.5
        %v2587 = vmul.f32 %v2583, 0.5
        %v2588 = vmul.f32 %v2580, 0.70710677
        %v2589 = vmul.f32 %v2583, 0.70710677
        %v2590 = verf.f32.pop %v2588
        %v2591 = verf.f32.pop %v2589
        %v2592 = vadd.f32 %v2590, 1.0
        %v2593 = vadd.f32 %v2591, 1.0
        %v2594 = vmul.f32 %v2586, %v2592
        %v2595 = vmul.f32 %v2587, %v2593
        %v2596 = vpack.c.bf16 %v2595, %v2594
        %v2597 = vld [vmem:[%s1061] sm:$0xf]
        %v2598 = vld [vmem:[%s1061 + $0x4] sm:$0xf]
        %v2599 = vld [vmem:[%s1061 + $0x8] sm:$0xf]
        %v2600 = vld [vmem:[%s1061 + $0xc] sm:$0xf]
        %v2601 = vld [vmem:[%s1061 + $0x10] sm:$0xf]
        %v2602 = vld [vmem:[%s1061 + $0x14] sm:$0xf]
        %v2603 = vld [vmem:[%s1061 + $0x18] sm:$0xf]
        %v2604 = vld [vmem:[%s1061 + $0x1c] sm:$0xf]
        %v2605 = vld [vmem:[%s1061 + $0x20] sm:$0xf]
        %v2606 = vld [vmem:[%s1061 + $0x24] sm:$0xf]
        %v2607 = vld [vmem:[%s1061 + $0x28] sm:$0xf]
        %v2608 = vld [vmem:[%s1061 + $0x2c] sm:$0xf]
        %v2609 = vld [vmem:[%s1061 + $0x30] sm:$0xf]
        %v2610 = vld [vmem:[%s1061 + $0x34] sm:$0xf]
        %v2611 = vld [vmem:[%s1061 + $0x38] sm:$0xf]
        %v2612 = vld [vmem:[%s1061 + $0x3c] sm:$0xf]
        %v2613 = vld [vmem:[%s898] sm:$0x1]
        %v2615 = vlaneseq
        %v2616 = vshrl.u32 %v2615, 7
        %v2617 = vsub.s32 0, %v2616
        %v2618 = vrot.slane %v2613, %v2617
        %v2636 = vunpack.c.l.b16 %v2597
        %v2637 = vunpack.c.l.b16 %v2598
        %v2638 = vunpack.c.l.b16 %v2599
        %v2639 = vunpack.c.l.b16 %v2600
        %v2640 = vunpack.c.l.b16 %v2601
        %v2641 = vunpack.c.l.b16 %v2602
        %v2642 = vunpack.c.l.b16 %v2603
        %v2643 = vunpack.c.l.b16 %v2604
        %v2644 = vunpack.c.l.b16 %v2605
        %v2645 = vunpack.c.l.b16 %v2606
        %v2646 = vunpack.c.l.b16 %v2607
        %v2647 = vunpack.c.l.b16 %v2608
        %v2648 = vunpack.c.l.b16 %v2609
        %v2649 = vunpack.c.l.b16 %v2610
        %v2650 = vunpack.c.l.b16 %v2611
        %v2651 = vunpack.c.l.b16 %v2612
        %v2652 = vpack.c.b16 %v2637, %v2636
        %v2653 = vpack.c.b16 %v2639, %v2638
        %v2654 = vpack.c.b16 %v2641, %v2640
        %v2655 = vpack.c.b16 %v2643, %v2642
        %v2656 = vpack.c.b16 %v2645, %v2644
        %v2657 = vpack.c.b16 %v2647, %v2646
        %v2658 = vpack.c.b16 %v2649, %v2648
        %v2659 = vpack.c.b16 %v2651, %v2650
        %2668 = vmatprep.subr.bf16.mxu0 0
        %2669 = vmatpush1.bf16.msra.mxu0 %v2659
        %2670 = vmatprep.subr.bf16.mxu0 0
        %2671 = vmatpush1.bf16.msra.mxu0 %v2658
        %2672 = vmatprep.subr.bf16.mxu0 0
        %2673 = vmatpush1.bf16.msra.mxu0 %v2657
        %2674 = vmatprep.subr.bf16.mxu0 0
        %2675 = vmatpush1.bf16.msra.mxu0 %v2656
        %2676 = vmatprep.subr.bf16.mxu0 0
        %2677 = vmatpush1.bf16.msra.mxu0 %v2655
        %2678 = vmatprep.subr.bf16.mxu0 0
        %2679 = vmatpush1.bf16.msra.mxu0 %v2654
        %2680 = vmatprep.subr.bf16.mxu0 0
        %2681 = vmatpush1.bf16.msra.mxu0 %v2653
        %2682 = vmatprep.subr.bf16.mxu0 0
        %2683 = vmatpush1.bf16.msra.mxu0 %v2652
        %2684 = vmatprep.subr.bf16.mxu0 0
        %2685 = vmatpush2.bf16.msra.mxu0 0
        %2686 = vmatprep.subr.bf16.mxu0 0
        %2687 = vmatpush2.bf16.msra.mxu0 0
        %2688 = vmatprep.subr.bf16.mxu0 0
        %2689 = vmatpush2.bf16.msra.mxu0 0
        %2690 = vmatprep.subr.bf16.mxu0 0
        %2691 = vmatpush2.bf16.msra.mxu0 0
        %2692 = vmatprep.subr.bf16.mxu0 0
        %2693 = vmatpush2.bf16.msra.mxu0 0
        %2694 = vmatprep.subr.bf16.mxu0 0
        %2695 = vmatpush2.bf16.msra.mxu0 0
        %2696 = vmatprep.subr.bf16.mxu0 0
        %2697 = vmatpush2.bf16.msra.mxu0 0
        %2698 = vmatprep.subr.bf16.mxu0 0
        %2699 = vmatpush2.bf16.msra.mxu0 0
        %2700 = vmatprep.mubr.bf16.mxu0 0
        %2701 = vmatmul.mubr.bf16.gmra.mxu0 %v2596
        %v2702 = vpop.f32.mrf.mxu0
        %v2703 = vadd.f32 %v2618, %v2702
        %v2704 = vpop.f32.mrf.mxu0
        %v2705 = vpop.f32.mrf.mxu0
        %v2706 = vadd.f32 %v2618, %v2705
        %v2707 = vpop.f32.mrf.mxu0
        %2708 = vdwg.mxu0
        %v2709 = vadd.f32 %v2472, %v2703
        %v2710 = vadd.f32 %v2473, %v2706
        %2711 = vst.msk [vmem:[#allocation2] sm:$0xff] %vm1091, %v2709
        %2712 = vst.msk [vmem:[#allocation2 + $0x8] sm:$0xff] %vm1091, %v2710
        %2713 = vst.msk [vmem:[%s1071] sm:$0xff] %vm1091, %v2709
        %2714 = vst.msk [vmem:[%s1071 + $0x8] sm:$0xff] %vm1091, %v2710
        %s2715 = sld [smem:[#allocation4 + %s59]]
        %p2716 = scmp.lt.s32.totalorder %s2715, 2
        %s2717 = scalar_select %p2716, %s2715, 2
        %p2718 = scmp.lt.s32.totalorder %s58, 1
        %s2719 = scalar_select %p2718, %s58, 1
        %s2720 = smul.addr %s2719, 2
        %s2721 = smul.addr %s2717, 4
        %s2722 = sadd.s32 %s2720, %s2721
        %s2723 = smul.addr %s2722, 8
        %s2724 = scalar_lea.vmem %s19, %s2723
        // Predicated region
        $region137: #{vit_decoder_forward.1} parent=91 // pred_check
          %p2725 = pneg %p551
        $region138: #{vit_decoder_forward.1} parent=91 // pred_check_branch
          %2727 = sbr.rel (%p2725) target = $region140
        $region139: #{vit_decoder_forward.1} parent=91 // pred_region
          %s2728 = sld [smem:[#allocation4 + %s59]]
        $region140: #{vit_decoder_forward.1} parent=91 // pred_fallthru
          _
      $region92: #{vit_decoder_forward.1} parent=5 // pred_fallthru
        _
      %p2729 = scmp.le.s32.totalorder 2, %s49
      // Predicated region
      $region141: #{vit_decoder_forward.1} parent=5 // pred_check
        %p2730 = pneg %p2729
      $region142: #{vit_decoder_forward.1} parent=5 // pred_check_branch
        %2732 = sbr.rel (%p2730) target = $region144
      $region143: #{vit_decoder_forward.1} parent=5 // pred_region
        %s2733 = ssub.s32 %s49, 2
        // Predicated region
        $region145: #{vit_decoder_forward.1} parent=143 // pred_check
          %p2734 = pneg %p557
        $region146: #{vit_decoder_forward.1} parent=143 // pred_check_branch
          %2736 = sbr.rel (%p2734) target = $region148
        $region147: #{vit_decoder_forward.1} parent=143 // pred_region
          %s2737 = sld [smem:[#allocation4 + %s61]]
          %p2738 = scmp.lt.s32.totalorder %s2737, 2
          %s2739 = scalar_select %p2738, %s2737, 2
          %p2740 = scmp.lt.s32.totalorder %s60, 1
          %s2741 = scalar_select %p2740, %s60, 1
          %s2742 = smul.addr %s2741, 2
          %s2743 = smul.addr %s2739, 4
          %s2744 = sadd.s32 %s2742, %s2743
          %s2745 = smul.addr %s2744, 8
          %s2746 = scalar_lea.vmem %s19, %s2745
        $region148: #{vit_decoder_forward.1} parent=143 // pred_fallthru
          _
      $region144: #{vit_decoder_forward.1} parent=5 // pred_fallthru
        _
    $region6: #{vit_decoder_forward.1} parent=1 // loop_footer
      %s53 = sadd.s32 1, %s49
    $region7: #{vit_decoder_forward.1} parent=1 // loop_footer_branch
      %48 = sbr.rel target = $region3
    $region8: #{vit_decoder_forward.1} parent=1 // loop_exit
      _
    %2747 = vsyncpa [#allocation6], 1
    %s2748 = scalar_lea.sflag [#allocation6], 1
    %2749 = vsyncpa %s2748, 1
    %2750 = vsyncpa [#allocation8], 1
    %s2751 = scalar_lea.sflag [#allocation8], 1
    %2752 = vsyncpa %s2751, 1
    %2753 = vsyncpa [#allocation11], 1
    %s2754 = scalar_lea.sflag [#allocation11], 1
    %2755 = vsyncpa %s2754, 1
    %2756 = vsyncpa [#allocation14], 1
    %s2757 = scalar_lea.sflag [#allocation14], 1
    %2758 = vsyncpa %s2757, 1
    %2759 = vsyncpa [#allocation17], 1
    %s2760 = scalar_lea.sflag [#allocation17], 1
    %2761 = vsyncpa %s2760, 1
    %2762 = vsyncpa [#allocation20], 1
    %s2763 = scalar_lea.sflag [#allocation20], 1
    %2764 = vsyncpa %s2763, 1

</llo_original>
